<compile_context>
chip_gen: v7x
topology: tpu7x:2x2x1
jax: 0.10.0
libtpu: 0.0.40
codegen_flags: <defaults>
</compile_context>

<pallas_src>
import numpy as np
import jax
import jax.numpy as jnp
from jax.experimental import pallas as pl
from jax.experimental.pallas import tpu as pltpu


# ---------------------------------------------------------------------------
# Constant spatial-shift operators (host-side numpy, built once).
# S[k] is the (P, P) 0/1 matrix such that (S[k] @ X)[p] = X[p shifted by tap k]
# with zeros outside the image ('same' zero padding), P = H*W.  Tap order
# k = dy_idx * ksize + dx_idx matches PyTorch weight[..., dy_idx, dx_idx].
# ---------------------------------------------------------------------------
def _shift_matrices(h, w, ksize):
    pad = ksize // 2
    p = h * w
    mats = np.zeros((ksize * ksize, p, p), dtype=np.float32)
    k = 0
    for dy in range(-pad, pad + 1):
        for dx in range(-pad, pad + 1):
            for i in range(h):
                ii = i + dy
                if 0 <= ii < h:
                    for j in range(w):
                        jj = j + dx
                        if 0 <= jj < w:
                            mats[k, i * w + j, ii * w + jj] = 1.0
            k += 1
    return mats


def _sigmoid(x):
    return 1.0 / (1.0 + jnp.exp(-x))


# ---------------------------------------------------------------------------
# Fused kernel: one batch element per grid step.
# ---------------------------------------------------------------------------
def _down_kernel(x4_ref, s3_ref, w1_ref, a1_ref, c1_ref,
                 w2_ref, a2_ref, c2_ref,
                 wfc1_ref, wfc2_ref, msa_avg_ref, msa_max_ref,
                 out_ref):
    f32 = jnp.float32

    # --- MaxPool2d(2): elementwise max over the four pre-gathered candidates.
    xp = jnp.max(x4_ref[0].astype(f32), axis=0)                    # (P, C_in)

    # --- 3x3 'same' conv as sum_k (S_k @ X) @ W_k  (nine static MXU taps).
    def conv3x3(x, w_taps_ref):
        acc = None
        for k in range(9):
            t = jnp.dot(s3_ref[k], x, preferred_element_type=f32)          # (P, C)
            t = jnp.dot(t, w_taps_ref[k], preferred_element_type=f32)      # (P, C_out)
            acc = t if acc is None else acc + t
        return acc

    # conv1 + folded (bias + BatchNorm) + ReLU.
    h = conv3x3(xp, w1_ref)
    h = jnp.maximum(h * a1_ref[...] + c1_ref[...], 0.0)            # (P, C_out)

    # conv2 + folded (bias + BatchNorm) + ReLU.
    g = conv3x3(h, w2_ref)
    g = jnp.maximum(g * a2_ref[...] + c2_ref[...], 0.0)            # (P, C_out)

    # --- Channel attention: global avg/max pool over P + shared 2-layer MLP.
    avg_c = jnp.mean(g, axis=0, keepdims=True)                     # (1, C_out)
    max_c = jnp.max(g, axis=0, keepdims=True)                      # (1, C_out)

    def ca_mlp(v):                                                 # v: (1, C_out)
        hm = jnp.sum(v * wfc1_ref[...], axis=1, keepdims=True)     # (C_mid, 1)
        hm = jnp.maximum(hm, 0.0)
        return jnp.sum(hm * wfc2_ref[...], axis=0, keepdims=True)  # (1, C_out)

    ca = _sigmoid(ca_mlp(avg_c) + ca_mlp(max_c))                   # (1, C_out)
    g = g * ca

    # --- Spatial attention: 7x7 conv folded into two (P, P) operators.
    # Keep MXU operands at full (P, C_out) width (no 1-column matmuls):
    #  * channel-mean commutes with the spatial operator, so reduce after it;
    #  * channel-max is broadcast back over channels, all columns identical.
    max_b = jnp.zeros_like(g) + jnp.max(g, axis=1, keepdims=True)  # (P, C_out)
    avg_part = jnp.dot(msa_avg_ref[...], g, preferred_element_type=f32)
    max_part = jnp.dot(msa_max_ref[...], max_b, preferred_element_type=f32)
    sa_logit = (jnp.mean(avg_part, axis=1, keepdims=True)
                + jnp.mean(max_part, axis=1, keepdims=True))       # (P, 1)
    sa = _sigmoid(sa_logit)

    out_ref[0] = (g * sa).astype(out_ref.dtype)


def _const_spec(arr):
    zeros = (0,) * arr.ndim
    return pl.BlockSpec(arr.shape, lambda i, _z=zeros: _z)


# ---------------------------------------------------------------------------
# Wrapper: weight folding + layout plumbing + pallas_call.
# ---------------------------------------------------------------------------
def down_forward(x, params):
    """Forward of down(in_ch, out_ch): MaxPool2d(2) + double_conv (+CA+SA).

    x: (N, C_in, H, W) NCHW.  Returns (N, C_out, H//2, W//2) NCHW.
    BatchNorm uses folded running statistics (inference mode).
    """
    n, c_in, h, w = x.shape
    assert h % 2 == 0 and w % 2 == 0
    hp, wp = h // 2, w // 2
    p = hp * wp
    w1 = params["w1"]
    c_out = w1.shape[0]
    eps = 1e-5
    f32 = jnp.float32
    hi = jax.lax.Precision.HIGHEST

    # ---- weight preprocessing (folding / layout only, no per-pixel compute).
    s3 = jnp.asarray(_shift_matrices(hp, wp, 3))                       # (9, P, P)
    s7 = jnp.asarray(_shift_matrices(hp, wp, 7))                       # (49, P, P)
    w1_taps = jnp.transpose(w1.astype(f32), (2, 3, 1, 0)).reshape(9, c_in, c_out)
    w2_taps = jnp.transpose(params["w2"].astype(f32), (2, 3, 1, 0)).reshape(9, c_out, c_out)

    def fold_bn(gamma, beta, mean, var, conv_bias):
        a = gamma.astype(f32) / jnp.sqrt(var.astype(f32) + eps)
        c = beta.astype(f32) + a * (conv_bias.astype(f32) - mean.astype(f32))
        return a.reshape(1, c_out), c.reshape(1, c_out)

    a1, c1 = fold_bn(params["g1"], params["be1"], params["m1"], params["v1"], params["b1"])
    a2, c2 = fold_bn(params["g2"], params["be2"], params["m2"], params["v2"], params["b2"])

    wfc1 = params["fc1"][:, :, 0, 0].astype(f32)                       # (C_mid, C_out)
    wfc2 = params["fc2"][:, :, 0, 0].astype(f32).T                     # (C_mid, C_out)

    wsa = params["wsa"].astype(f32)                                    # (1, 2, 7, 7)
    m_avg = jnp.einsum("k,kpq->pq", wsa[0, 0].reshape(-1), s7, precision=hi)
    m_max = jnp.einsum("k,kpq->pq", wsa[0, 1].reshape(-1), s7, precision=hi)

    # ---- input layout: the four 2x2 pool candidates, channels last.
    cand = jnp.stack([x[:, :, 0::2, 0::2], x[:, :, 0::2, 1::2],
                      x[:, :, 1::2, 0::2], x[:, :, 1::2, 1::2]], axis=1)   # (N,4,C,hp,wp)
    cand = cand.transpose(0, 1, 3, 4, 2).reshape(n, 4, p, c_in)

    operands = (cand, s3, w1_taps, a1, c1, w2_taps, a2, c2, wfc1, wfc2, m_avg, m_max)

    in_specs = [pl.BlockSpec((1, 4, p, c_in), lambda i: (i, 0, 0, 0))] + \
               [_const_spec(a) for a in operands[1:]]
    out_specs = pl.BlockSpec((1, p, c_out), lambda i: (i, 0, 0))

    flops = n * (9 * 2 * (p * p * c_in + p * c_in * c_out)
                 + 9 * 2 * (p * p * c_out + p * c_out * c_out)
                 + 2 * 2 * p * p * c_out)
    transcendentals = n * (2 * c_out + p)
    bytes_accessed = sum(int(a.size) * 4 for a in operands) + n * p * c_out * 4

    out_flat = pl.pallas_call(
        _down_kernel,
        out_shape=jax.ShapeDtypeStruct((n, p, c_out), x.dtype),
        grid_spec=pltpu.PrefetchScalarGridSpec(
            num_scalar_prefetch=0,
            grid=(n,),
            in_specs=in_specs,
            out_specs=out_specs,
        ),
        compiler_params=pltpu.CompilerParams(
            dimension_semantics=("parallel",)),
        cost_estimate=pl.CostEstimate(
            flops=flops, transcendentals=transcendentals,
            bytes_accessed=bytes_accessed),
    )(*operands)

    return out_flat.reshape(n, hp, wp, c_out).transpose(0, 3, 1, 2)     # NCHW


# ---------------------------------------------------------------------------
# Pure-JAX reference (same math, standard XLA convs) for validation.
# ---------------------------------------------------------------------------
def _reference_down(x, params):
    eps = 1e-5
    hi = jax.lax.Precision.HIGHEST

    def conv2d(v, w, pad):
        return jax.lax.conv_general_dilated(
            v, w, window_strides=(1, 1), padding=[(pad, pad), (pad, pad)],
            dimension_numbers=("NCHW", "OIHW", "NCHW"), precision=hi)

    def bn(v, gamma, beta, mean, var):
        s = gamma / jnp.sqrt(var + eps)
        return v * s.reshape(1, -1, 1, 1) + (beta - mean * s).reshape(1, -1, 1, 1)

    xp = jax.lax.reduce_window(x, -jnp.inf, jax.lax.max,
                               (1, 1, 2, 2), (1, 1, 2, 2), "VALID")
    h = jax.nn.relu(bn(conv2d(xp, params["w1"], 1) + params["b1"].reshape(1, -1, 1, 1),
                       params["g1"], params["be1"], params["m1"], params["v1"]))
    g = jax.nn.relu(bn(conv2d(h, params["w2"], 1) + params["b2"].reshape(1, -1, 1, 1),
                       params["g2"], params["be2"], params["m2"], params["v2"]))
    avg = jnp.mean(g, axis=(2, 3), keepdims=True)
    mx = jnp.max(g, axis=(2, 3), keepdims=True)

    def ca_mlp(v):
        return conv2d(jax.nn.relu(conv2d(v, params["fc1"], 0)), params["fc2"], 0)

    g = g * jax.nn.sigmoid(ca_mlp(avg) + ca_mlp(mx))
    avg_s = jnp.mean(g, axis=1, keepdims=True)
    max_s = jnp.max(g, axis=1, keepdims=True)
    sa = jax.nn.sigmoid(conv2d(jnp.concatenate([avg_s, max_s], axis=1), params["wsa"], 3))
    return g * sa


def init_down_params(key, in_ch, out_ch):
    assert out_ch >= 16, "ChannelAttention uses out_ch // 16 hidden channels"
    c_mid = out_ch // 16
    ks = jax.random.split(key, 12)
    f = jnp.float32
    nrm = jax.random.normal
    return {
        "w1": 0.2 * nrm(ks[0], (out_ch, in_ch, 3, 3), f),
        "b1": 0.1 * nrm(ks[1], (out_ch,), f),
        "g1": 1.0 + 0.1 * nrm(ks[2], (out_ch,), f),
        "be1": 0.1 * nrm(ks[3], (out_ch,), f),
        "m1": 0.05 * nrm(ks[4], (out_ch,), f),
        "v1": 0.8 + 0.4 * jax.random.uniform(ks[5], (out_ch,), f),
        "w2": 0.1 * nrm(ks[6], (out_ch, out_ch, 3, 3), f),
        "b2": 0.1 * nrm(ks[7], (out_ch,), f),
        "g2": 1.0 + 0.1 * nrm(ks[8], (out_ch,), f),
        "be2": 0.1 * nrm(ks[9], (out_ch,), f),
        "m2": 0.05 * nrm(ks[10], (out_ch,), f),
        "v2": 0.8 + 0.4 * jax.random.uniform(ks[11], (out_ch,), f),
        "fc1": 0.2 * nrm(jax.random.fold_in(key, 100), (c_mid, out_ch, 1, 1), f),
        "fc2": 0.2 * nrm(jax.random.fold_in(key, 101), (out_ch, c_mid, 1, 1), f),
        "wsa": 0.2 * nrm(jax.random.fold_in(key, 102), (1, 2, 7, 7), f),
    }


if __name__ == "__main__":
    key = jax.random.PRNGKey(0)
    kx, kp = jax.random.split(key)

    # down(in_ch=4, out_ch=32) on a small NCHW input.
    n, in_ch, hh, ww = 2, 4, 16, 16
    out_ch = 32
    x = jax.random.normal(kx, (n, in_ch, hh, ww), dtype=jnp.float32)
    params = init_down_params(kp, in_ch, out_ch)

    y = jax.jit(down_forward)(x, params)
    jax.block_until_ready(y)
    assert y.shape == (n, out_ch, hh // 2, ww // 2), y.shape

    y_ref = _reference_down(x, params)
    max_err = float(jnp.max(jnp.abs(y - y_ref)))
    assert jnp.allclose(y, y_ref, atol=5e-3, rtol=5e-3), max_err
    print("KERNEL_OK")
</pallas_src>

<mosaic_0001>
module attributes {stable_mosaic.version = 11 : i64} {
  func.func @_down_kernel(%arg0: i32, %arg1: memref<1x4x64x4xf32, #tpu.memory_space<vmem>>, %arg2: memref<9x64x64xf32, #tpu.memory_space<vmem>>, %arg3: memref<9x4x32xf32, #tpu.memory_space<vmem>>, %arg4: memref<1x32xf32, #tpu.memory_space<vmem>>, %arg5: memref<1x32xf32, #tpu.memory_space<vmem>>, %arg6: memref<9x32x32xf32, #tpu.memory_space<vmem>>, %arg7: memref<1x32xf32, #tpu.memory_space<vmem>>, %arg8: memref<1x32xf32, #tpu.memory_space<vmem>>, %arg9: memref<2x32xf32, #tpu.memory_space<vmem>>, %arg10: memref<2x32xf32, #tpu.memory_space<vmem>>, %arg11: memref<64x64xf32, #tpu.memory_space<vmem>>, %arg12: memref<64x64xf32, #tpu.memory_space<vmem>>, %arg13: memref<1x64x32xf32, #tpu.memory_space<vmem>>) attributes {dimension_semantics = [#tpu.dimension_semantics<parallel>], iteration_bounds = array<i64: 2>, scalar_prefetch = 0 : i64, scratch_operands = 0 : i64, tpu.core_type = #tpu.core_type<tc>, window_params = [{transform_indices = @transform_0, window_bounds = array<i64: 1, 4, 64, 4>}, {pipeline_mode = #tpu.pipeline_mode<synchronous>, transform_indices = @transform_1, window_bounds = array<i64: 9, 64, 64>}, {pipeline_mode = #tpu.pipeline_mode<synchronous>, transform_indices = @transform_2, window_bounds = array<i64: 9, 4, 32>}, {pipeline_mode = #tpu.pipeline_mode<synchronous>, transform_indices = @transform_3, window_bounds = array<i64: 1, 32>}, {pipeline_mode = #tpu.pipeline_mode<synchronous>, transform_indices = @transform_4, window_bounds = array<i64: 1, 32>}, {pipeline_mode = #tpu.pipeline_mode<synchronous>, transform_indices = @transform_5, window_bounds = array<i64: 9, 32, 32>}, {pipeline_mode = #tpu.pipeline_mode<synchronous>, transform_indices = @transform_6, window_bounds = array<i64: 1, 32>}, {pipeline_mode = #tpu.pipeline_mode<synchronous>, transform_indices = @transform_7, window_bounds = array<i64: 1, 32>}, {pipeline_mode = #tpu.pipeline_mode<synchronous>, transform_indices = @transform_8, window_bounds = array<i64: 2, 32>}, {pipeline_mode = #tpu.pipeline_mode<synchronous>, transform_indices = @transform_9, window_bounds = array<i64: 2, 32>}, {pipeline_mode = #tpu.pipeline_mode<synchronous>, transform_indices = @transform_10, window_bounds = array<i64: 64, 64>}, {pipeline_mode = #tpu.pipeline_mode<synchronous>, transform_indices = @transform_11, window_bounds = array<i64: 64, 64>}, {transform_indices = @transform_12, window_bounds = array<i64: 1, 64, 32>}]} {
    %c0 = arith.constant 0 : index
    %c0_0 = arith.constant 0 : index
    %c0_1 = arith.constant 0 : index
    %c0_2 = arith.constant 0 : index
    %0 = vector.load %arg1[%c0, %c0_0, %c0_1, %c0_2] : memref<1x4x64x4xf32, #tpu.memory_space<vmem>>, vector<1x4x64x4xf32>
    %1 = vector.shape_cast %0 : vector<1x4x64x4xf32> to vector<4x64x4xf32>
    %cst = arith.constant dense<0xFF800000> : vector<64x4xf32>
    %2 = vector.multi_reduction <maximumf>, %1, %cst [0] : vector<4x64x4xf32> to vector<64x4xf32>
    %c0_3 = arith.constant 0 : index
    %c0_4 = arith.constant 0 : index
    %c0_5 = arith.constant 0 : index
    %3 = vector.load %arg2[%c0_3, %c0_4, %c0_5] : memref<9x64x64xf32, #tpu.memory_space<vmem>>, vector<1x64x64xf32>
    %4 = vector.shape_cast %3 : vector<1x64x64xf32> to vector<64x64xf32>
    %cst_6 = arith.constant dense<0.000000e+00> : vector<64x4xf32>
    %5 = tpu.matmul %4, %2, %cst_6 {dimension_numbers = #tpu.dot_dimension_numbers<[1], [0], [0], [1], [0, 0, 1, 1], [], []>} : vector<64x64xf32>, vector<64x4xf32>, vector<64x4xf32> -> vector<64x4xf32>
    %c0_7 = arith.constant 0 : index
    %c0_8 = arith.constant 0 : index
    %c0_9 = arith.constant 0 : index
    %6 = vector.load %arg3[%c0_7, %c0_8, %c0_9] : memref<9x4x32xf32, #tpu.memory_space<vmem>>, vector<1x4x32xf32>
    %7 = vector.shape_cast %6 : vector<1x4x32xf32> to vector<4x32xf32>
    %cst_10 = arith.constant dense<0.000000e+00> : vector<64x32xf32>
    %8 = tpu.matmul %5, %7, %cst_10 {dimension_numbers = #tpu.dot_dimension_numbers<[1], [0], [0], [1], [0, 0, 1, 1], [], []>} : vector<64x4xf32>, vector<4x32xf32>, vector<64x32xf32> -> vector<64x32xf32>
    %c1 = arith.constant 1 : index
    %c0_11 = arith.constant 0 : index
    %c0_12 = arith.constant 0 : index
    %9 = vector.load %arg2[%c1, %c0_11, %c0_12] : memref<9x64x64xf32, #tpu.memory_space<vmem>>, vector<1x64x64xf32>
    %10 = vector.shape_cast %9 : vector<1x64x64xf32> to vector<64x64xf32>
    %cst_13 = arith.constant dense<0.000000e+00> : vector<64x4xf32>
    %11 = tpu.matmul %10, %2, %cst_13 {dimension_numbers = #tpu.dot_dimension_numbers<[1], [0], [0], [1], [0, 0, 1, 1], [], []>} : vector<64x64xf32>, vector<64x4xf32>, vector<64x4xf32> -> vector<64x4xf32>
    %c1_14 = arith.constant 1 : index
    %c0_15 = arith.constant 0 : index
    %c0_16 = arith.constant 0 : index
    %12 = vector.load %arg3[%c1_14, %c0_15, %c0_16] : memref<9x4x32xf32, #tpu.memory_space<vmem>>, vector<1x4x32xf32>
    %13 = vector.shape_cast %12 : vector<1x4x32xf32> to vector<4x32xf32>
    %cst_17 = arith.constant dense<0.000000e+00> : vector<64x32xf32>
    %14 = tpu.matmul %11, %13, %cst_17 {dimension_numbers = #tpu.dot_dimension_numbers<[1], [0], [0], [1], [0, 0, 1, 1], [], []>} : vector<64x4xf32>, vector<4x32xf32>, vector<64x32xf32> -> vector<64x32xf32>
    %15 = arith.addf %8, %14 : vector<64x32xf32>
    %c2 = arith.constant 2 : index
    %c0_18 = arith.constant 0 : index
    %c0_19 = arith.constant 0 : index
    %16 = vector.load %arg2[%c2, %c0_18, %c0_19] : memref<9x64x64xf32, #tpu.memory_space<vmem>>, vector<1x64x64xf32>
    %17 = vector.shape_cast %16 : vector<1x64x64xf32> to vector<64x64xf32>
    %cst_20 = arith.constant dense<0.000000e+00> : vector<64x4xf32>
    %18 = tpu.matmul %17, %2, %cst_20 {dimension_numbers = #tpu.dot_dimension_numbers<[1], [0], [0], [1], [0, 0, 1, 1], [], []>} : vector<64x64xf32>, vector<64x4xf32>, vector<64x4xf32> -> vector<64x4xf32>
    %c2_21 = arith.constant 2 : index
    %c0_22 = arith.constant 0 : index
    %c0_23 = arith.constant 0 : index
    %19 = vector.load %arg3[%c2_21, %c0_22, %c0_23] : memref<9x4x32xf32, #tpu.memory_space<vmem>>, vector<1x4x32xf32>
    %20 = vector.shape_cast %19 : vector<1x4x32xf32> to vector<4x32xf32>
    %cst_24 = arith.constant dense<0.000000e+00> : vector<64x32xf32>
    %21 = tpu.matmul %18, %20, %cst_24 {dimension_numbers = #tpu.dot_dimension_numbers<[1], [0], [0], [1], [0, 0, 1, 1], [], []>} : vector<64x4xf32>, vector<4x32xf32>, vector<64x32xf32> -> vector<64x32xf32>
    %22 = arith.addf %15, %21 : vector<64x32xf32>
    %c3 = arith.constant 3 : index
    %c0_25 = arith.constant 0 : index
    %c0_26 = arith.constant 0 : index
    %23 = vector.load %arg2[%c3, %c0_25, %c0_26] : memref<9x64x64xf32, #tpu.memory_space<vmem>>, vector<1x64x64xf32>
    %24 = vector.shape_cast %23 : vector<1x64x64xf32> to vector<64x64xf32>
    %cst_27 = arith.constant dense<0.000000e+00> : vector<64x4xf32>
    %25 = tpu.matmul %24, %2, %cst_27 {dimension_numbers = #tpu.dot_dimension_numbers<[1], [0], [0], [1], [0, 0, 1, 1], [], []>} : vector<64x64xf32>, vector<64x4xf32>, vector<64x4xf32> -> vector<64x4xf32>
    %c3_28 = arith.constant 3 : index
    %c0_29 = arith.constant 0 : index
    %c0_30 = arith.constant 0 : index
    %26 = vector.load %arg3[%c3_28, %c0_29, %c0_30] : memref<9x4x32xf32, #tpu.memory_space<vmem>>, vector<1x4x32xf32>
    %27 = vector.shape_cast %26 : vector<1x4x32xf32> to vector<4x32xf32>
    %cst_31 = arith.constant dense<0.000000e+00> : vector<64x32xf32>
    %28 = tpu.matmul %25, %27, %cst_31 {dimension_numbers = #tpu.dot_dimension_numbers<[1], [0], [0], [1], [0, 0, 1, 1], [], []>} : vector<64x4xf32>, vector<4x32xf32>, vector<64x32xf32> -> vector<64x32xf32>
    %29 = arith.addf %22, %28 : vector<64x32xf32>
    %c4 = arith.constant 4 : index
    %c0_32 = arith.constant 0 : index
    %c0_33 = arith.constant 0 : index
    %30 = vector.load %arg2[%c4, %c0_32, %c0_33] : memref<9x64x64xf32, #tpu.memory_space<vmem>>, vector<1x64x64xf32>
    %31 = vector.shape_cast %30 : vector<1x64x64xf32> to vector<64x64xf32>
    %cst_34 = arith.constant dense<0.000000e+00> : vector<64x4xf32>
    %32 = tpu.matmul %31, %2, %cst_34 {dimension_numbers = #tpu.dot_dimension_numbers<[1], [0], [0], [1], [0, 0, 1, 1], [], []>} : vector<64x64xf32>, vector<64x4xf32>, vector<64x4xf32> -> vector<64x4xf32>
    %c4_35 = arith.constant 4 : index
    %c0_36 = arith.constant 0 : index
    %c0_37 = arith.constant 0 : index
    %33 = vector.load %arg3[%c4_35, %c0_36, %c0_37] : memref<9x4x32xf32, #tpu.memory_space<vmem>>, vector<1x4x32xf32>
    %34 = vector.shape_cast %33 : vector<1x4x32xf32> to vector<4x32xf32>
    %cst_38 = arith.constant dense<0.000000e+00> : vector<64x32xf32>
    %35 = tpu.matmul %32, %34, %cst_38 {dimension_numbers = #tpu.dot_dimension_numbers<[1], [0], [0], [1], [0, 0, 1, 1], [], []>} : vector<64x4xf32>, vector<4x32xf32>, vector<64x32xf32> -> vector<64x32xf32>
    %36 = arith.addf %29, %35 : vector<64x32xf32>
    %c5 = arith.constant 5 : index
    %c0_39 = arith.constant 0 : index
    %c0_40 = arith.constant 0 : index
    %37 = vector.load %arg2[%c5, %c0_39, %c0_40] : memref<9x64x64xf32, #tpu.memory_space<vmem>>, vector<1x64x64xf32>
    %38 = vector.shape_cast %37 : vector<1x64x64xf32> to vector<64x64xf32>
    %cst_41 = arith.constant dense<0.000000e+00> : vector<64x4xf32>
    %39 = tpu.matmul %38, %2, %cst_41 {dimension_numbers = #tpu.dot_dimension_numbers<[1], [0], [0], [1], [0, 0, 1, 1], [], []>} : vector<64x64xf32>, vector<64x4xf32>, vector<64x4xf32> -> vector<64x4xf32>
    %c5_42 = arith.constant 5 : index
    %c0_43 = arith.constant 0 : index
    %c0_44 = arith.constant 0 : index
    %40 = vector.load %arg3[%c5_42, %c0_43, %c0_44] : memref<9x4x32xf32, #tpu.memory_space<vmem>>, vector<1x4x32xf32>
    %41 = vector.shape_cast %40 : vector<1x4x32xf32> to vector<4x32xf32>
    %cst_45 = arith.constant dense<0.000000e+00> : vector<64x32xf32>
    %42 = tpu.matmul %39, %41, %cst_45 {dimension_numbers = #tpu.dot_dimension_numbers<[1], [0], [0], [1], [0, 0, 1, 1], [], []>} : vector<64x4xf32>, vector<4x32xf32>, vector<64x32xf32> -> vector<64x32xf32>
    %43 = arith.addf %36, %42 : vector<64x32xf32>
    %c6 = arith.constant 6 : index
    %c0_46 = arith.constant 0 : index
    %c0_47 = arith.constant 0 : index
    %44 = vector.load %arg2[%c6, %c0_46, %c0_47] : memref<9x64x64xf32, #tpu.memory_space<vmem>>, vector<1x64x64xf32>
    %45 = vector.shape_cast %44 : vector<1x64x64xf32> to vector<64x64xf32>
    %cst_48 = arith.constant dense<0.000000e+00> : vector<64x4xf32>
    %46 = tpu.matmul %45, %2, %cst_48 {dimension_numbers = #tpu.dot_dimension_numbers<[1], [0], [0], [1], [0, 0, 1, 1], [], []>} : vector<64x64xf32>, vector<64x4xf32>, vector<64x4xf32> -> vector<64x4xf32>
    %c6_49 = arith.constant 6 : index
    %c0_50 = arith.constant 0 : index
    %c0_51 = arith.constant 0 : index
    %47 = vector.load %arg3[%c6_49, %c0_50, %c0_51] : memref<9x4x32xf32, #tpu.memory_space<vmem>>, vector<1x4x32xf32>
    %48 = vector.shape_cast %47 : vector<1x4x32xf32> to vector<4x32xf32>
    %cst_52 = arith.constant dense<0.000000e+00> : vector<64x32xf32>
    %49 = tpu.matmul %46, %48, %cst_52 {dimension_numbers = #tpu.dot_dimension_numbers<[1], [0], [0], [1], [0, 0, 1, 1], [], []>} : vector<64x4xf32>, vector<4x32xf32>, vector<64x32xf32> -> vector<64x32xf32>
    %50 = arith.addf %43, %49 : vector<64x32xf32>
    %c7 = arith.constant 7 : index
    %c0_53 = arith.constant 0 : index
    %c0_54 = arith.constant 0 : index
    %51 = vector.load %arg2[%c7, %c0_53, %c0_54] : memref<9x64x64xf32, #tpu.memory_space<vmem>>, vector<1x64x64xf32>
    %52 = vector.shape_cast %51 : vector<1x64x64xf32> to vector<64x64xf32>
    %cst_55 = arith.constant dense<0.000000e+00> : vector<64x4xf32>
    %53 = tpu.matmul %52, %2, %cst_55 {dimension_numbers = #tpu.dot_dimension_numbers<[1], [0], [0], [1], [0, 0, 1, 1], [], []>} : vector<64x64xf32>, vector<64x4xf32>, vector<64x4xf32> -> vector<64x4xf32>
    %c7_56 = arith.constant 7 : index
    %c0_57 = arith.constant 0 : index
    %c0_58 = arith.constant 0 : index
    %54 = vector.load %arg3[%c7_56, %c0_57, %c0_58] : memref<9x4x32xf32, #tpu.memory_space<vmem>>, vector<1x4x32xf32>
    %55 = vector.shape_cast %54 : vector<1x4x32xf32> to vector<4x32xf32>
    %cst_59 = arith.constant dense<0.000000e+00> : vector<64x32xf32>
    %56 = tpu.matmul %53, %55, %cst_59 {dimension_numbers = #tpu.dot_dimension_numbers<[1], [0], [0], [1], [0, 0, 1, 1], [], []>} : vector<64x4xf32>, vector<4x32xf32>, vector<64x32xf32> -> vector<64x32xf32>
    %57 = arith.addf %50, %56 : vector<64x32xf32>
    %c8 = arith.constant 8 : index
    %c0_60 = arith.constant 0 : index
    %c0_61 = arith.constant 0 : index
    %58 = vector.load %arg2[%c8, %c0_60, %c0_61] : memref<9x64x64xf32, #tpu.memory_space<vmem>>, vector<1x64x64xf32>
    %59 = vector.shape_cast %58 : vector<1x64x64xf32> to vector<64x64xf32>
    %cst_62 = arith.constant dense<0.000000e+00> : vector<64x4xf32>
    %60 = tpu.matmul %59, %2, %cst_62 {dimension_numbers = #tpu.dot_dimension_numbers<[1], [0], [0], [1], [0, 0, 1, 1], [], []>} : vector<64x64xf32>, vector<64x4xf32>, vector<64x4xf32> -> vector<64x4xf32>
    %c8_63 = arith.constant 8 : index
    %c0_64 = arith.constant 0 : index
    %c0_65 = arith.constant 0 : index
    %61 = vector.load %arg3[%c8_63, %c0_64, %c0_65] : memref<9x4x32xf32, #tpu.memory_space<vmem>>, vector<1x4x32xf32>
    %62 = vector.shape_cast %61 : vector<1x4x32xf32> to vector<4x32xf32>
    %cst_66 = arith.constant dense<0.000000e+00> : vector<64x32xf32>
    %63 = tpu.matmul %60, %62, %cst_66 {dimension_numbers = #tpu.dot_dimension_numbers<[1], [0], [0], [1], [0, 0, 1, 1], [], []>} : vector<64x4xf32>, vector<4x32xf32>, vector<64x32xf32> -> vector<64x32xf32>
    %64 = arith.addf %57, %63 : vector<64x32xf32>
    %c0_67 = arith.constant 0 : index
    %c0_68 = arith.constant 0 : index
    %65 = vector.load %arg4[%c0_67, %c0_68] : memref<1x32xf32, #tpu.memory_space<vmem>>, vector<1x32xf32>
    %66 = vector.broadcast %65 : vector<1x32xf32> to vector<64x32xf32>
    %67 = arith.mulf %64, %66 : vector<64x32xf32>
    %c0_69 = arith.constant 0 : index
    %c0_70 = arith.constant 0 : index
    %68 = vector.load %arg5[%c0_69, %c0_70] : memref<1x32xf32, #tpu.memory_space<vmem>>, vector<1x32xf32>
    %69 = vector.broadcast %68 : vector<1x32xf32> to vector<64x32xf32>
    %70 = arith.addf %67, %69 : vector<64x32xf32>
    %cst_71 = arith.constant 0.000000e+00 : f32
    %71 = vector.broadcast %cst_71 : f32 to vector<64x32xf32>
    %72 = arith.maximumf %70, %71 : vector<64x32xf32>
    %c0_72 = arith.constant 0 : index
    %c0_73 = arith.constant 0 : index
    %c0_74 = arith.constant 0 : index
    %73 = vector.load %arg2[%c0_72, %c0_73, %c0_74] : memref<9x64x64xf32, #tpu.memory_space<vmem>>, vector<1x64x64xf32>
    %74 = vector.shape_cast %73 : vector<1x64x64xf32> to vector<64x64xf32>
    %cst_75 = arith.constant dense<0.000000e+00> : vector<64x32xf32>
    %75 = tpu.matmul %74, %72, %cst_75 {dimension_numbers = #tpu.dot_dimension_numbers<[1], [0], [0], [1], [0, 0, 1, 1], [], []>} : vector<64x64xf32>, vector<64x32xf32>, vector<64x32xf32> -> vector<64x32xf32>
    %c0_76 = arith.constant 0 : index
    %c0_77 = arith.constant 0 : index
    %c0_78 = arith.constant 0 : index
    %76 = vector.load %arg6[%c0_76, %c0_77, %c0_78] : memref<9x32x32xf32, #tpu.memory_space<vmem>>, vector<1x32x32xf32>
    %77 = vector.shape_cast %76 : vector<1x32x32xf32> to vector<32x32xf32>
    %cst_79 = arith.constant dense<0.000000e+00> : vector<64x32xf32>
    %78 = tpu.matmul %75, %77, %cst_79 {dimension_numbers = #tpu.dot_dimension_numbers<[1], [0], [0], [1], [0, 0, 1, 1], [], []>} : vector<64x32xf32>, vector<32x32xf32>, vector<64x32xf32> -> vector<64x32xf32>
    %c1_80 = arith.constant 1 : index
    %c0_81 = arith.constant 0 : index
    %c0_82 = arith.constant 0 : index
    %79 = vector.load %arg2[%c1_80, %c0_81, %c0_82] : memref<9x64x64xf32, #tpu.memory_space<vmem>>, vector<1x64x64xf32>
    %80 = vector.shape_cast %79 : vector<1x64x64xf32> to vector<64x64xf32>
    %cst_83 = arith.constant dense<0.000000e+00> : vector<64x32xf32>
    %81 = tpu.matmul %80, %72, %cst_83 {dimension_numbers = #tpu.dot_dimension_numbers<[1], [0], [0], [1], [0, 0, 1, 1], [], []>} : vector<64x64xf32>, vector<64x32xf32>, vector<64x32xf32> -> vector<64x32xf32>
    %c1_84 = arith.constant 1 : index
    %c0_85 = arith.constant 0 : index
    %c0_86 = arith.constant 0 : index
    %82 = vector.load %arg6[%c1_84, %c0_85, %c0_86] : memref<9x32x32xf32, #tpu.memory_space<vmem>>, vector<1x32x32xf32>
    %83 = vector.shape_cast %82 : vector<1x32x32xf32> to vector<32x32xf32>
    %cst_87 = arith.constant dense<0.000000e+00> : vector<64x32xf32>
    %84 = tpu.matmul %81, %83, %cst_87 {dimension_numbers = #tpu.dot_dimension_numbers<[1], [0], [0], [1], [0, 0, 1, 1], [], []>} : vector<64x32xf32>, vector<32x32xf32>, vector<64x32xf32> -> vector<64x32xf32>
    %85 = arith.addf %78, %84 : vector<64x32xf32>
    %c2_88 = arith.constant 2 : index
    %c0_89 = arith.constant 0 : index
    %c0_90 = arith.constant 0 : index
    %86 = vector.load %arg2[%c2_88, %c0_89, %c0_90] : memref<9x64x64xf32, #tpu.memory_space<vmem>>, vector<1x64x64xf32>
    %87 = vector.shape_cast %86 : vector<1x64x64xf32> to vector<64x64xf32>
    %cst_91 = arith.constant dense<0.000000e+00> : vector<64x32xf32>
    %88 = tpu.matmul %87, %72, %cst_91 {dimension_numbers = #tpu.dot_dimension_numbers<[1], [0], [0], [1], [0, 0, 1, 1], [], []>} : vector<64x64xf32>, vector<64x32xf32>, vector<64x32xf32> -> vector<64x32xf32>
    %c2_92 = arith.constant 2 : index
    %c0_93 = arith.constant 0 : index
    %c0_94 = arith.constant 0 : index
    %89 = vector.load %arg6[%c2_92, %c0_93, %c0_94] : memref<9x32x32xf32, #tpu.memory_space<vmem>>, vector<1x32x32xf32>
    %90 = vector.shape_cast %89 : vector<1x32x32xf32> to vector<32x32xf32>
    %cst_95 = arith.constant dense<0.000000e+00> : vector<64x32xf32>
    %91 = tpu.matmul %88, %90, %cst_95 {dimension_numbers = #tpu.dot_dimension_numbers<[1], [0], [0], [1], [0, 0, 1, 1], [], []>} : vector<64x32xf32>, vector<32x32xf32>, vector<64x32xf32> -> vector<64x32xf32>
    %92 = arith.addf %85, %91 : vector<64x32xf32>
    %c3_96 = arith.constant 3 : index
    %c0_97 = arith.constant 0 : index
    %c0_98 = arith.constant 0 : index
    %93 = vector.load %arg2[%c3_96, %c0_97, %c0_98] : memref<9x64x64xf32, #tpu.memory_space<vmem>>, vector<1x64x64xf32>
    %94 = vector.shape_cast %93 : vector<1x64x64xf32> to vector<64x64xf32>
    %cst_99 = arith.constant dense<0.000000e+00> : vector<64x32xf32>
    %95 = tpu.matmul %94, %72, %cst_99 {dimension_numbers = #tpu.dot_dimension_numbers<[1], [0], [0], [1], [0, 0, 1, 1], [], []>} : vector<64x64xf32>, vector<64x32xf32>, vector<64x32xf32> -> vector<64x32xf32>
    %c3_100 = arith.constant 3 : index
    %c0_101 = arith.constant 0 : index
    %c0_102 = arith.constant 0 : index
    %96 = vector.load %arg6[%c3_100, %c0_101, %c0_102] : memref<9x32x32xf32, #tpu.memory_space<vmem>>, vector<1x32x32xf32>
    %97 = vector.shape_cast %96 : vector<1x32x32xf32> to vector<32x32xf32>
    %cst_103 = arith.constant dense<0.000000e+00> : vector<64x32xf32>
    %98 = tpu.matmul %95, %97, %cst_103 {dimension_numbers = #tpu.dot_dimension_numbers<[1], [0], [0], [1], [0, 0, 1, 1], [], []>} : vector<64x32xf32>, vector<32x32xf32>, vector<64x32xf32> -> vector<64x32xf32>
    %99 = arith.addf %92, %98 : vector<64x32xf32>
    %c4_104 = arith.constant 4 : index
    %c0_105 = arith.constant 0 : index
    %c0_106 = arith.constant 0 : index
    %100 = vector.load %arg2[%c4_104, %c0_105, %c0_106] : memref<9x64x64xf32, #tpu.memory_space<vmem>>, vector<1x64x64xf32>
    %101 = vector.shape_cast %100 : vector<1x64x64xf32> to vector<64x64xf32>
    %cst_107 = arith.constant dense<0.000000e+00> : vector<64x32xf32>
    %102 = tpu.matmul %101, %72, %cst_107 {dimension_numbers = #tpu.dot_dimension_numbers<[1], [0], [0], [1], [0, 0, 1, 1], [], []>} : vector<64x64xf32>, vector<64x32xf32>, vector<64x32xf32> -> vector<64x32xf32>
    %c4_108 = arith.constant 4 : index
    %c0_109 = arith.constant 0 : index
    %c0_110 = arith.constant 0 : index
    %103 = vector.load %arg6[%c4_108, %c0_109, %c0_110] : memref<9x32x32xf32, #tpu.memory_space<vmem>>, vector<1x32x32xf32>
    %104 = vector.shape_cast %103 : vector<1x32x32xf32> to vector<32x32xf32>
    %cst_111 = arith.constant dense<0.000000e+00> : vector<64x32xf32>
    %105 = tpu.matmul %102, %104, %cst_111 {dimension_numbers = #tpu.dot_dimension_numbers<[1], [0], [0], [1], [0, 0, 1, 1], [], []>} : vector<64x32xf32>, vector<32x32xf32>, vector<64x32xf32> -> vector<64x32xf32>
    %106 = arith.addf %99, %105 : vector<64x32xf32>
    %c5_112 = arith.constant 5 : index
    %c0_113 = arith.constant 0 : index
    %c0_114 = arith.constant 0 : index
    %107 = vector.load %arg2[%c5_112, %c0_113, %c0_114] : memref<9x64x64xf32, #tpu.memory_space<vmem>>, vector<1x64x64xf32>
    %108 = vector.shape_cast %107 : vector<1x64x64xf32> to vector<64x64xf32>
    %cst_115 = arith.constant dense<0.000000e+00> : vector<64x32xf32>
    %109 = tpu.matmul %108, %72, %cst_115 {dimension_numbers = #tpu.dot_dimension_numbers<[1], [0], [0], [1], [0, 0, 1, 1], [], []>} : vector<64x64xf32>, vector<64x32xf32>, vector<64x32xf32> -> vector<64x32xf32>
    %c5_116 = arith.constant 5 : index
    %c0_117 = arith.constant 0 : index
    %c0_118 = arith.constant 0 : index
    %110 = vector.load %arg6[%c5_116, %c0_117, %c0_118] : memref<9x32x32xf32, #tpu.memory_space<vmem>>, vector<1x32x32xf32>
    %111 = vector.shape_cast %110 : vector<1x32x32xf32> to vector<32x32xf32>
    %cst_119 = arith.constant dense<0.000000e+00> : vector<64x32xf32>
    %112 = tpu.matmul %109, %111, %cst_119 {dimension_numbers = #tpu.dot_dimension_numbers<[1], [0], [0], [1], [0, 0, 1, 1], [], []>} : vector<64x32xf32>, vector<32x32xf32>, vector<64x32xf32> -> vector<64x32xf32>
    %113 = arith.addf %106, %112 : vector<64x32xf32>
    %c6_120 = arith.constant 6 : index
    %c0_121 = arith.constant 0 : index
    %c0_122 = arith.constant 0 : index
    %114 = vector.load %arg2[%c6_120, %c0_121, %c0_122] : memref<9x64x64xf32, #tpu.memory_space<vmem>>, vector<1x64x64xf32>
    %115 = vector.shape_cast %114 : vector<1x64x64xf32> to vector<64x64xf32>
    %cst_123 = arith.constant dense<0.000000e+00> : vector<64x32xf32>
    %116 = tpu.matmul %115, %72, %cst_123 {dimension_numbers = #tpu.dot_dimension_numbers<[1], [0], [0], [1], [0, 0, 1, 1], [], []>} : vector<64x64xf32>, vector<64x32xf32>, vector<64x32xf32> -> vector<64x32xf32>
    %c6_124 = arith.constant 6 : index
    %c0_125 = arith.constant 0 : index
    %c0_126 = arith.constant 0 : index
    %117 = vector.load %arg6[%c6_124, %c0_125, %c0_126] : memref<9x32x32xf32, #tpu.memory_space<vmem>>, vector<1x32x32xf32>
    %118 = vector.shape_cast %117 : vector<1x32x32xf32> to vector<32x32xf32>
    %cst_127 = arith.constant dense<0.000000e+00> : vector<64x32xf32>
    %119 = tpu.matmul %116, %118, %cst_127 {dimension_numbers = #tpu.dot_dimension_numbers<[1], [0], [0], [1], [0, 0, 1, 1], [], []>} : vector<64x32xf32>, vector<32x32xf32>, vector<64x32xf32> -> vector<64x32xf32>
    %120 = arith.addf %113, %119 : vector<64x32xf32>
    %c7_128 = arith.constant 7 : index
    %c0_129 = arith.constant 0 : index
    %c0_130 = arith.constant 0 : index
    %121 = vector.load %arg2[%c7_128, %c0_129, %c0_130] : memref<9x64x64xf32, #tpu.memory_space<vmem>>, vector<1x64x64xf32>
    %122 = vector.shape_cast %121 : vector<1x64x64xf32> to vector<64x64xf32>
    %cst_131 = arith.constant dense<0.000000e+00> : vector<64x32xf32>
    %123 = tpu.matmul %122, %72, %cst_131 {dimension_numbers = #tpu.dot_dimension_numbers<[1], [0], [0], [1], [0, 0, 1, 1], [], []>} : vector<64x64xf32>, vector<64x32xf32>, vector<64x32xf32> -> vector<64x32xf32>
    %c7_132 = arith.constant 7 : index
    %c0_133 = arith.constant 0 : index
    %c0_134 = arith.constant 0 : index
    %124 = vector.load %arg6[%c7_132, %c0_133, %c0_134] : memref<9x32x32xf32, #tpu.memory_space<vmem>>, vector<1x32x32xf32>
    %125 = vector.shape_cast %124 : vector<1x32x32xf32> to vector<32x32xf32>
    %cst_135 = arith.constant dense<0.000000e+00> : vector<64x32xf32>
    %126 = tpu.matmul %123, %125, %cst_135 {dimension_numbers = #tpu.dot_dimension_numbers<[1], [0], [0], [1], [0, 0, 1, 1], [], []>} : vector<64x32xf32>, vector<32x32xf32>, vector<64x32xf32> -> vector<64x32xf32>
    %127 = arith.addf %120, %126 : vector<64x32xf32>
    %c8_136 = arith.constant 8 : index
    %c0_137 = arith.constant 0 : index
    %c0_138 = arith.constant 0 : index
    %128 = vector.load %arg2[%c8_136, %c0_137, %c0_138] : memref<9x64x64xf32, #tpu.memory_space<vmem>>, vector<1x64x64xf32>
    %129 = vector.shape_cast %128 : vector<1x64x64xf32> to vector<64x64xf32>
    %cst_139 = arith.constant dense<0.000000e+00> : vector<64x32xf32>
    %130 = tpu.matmul %129, %72, %cst_139 {dimension_numbers = #tpu.dot_dimension_numbers<[1], [0], [0], [1], [0, 0, 1, 1], [], []>} : vector<64x64xf32>, vector<64x32xf32>, vector<64x32xf32> -> vector<64x32xf32>
    %c8_140 = arith.constant 8 : index
    %c0_141 = arith.constant 0 : index
    %c0_142 = arith.constant 0 : index
    %131 = vector.load %arg6[%c8_140, %c0_141, %c0_142] : memref<9x32x32xf32, #tpu.memory_space<vmem>>, vector<1x32x32xf32>
    %132 = vector.shape_cast %131 : vector<1x32x32xf32> to vector<32x32xf32>
    %cst_143 = arith.constant dense<0.000000e+00> : vector<64x32xf32>
    %133 = tpu.matmul %130, %132, %cst_143 {dimension_numbers = #tpu.dot_dimension_numbers<[1], [0], [0], [1], [0, 0, 1, 1], [], []>} : vector<64x32xf32>, vector<32x32xf32>, vector<64x32xf32> -> vector<64x32xf32>
    %134 = arith.addf %127, %133 : vector<64x32xf32>
    %c0_144 = arith.constant 0 : index
    %c0_145 = arith.constant 0 : index
    %135 = vector.load %arg7[%c0_144, %c0_145] : memref<1x32xf32, #tpu.memory_space<vmem>>, vector<1x32xf32>
    %136 = vector.broadcast %135 : vector<1x32xf32> to vector<64x32xf32>
    %137 = arith.mulf %134, %136 : vector<64x32xf32>
    %c0_146 = arith.constant 0 : index
    %c0_147 = arith.constant 0 : index
    %138 = vector.load %arg8[%c0_146, %c0_147] : memref<1x32xf32, #tpu.memory_space<vmem>>, vector<1x32xf32>
    %139 = vector.broadcast %138 : vector<1x32xf32> to vector<64x32xf32>
    %140 = arith.addf %137, %139 : vector<64x32xf32>
    %cst_148 = arith.constant 0.000000e+00 : f32
    %141 = vector.broadcast %cst_148 : f32 to vector<64x32xf32>
    %142 = arith.maximumf %140, %141 : vector<64x32xf32>
    %cst_149 = arith.constant dense<0.000000e+00> : vector<32xf32>
    %143 = vector.multi_reduction <add>, %142, %cst_149 [0] : vector<64x32xf32> to vector<32xf32>
    %144 = vector.shape_cast %143 : vector<32xf32> to vector<1x32xf32>
    %cst_150 = arith.constant 6.400000e+01 : f32
    %145 = vector.broadcast %cst_150 : f32 to vector<1x32xf32>
    %146 = arith.divf %144, %145 : vector<1x32xf32>
    %cst_151 = arith.constant dense<0xFF800000> : vector<32xf32>
    %147 = vector.multi_reduction <maximumf>, %142, %cst_151 [0] : vector<64x32xf32> to vector<32xf32>
    %148 = vector.shape_cast %147 : vector<32xf32> to vector<1x32xf32>
    %c0_152 = arith.constant 0 : index
    %c0_153 = arith.constant 0 : index
    %149 = vector.load %arg9[%c0_152, %c0_153] : memref<2x32xf32, #tpu.memory_space<vmem>>, vector<2x32xf32>
    %150 = vector.broadcast %146 : vector<1x32xf32> to vector<2x32xf32>
    %151 = arith.mulf %150, %149 : vector<2x32xf32>
    %cst_154 = arith.constant dense<0.000000e+00> : vector<2xf32>
    %152 = vector.multi_reduction <add>, %151, %cst_154 [1] : vector<2x32xf32> to vector<2xf32>
    %153 = vector.shape_cast %152 : vector<2xf32> to vector<2x1xf32>
    %cst_155 = arith.constant 0.000000e+00 : f32
    %154 = vector.broadcast %cst_155 : f32 to vector<2x1xf32>
    %155 = arith.maximumf %153, %154 : vector<2x1xf32>
    %c0_156 = arith.constant 0 : index
    %c0_157 = arith.constant 0 : index
    %156 = vector.load %arg10[%c0_156, %c0_157] : memref<2x32xf32, #tpu.memory_space<vmem>>, vector<2x32xf32>
    %157 = vector.broadcast %155 : vector<2x1xf32> to vector<2x32xf32>
    %158 = arith.mulf %157, %156 : vector<2x32xf32>
    %cst_158 = arith.constant dense<0.000000e+00> : vector<32xf32>
    %159 = vector.multi_reduction <add>, %158, %cst_158 [0] : vector<2x32xf32> to vector<32xf32>
    %160 = vector.shape_cast %159 : vector<32xf32> to vector<1x32xf32>
    %c0_159 = arith.constant 0 : index
    %c0_160 = arith.constant 0 : index
    %161 = vector.load %arg9[%c0_159, %c0_160] : memref<2x32xf32, #tpu.memory_space<vmem>>, vector<2x32xf32>
    %162 = vector.broadcast %148 : vector<1x32xf32> to vector<2x32xf32>
    %163 = arith.mulf %162, %161 : vector<2x32xf32>
    %cst_161 = arith.constant dense<0.000000e+00> : vector<2xf32>
    %164 = vector.multi_reduction <add>, %163, %cst_161 [1] : vector<2x32xf32> to vector<2xf32>
    %165 = vector.shape_cast %164 : vector<2xf32> to vector<2x1xf32>
    %cst_162 = arith.constant 0.000000e+00 : f32
    %166 = vector.broadcast %cst_162 : f32 to vector<2x1xf32>
    %167 = arith.maximumf %165, %166 : vector<2x1xf32>
    %c0_163 = arith.constant 0 : index
    %c0_164 = arith.constant 0 : index
    %168 = vector.load %arg10[%c0_163, %c0_164] : memref<2x32xf32, #tpu.memory_space<vmem>>, vector<2x32xf32>
    %169 = vector.broadcast %167 : vector<2x1xf32> to vector<2x32xf32>
    %170 = arith.mulf %169, %168 : vector<2x32xf32>
    %cst_165 = arith.constant dense<0.000000e+00> : vector<32xf32>
    %171 = vector.multi_reduction <add>, %170, %cst_165 [0] : vector<2x32xf32> to vector<32xf32>
    %172 = vector.shape_cast %171 : vector<32xf32> to vector<1x32xf32>
    %173 = arith.addf %160, %172 : vector<1x32xf32>
    %cst_166 = arith.constant 0.000000e+00 : f32
    %174 = vector.broadcast %cst_166 : f32 to vector<1x32xf32>
    %175 = arith.subf %174, %173 : vector<1x32xf32>
    %176 = math.exp %175 : vector<1x32xf32>
    %cst_167 = arith.constant 1.000000e+00 : f32
    %177 = vector.broadcast %cst_167 : f32 to vector<1x32xf32>
    %178 = arith.addf %177, %176 : vector<1x32xf32>
    %cst_168 = arith.constant 1.000000e+00 : f32
    %179 = vector.broadcast %cst_168 : f32 to vector<1x32xf32>
    %180 = arith.divf %179, %178 : vector<1x32xf32>
    %181 = vector.broadcast %180 : vector<1x32xf32> to vector<64x32xf32>
    %182 = arith.mulf %142, %181 : vector<64x32xf32>
    %cst_169 = arith.constant 0.000000e+00 : f32
    %183 = vector.broadcast %cst_169 : f32 to vector<64x32xf32>
    %cst_170 = arith.constant dense<0xFF800000> : vector<64xf32>
    %184 = vector.multi_reduction <maximumf>, %182, %cst_170 [1] : vector<64x32xf32> to vector<64xf32>
    %185 = vector.shape_cast %184 : vector<64xf32> to vector<64x1xf32>
    %186 = vector.broadcast %185 : vector<64x1xf32> to vector<64x32xf32>
    %187 = arith.addf %183, %186 : vector<64x32xf32>
    %c0_171 = arith.constant 0 : index
    %c0_172 = arith.constant 0 : index
    %188 = vector.load %arg11[%c0_171, %c0_172] : memref<64x64xf32, #tpu.memory_space<vmem>>, vector<64x64xf32>
    %cst_173 = arith.constant dense<0.000000e+00> : vector<64x32xf32>
    %189 = tpu.matmul %188, %182, %cst_173 {dimension_numbers = #tpu.dot_dimension_numbers<[1], [0], [0], [1], [0, 0, 1, 1], [], []>} : vector<64x64xf32>, vector<64x32xf32>, vector<64x32xf32> -> vector<64x32xf32>
    %c0_174 = arith.constant 0 : index
    %c0_175 = arith.constant 0 : index
    %190 = vector.load %arg12[%c0_174, %c0_175] : memref<64x64xf32, #tpu.memory_space<vmem>>, vector<64x64xf32>
    %cst_176 = arith.constant dense<0.000000e+00> : vector<64x32xf32>
    %191 = tpu.matmul %190, %187, %cst_176 {dimension_numbers = #tpu.dot_dimension_numbers<[1], [0], [0], [1], [0, 0, 1, 1], [], []>} : vector<64x64xf32>, vector<64x32xf32>, vector<64x32xf32> -> vector<64x32xf32>
    %cst_177 = arith.constant dense<0.000000e+00> : vector<64xf32>
    %192 = vector.multi_reduction <add>, %189, %cst_177 [1] : vector<64x32xf32> to vector<64xf32>
    %193 = vector.shape_cast %192 : vector<64xf32> to vector<64x1xf32>
    %cst_178 = arith.constant 3.200000e+01 : f32
    %194 = vector.broadcast %cst_178 : f32 to vector<64x1xf32>
    %195 = arith.divf %193, %194 : vector<64x1xf32>
    %cst_179 = arith.constant dense<0.000000e+00> : vector<64xf32>
    %196 = vector.multi_reduction <add>, %191, %cst_179 [1] : vector<64x32xf32> to vector<64xf32>
    %197 = vector.shape_cast %196 : vector<64xf32> to vector<64x1xf32>
    %cst_180 = arith.constant 3.200000e+01 : f32
    %198 = vector.broadcast %cst_180 : f32 to vector<64x1xf32>
    %199 = arith.divf %197, %198 : vector<64x1xf32>
    %200 = arith.addf %195, %199 : vector<64x1xf32>
    %cst_181 = arith.constant 0.000000e+00 : f32
    %201 = vector.broadcast %cst_181 : f32 to vector<64x1xf32>
    %202 = arith.subf %201, %200 : vector<64x1xf32>
    %203 = math.exp %202 : vector<64x1xf32>
    %cst_182 = arith.constant 1.000000e+00 : f32
    %204 = vector.broadcast %cst_182 : f32 to vector<64x1xf32>
    %205 = arith.addf %204, %203 : vector<64x1xf32>
    %cst_183 = arith.constant 1.000000e+00 : f32
    %206 = vector.broadcast %cst_183 : f32 to vector<64x1xf32>
    %207 = arith.divf %206, %205 : vector<64x1xf32>
    %208 = vector.broadcast %207 : vector<64x1xf32> to vector<64x32xf32>
    %209 = arith.mulf %182, %208 : vector<64x32xf32>
    %c0_184 = arith.constant 0 : index
    %c0_185 = arith.constant 0 : index
    %c0_186 = arith.constant 0 : index
    %210 = vector.load %arg13[%c0_184, %c0_185, %c0_186] : memref<1x64x32xf32, #tpu.memory_space<vmem>>, vector<1x64x32xf32>
    %211 = vector.shape_cast %210 : vector<1x64x32xf32> to vector<64x32xf32>
    %212 = vector.shape_cast %209 : vector<64x32xf32> to vector<1x64x32xf32>
    tpu.vector_store %arg13[%c0_184, %c0_185, %c0_186], %212 {strides = array<i32>} : memref<1x64x32xf32, #tpu.memory_space<vmem>>, vector<1x64x32xf32>,
    return
  }
  func.func @transform_0(%arg0: i32) -> (i32, i32, i32, i32) {
    %c0_i32 = arith.constant 0 : i32
    %c0_i32_0 = arith.constant 0 : i32
    %c0_i32_1 = arith.constant 0 : i32
    %c0_i32_2 = arith.constant 0 : i32
    return %arg0, %c0_i32, %c0_i32_0, %c0_i32_1 : i32, i32, i32, i32
  }
  func.func @transform_1(%arg0: i32) -> (i32, i32, i32) {
    %c0_i32 = arith.constant 0 : i32
    %c0_i32_0 = arith.constant 0 : i32
    %c0_i32_1 = arith.constant 0 : i32
    %c0_i32_2 = arith.constant 0 : i32
    return %c0_i32, %c0_i32_0, %c0_i32_1 : i32, i32, i32
  }
  func.func @transform_2(%arg0: i32) -> (i32, i32, i32) {
    %c0_i32 = arith.constant 0 : i32
    %c0_i32_0 = arith.constant 0 : i32
    %c0_i32_1 = arith.constant 0 : i32
    %c0_i32_2 = arith.constant 0 : i32
    return %c0_i32, %c0_i32_0, %c0_i32_1 : i32, i32, i32
  }
  func.func @transform_3(%arg0: i32) -> (i32, i32) {
    %c0_i32 = arith.constant 0 : i32
    %c0_i32_0 = arith.constant 0 : i32
    %c0_i32_1 = arith.constant 0 : i32
    return %c0_i32, %c0_i32_0 : i32, i32
  }
  func.func @transform_4(%arg0: i32) -> (i32, i32) {
    %c0_i32 = arith.constant 0 : i32
    %c0_i32_0 = arith.constant 0 : i32
    %c0_i32_1 = arith.constant 0 : i32
    return %c0_i32, %c0_i32_0 : i32, i32
  }
  func.func @transform_5(%arg0: i32) -> (i32, i32, i32) {
    %c0_i32 = arith.constant 0 : i32
    %c0_i32_0 = arith.constant 0 : i32
    %c0_i32_1 = arith.constant 0 : i32
    %c0_i32_2 = arith.constant 0 : i32
    return %c0_i32, %c0_i32_0, %c0_i32_1 : i32, i32, i32
  }
  func.func @transform_6(%arg0: i32) -> (i32, i32) {
    %c0_i32 = arith.constant 0 : i32
    %c0_i32_0 = arith.constant 0 : i32
    %c0_i32_1 = arith.constant 0 : i32
    return %c0_i32, %c0_i32_0 : i32, i32
  }
  func.func @transform_7(%arg0: i32) -> (i32, i32) {
    %c0_i32 = arith.constant 0 : i32
    %c0_i32_0 = arith.constant 0 : i32
    %c0_i32_1 = arith.constant 0 : i32
    return %c0_i32, %c0_i32_0 : i32, i32
  }
  func.func @transform_8(%arg0: i32) -> (i32, i32) {
    %c0_i32 = arith.constant 0 : i32
    %c0_i32_0 = arith.constant 0 : i32
    %c0_i32_1 = arith.constant 0 : i32
    return %c0_i32, %c0_i32_0 : i32, i32
  }
  func.func @transform_9(%arg0: i32) -> (i32, i32) {
    %c0_i32 = arith.constant 0 : i32
    %c0_i32_0 = arith.constant 0 : i32
    %c0_i32_1 = arith.constant 0 : i32
    return %c0_i32, %c0_i32_0 : i32, i32
  }
  func.func @transform_10(%arg0: i32) -> (i32, i32) {
    %c0_i32 = arith.constant 0 : i32
    %c0_i32_0 = arith.constant 0 : i32
    %c0_i32_1 = arith.constant 0 : i32
    return %c0_i32, %c0_i32_0 : i32, i32
  }
  func.func @transform_11(%arg0: i32) -> (i32, i32) {
    %c0_i32 = arith.constant 0 : i32
    %c0_i32_0 = arith.constant 0 : i32
    %c0_i32_1 = arith.constant 0 : i32
    return %c0_i32, %c0_i32_0 : i32, i32
  }
  func.func @transform_12(%arg0: i32) -> (i32, i32, i32) {
    %c0_i32 = arith.constant 0 : i32
    %c0_i32_0 = arith.constant 0 : i32
    %c0_i32_1 = arith.constant 0 : i32
    return %arg0, %c0_i32, %c0_i32_0 : i32, i32, i32
  }
}

</mosaic_0001>

<llo_original>
// kernel: squeeze.7
$region0: #{squeeze.7}
  %s0 = inlined_call_operand.vmem [shape: f32[7,7], index: 0, kind: input, shape index: {}]
  %s1 = inlined_call_operand.vmem [shape: f32[49], index: 1, kind: output, shape index: {}]
  $region1: #{squeeze.7} parent=0
    #allocation0 [shape = 'u8[4096]{0}', space=vmem, size = 0x1000, scoped, tag = 'scoped mem for output reshape']
    %v2 = vld [vmem:[%s0] sm:$0x1]
    %vm3 = vcmask 56320
    %4 = vst.msk [vmem:[#allocation0] sm:$0x1] %vm3, %v2
    %s5 = scalar_lea.vmem %s0, 6
    %v6 = vld [vmem:[%s5] sm:$0x1]
    %7 = vrot.lane.b32.xlu0 %v6, 42
    %v8 = vpop.permute.xlu0 %7
    %vm9 = vcmask 400720
    %10 = vst.msk [vmem:[#allocation0] sm:$0x1] %vm9, %v8
    %s11 = scalar_lea.vmem %s0, 5
    %v12 = vld [vmem:[%s11] sm:$0x1]
    %13 = vrot.lane.b32.xlu0 %v12, 35
    %v14 = vpop.permute.xlu0 %13
    %vm15 = vcmask 343320
    %16 = vst.msk [vmem:[#allocation0] sm:$0x1] %vm15, %v14
    %s17 = scalar_lea.vmem %s0, 4
    %v18 = vld [vmem:[%s17] sm:$0x1]
    %19 = vrot.lane.b32.xlu0 %v18, 28
    %v20 = vpop.permute.xlu0 %19
    %vm21 = vcmask 285920
    %22 = vst.msk [vmem:[#allocation0] sm:$0x1] %vm21, %v20
    %s23 = scalar_lea.vmem %s0, 3
    %v24 = vld [vmem:[%s23] sm:$0x1]
    %25 = vrot.lane.b32.xlu0 %v24, 21
    %v26 = vpop.permute.xlu0 %25
    %vm27 = vcmask 228520
    %28 = vst.msk [vmem:[#allocation0] sm:$0x1] %vm27, %v26
    %s29 = scalar_lea.vmem %s0, 2
    %v30 = vld [vmem:[%s29] sm:$0x1]
    %31 = vrot.lane.b32.xlu0 %v30, 14
    %v32 = vpop.permute.xlu0 %31
    %vm33 = vcmask 171120
    %34 = vst.msk [vmem:[#allocation0] sm:$0x1] %vm33, %v32
    %s35 = scalar_lea.vmem %s0, 1
    %v36 = vld [vmem:[%s35] sm:$0x1]
    %37 = vrot.lane.b32.xlu0 %v36, 7
    %v38 = vpop.permute.xlu0 %37
    %vm39 = vcmask 113720
    %40 = vst.msk [vmem:[#allocation0] sm:$0x1] %vm39, %v38
    %s42 = sshllo.u32 0, 1
    %v44 = vld [vmem:[#allocation0] sm:%s42]
    %s45 = sshllo.u32 0, 1
    %46 = vst [vmem:[%s1] sm:%s45] %v44

// kernel: down_forward.1
$region0: #{down_forward.1}
  #allocation0 [shape = 'u32[]', space=smem, size = 0x4, offset = 0x4, fixed_abs, tag = 'smem constant byte address 0x4 - core index']
  #allocation1 [shape = 'u32[144,128]{1,0:T(1,128)}', space=vmem, size = 0x12000, scoped, tag = 'internal scratch']
  %s0 = inlined_call_operand.vmem [shape: f32[2,4,64,4], index: 0, kind: input, shape index: {}]
  %s1 = inlined_call_operand.vmem [shape: f32[9,64,64], index: 1, kind: input, shape index: {}]
  %s2 = inlined_call_operand.vmem [shape: f32[9,4,32], index: 2, kind: input, shape index: {}]
  %s3 = inlined_call_operand.vmem [shape: f32[1,32], index: 3, kind: input, shape index: {}]
  %s4 = inlined_call_operand.vmem [shape: f32[1,32], index: 4, kind: input, shape index: {}]
  %s5 = inlined_call_operand.vmem [shape: f32[9,32,32], index: 5, kind: input, shape index: {}]
  %s6 = inlined_call_operand.vmem [shape: f32[1,32], index: 6, kind: input, shape index: {}]
  %s7 = inlined_call_operand.vmem [shape: f32[1,32], index: 7, kind: input, shape index: {}]
  %s8 = inlined_call_operand.vmem [shape: f32[2,32], index: 8, kind: input, shape index: {}]
  %s9 = inlined_call_operand.vmem [shape: f32[2,32], index: 9, kind: input, shape index: {}]
  %s10 = inlined_call_operand.vmem [shape: f32[64,64], index: 10, kind: input, shape index: {}]
  %s11 = inlined_call_operand.vmem [shape: f32[64,64], index: 11, kind: input, shape index: {}]
  %s12 = inlined_call_operand.hbm [shape: f32[2,64,32], index: 12, kind: output, shape index: {}]
  %s13 = sld [smem:[#allocation0]]
  $region81: #{down_forward.1} parent=0
    _
  %s15 = ssub.s32 1, %s13
  %s16 = scalar_select 0, %s15, %s13
  $region1: #{down_forward.1} parent=0
    #allocation2 [shape = 'u8[65536]{0}', space=vmem, size = 0x10000, scoped, tag = 'output window, operand 0']
    #allocation3 [shape = 's32[2]{0}', space=sflag, size = 0x8, scoped, tag = 'scoped memory for down_forward.1']
    %17 = vsyncpa [#allocation3], 0
    %s18 = scalar_lea.sflag [#allocation3], 1
    %19 = vsyncpa %s18, 0
    loop: start=0, step=1, limit=4
    $region2: #{down_forward.1} parent=1 // loop_pre_header
      _
    $region3: #{down_forward.1} parent=1 // loop_header
      %s21 = sphi 0, %s25
      %p22 = scmp.ge.s32.totalorder %s21, 4
      %s31 = sphi 0, %s33
      %s34 = sphi 0, %s31
      %s35 = sphi 0, %s34
      %s51 = sphi 0, %s35
      %s55 = sphi 0, %s55
      %s57 = sphi 0, %s55
      %s58 = sphi 0, %s57
      %s72 = sphi 0, %s58
      %s76 = sphi 0, %s76
      %s78 = sphi 0, %s76
      %s79 = sphi 0, %s78
      %s93 = sphi 0, %s79
      %s97 = sphi 0, %s97
      %s99 = sphi 0, %s97
      %s100 = sphi 0, %s99
      %s114 = sphi 0, %s100
      %s118 = sphi 0, %s118
      %s120 = sphi 0, %s118
      %s121 = sphi 0, %s120
      %s135 = sphi 0, %s121
      %s139 = sphi 0, %s139
      %s141 = sphi 0, %s139
      %s142 = sphi 0, %s141
      %s156 = sphi 0, %s142
      %s160 = sphi 0, %s160
      %s162 = sphi 0, %s160
      %s163 = sphi 0, %s162
      %s177 = sphi 0, %s163
      %s181 = sphi 0, %s181
      %s183 = sphi 0, %s181
      %s184 = sphi 0, %s183
      %s198 = sphi 0, %s184
      %s202 = sphi 0, %s202
      %s204 = sphi 0, %s202
      %s205 = sphi 0, %s204
      %s219 = sphi 0, %s205
      %s223 = sphi 0, %s223
      %s225 = sphi 0, %s223
      %s226 = sphi 0, %s225
      %s240 = sphi 0, %s226
      %s244 = sphi 0, %s244
      %s246 = sphi 0, %s244
      %s247 = sphi 0, %s246
      %s261 = sphi 0, %s247
      %s265 = sphi 0, %s265
      %s267 = sphi 0, %s265
      %s268 = sphi 0, %s267
      %s282 = sphi 0, %s268
      %s288 = sphi 0, %s290
      %s291 = sphi 0, %s288
      %s292 = sphi 0, %s291
      %s308 = sphi 0, %s292
    $region4: #{down_forward.1} parent=1 // loop_header_branch
      %24 = sbr.rel (%p22) target = $region8
    $region5: #{down_forward.1} parent=1 // loop_body
      %s26 = ssub.s32 %s21, 1
      %s27 = ssub.s32 %s21, 2
      %s28 = sadd.s32 %s21, 1
      %s29 = ssub.s32 %s21, %s28
      %p30 = scmp.eq.s32.totalorder %s29, 0
      %s32 = sadd.s32 %s31, 1
      %s33 = scalar_select %p30, %s31, %s32
      %p36 = pneg %p30
      %p37 = scmp.eq.s32.totalorder %s21, 1
      %p38 = por %p36, %p37
      %p39 = scmp.ne.s32.totalorder %s31, %s34
      %p40 = scmp.eq.s32.totalorder %s21, 0
      %p41 = por %p39, %p40
      %p42 = scmp.ne.s32.totalorder %s31, %s34
      %p43 = scmp.eq.s32.totalorder %s26, 1
      %p44 = por %p42, %p43
      %p45 = scmp.ne.s32.totalorder %s34, %s35
      %p46 = scmp.eq.s32.totalorder %s26, 0
      %p47 = por %p45, %p46
      %p48 = scmp.ne.s32.totalorder %s34, %s35
      %p49 = scmp.eq.s32.totalorder %s27, 1
      %p50 = por %p48, %p49
      %p52 = scmp.ne.s32.totalorder %s35, %s51
      %p53 = scmp.eq.s32.totalorder %s27, 0
      %p54 = por %p52, %p53
      %s56 = sadd.s32 %s55, 1
      %p59 = scmp.eq.s32.totalorder %s21, 1
      %p60 = scmp.ne.s32.totalorder %s55, %s57
      %p61 = scmp.eq.s32.totalorder %s21, 0
      %p62 = por %p60, %p61
      %p63 = scmp.ne.s32.totalorder %s55, %s57
      %p64 = scmp.eq.s32.totalorder %s26, 1
      %p65 = por %p63, %p64
      %p66 = scmp.ne.s32.totalorder %s57, %s58
      %p67 = scmp.eq.s32.totalorder %s26, 0
      %p68 = por %p66, %p67
      %p69 = scmp.ne.s32.totalorder %s57, %s58
      %p70 = scmp.eq.s32.totalorder %s27, 1
      %p71 = por %p69, %p70
      %p73 = scmp.ne.s32.totalorder %s58, %s72
      %p74 = scmp.eq.s32.totalorder %s27, 0
      %p75 = por %p73, %p74
      %s77 = sadd.s32 %s76, 1
      %p80 = scmp.eq.s32.totalorder %s21, 1
      %p81 = scmp.ne.s32.totalorder %s76, %s78
      %p82 = scmp.eq.s32.totalorder %s21, 0
      %p83 = por %p81, %p82
      %p84 = scmp.ne.s32.totalorder %s76, %s78
      %p85 = scmp.eq.s32.totalorder %s26, 1
      %p86 = por %p84, %p85
      %p87 = scmp.ne.s32.totalorder %s78, %s79
      %p88 = scmp.eq.s32.totalorder %s26, 0
      %p89 = por %p87, %p88
      %p90 = scmp.ne.s32.totalorder %s78, %s79
      %p91 = scmp.eq.s32.totalorder %s27, 1
      %p92 = por %p90, %p91
      %p94 = scmp.ne.s32.totalorder %s79, %s93
      %p95 = scmp.eq.s32.totalorder %s27, 0
      %p96 = por %p94, %p95
      %s98 = sadd.s32 %s97, 1
      %p101 = scmp.eq.s32.totalorder %s21, 1
      %p102 = scmp.ne.s32.totalorder %s97, %s99
      %p103 = scmp.eq.s32.totalorder %s21, 0
      %p104 = por %p102, %p103
      %p105 = scmp.ne.s32.totalorder %s97, %s99
      %p106 = scmp.eq.s32.totalorder %s26, 1
      %p107 = por %p105, %p106
      %p108 = scmp.ne.s32.totalorder %s99, %s100
      %p109 = scmp.eq.s32.totalorder %s26, 0
      %p110 = por %p108, %p109
      %p111 = scmp.ne.s32.totalorder %s99, %s100
      %p112 = scmp.eq.s32.totalorder %s27, 1
      %p113 = por %p111, %p112
      %p115 = scmp.ne.s32.totalorder %s100, %s114
      %p116 = scmp.eq.s32.totalorder %s27, 0
      %p117 = por %p115, %p116
      %s119 = sadd.s32 %s118, 1
      %p122 = scmp.eq.s32.totalorder %s21, 1
      %p123 = scmp.ne.s32.totalorder %s118, %s120
      %p124 = scmp.eq.s32.totalorder %s21, 0
      %p125 = por %p123, %p124
      %p126 = scmp.ne.s32.totalorder %s118, %s120
      %p127 = scmp.eq.s32.totalorder %s26, 1
      %p128 = por %p126, %p127
      %p129 = scmp.ne.s32.totalorder %s120, %s121
      %p130 = scmp.eq.s32.totalorder %s26, 0
      %p131 = por %p129, %p130
      %p132 = scmp.ne.s32.totalorder %s120, %s121
      %p133 = scmp.eq.s32.totalorder %s27, 1
      %p134 = por %p132, %p133
      %p136 = scmp.ne.s32.totalorder %s121, %s135
      %p137 = scmp.eq.s32.totalorder %s27, 0
      %p138 = por %p136, %p137
      %s140 = sadd.s32 %s139, 1
      %p143 = scmp.eq.s32.totalorder %s21, 1
      %p144 = scmp.ne.s32.totalorder %s139, %s141
      %p145 = scmp.eq.s32.totalorder %s21, 0
      %p146 = por %p144, %p145
      %p147 = scmp.ne.s32.totalorder %s139, %s141
      %p148 = scmp.eq.s32.totalorder %s26, 1
      %p149 = por %p147, %p148
      %p150 = scmp.ne.s32.totalorder %s141, %s142
      %p151 = scmp.eq.s32.totalorder %s26, 0
      %p152 = por %p150, %p151
      %p153 = scmp.ne.s32.totalorder %s141, %s142
      %p154 = scmp.eq.s32.totalorder %s27, 1
      %p155 = por %p153, %p154
      %p157 = scmp.ne.s32.totalorder %s142, %s156
      %p158 = scmp.eq.s32.totalorder %s27, 0
      %p159 = por %p157, %p158
      %s161 = sadd.s32 %s160, 1
      %p164 = scmp.eq.s32.totalorder %s21, 1
      %p165 = scmp.ne.s32.totalorder %s160, %s162
      %p166 = scmp.eq.s32.totalorder %s21, 0
      %p167 = por %p165, %p166
      %p168 = scmp.ne.s32.totalorder %s160, %s162
      %p169 = scmp.eq.s32.totalorder %s26, 1
      %p170 = por %p168, %p169
      %p171 = scmp.ne.s32.totalorder %s162, %s163
      %p172 = scmp.eq.s32.totalorder %s26, 0
      %p173 = por %p171, %p172
      %p174 = scmp.ne.s32.totalorder %s162, %s163
      %p175 = scmp.eq.s32.totalorder %s27, 1
      %p176 = por %p174, %p175
      %p178 = scmp.ne.s32.totalorder %s163, %s177
      %p179 = scmp.eq.s32.totalorder %s27, 0
      %p180 = por %p178, %p179
      %s182 = sadd.s32 %s181, 1
      %p185 = scmp.eq.s32.totalorder %s21, 1
      %p186 = scmp.ne.s32.totalorder %s181, %s183
      %p187 = scmp.eq.s32.totalorder %s21, 0
      %p188 = por %p186, %p187
      %p189 = scmp.ne.s32.totalorder %s181, %s183
      %p190 = scmp.eq.s32.totalorder %s26, 1
      %p191 = por %p189, %p190
      %p192 = scmp.ne.s32.totalorder %s183, %s184
      %p193 = scmp.eq.s32.totalorder %s26, 0
      %p194 = por %p192, %p193
      %p195 = scmp.ne.s32.totalorder %s183, %s184
      %p196 = scmp.eq.s32.totalorder %s27, 1
      %p197 = por %p195, %p196
      %p199 = scmp.ne.s32.totalorder %s184, %s198
      %p200 = scmp.eq.s32.totalorder %s27, 0
      %p201 = por %p199, %p200
      %s203 = sadd.s32 %s202, 1
      %p206 = scmp.eq.s32.totalorder %s21, 1
      %p207 = scmp.ne.s32.totalorder %s202, %s204
      %p208 = scmp.eq.s32.totalorder %s21, 0
      %p209 = por %p207, %p208
      %p210 = scmp.ne.s32.totalorder %s202, %s204
      %p211 = scmp.eq.s32.totalorder %s26, 1
      %p212 = por %p210, %p211
      %p213 = scmp.ne.s32.totalorder %s204, %s205
      %p214 = scmp.eq.s32.totalorder %s26, 0
      %p215 = por %p213, %p214
      %p216 = scmp.ne.s32.totalorder %s204, %s205
      %p217 = scmp.eq.s32.totalorder %s27, 1
      %p218 = por %p216, %p217
      %p220 = scmp.ne.s32.totalorder %s205, %s219
      %p221 = scmp.eq.s32.totalorder %s27, 0
      %p222 = por %p220, %p221
      %s224 = sadd.s32 %s223, 1
      %p227 = scmp.eq.s32.totalorder %s21, 1
      %p228 = scmp.ne.s32.totalorder %s223, %s225
      %p229 = scmp.eq.s32.totalorder %s21, 0
      %p230 = por %p228, %p229
      %p231 = scmp.ne.s32.totalorder %s223, %s225
      %p232 = scmp.eq.s32.totalorder %s26, 1
      %p233 = por %p231, %p232
      %p234 = scmp.ne.s32.totalorder %s225, %s226
      %p235 = scmp.eq.s32.totalorder %s26, 0
      %p236 = por %p234, %p235
      %p237 = scmp.ne.s32.totalorder %s225, %s226
      %p238 = scmp.eq.s32.totalorder %s27, 1
      %p239 = por %p237, %p238
      %p241 = scmp.ne.s32.totalorder %s226, %s240
      %p242 = scmp.eq.s32.totalorder %s27, 0
      %p243 = por %p241, %p242
      %s245 = sadd.s32 %s244, 1
      %p248 = scmp.eq.s32.totalorder %s21, 1
      %p249 = scmp.ne.s32.totalorder %s244, %s246
      %p250 = scmp.eq.s32.totalorder %s21, 0
      %p251 = por %p249, %p250
      %p252 = scmp.ne.s32.totalorder %s244, %s246
      %p253 = scmp.eq.s32.totalorder %s26, 1
      %p254 = por %p252, %p253
      %p255 = scmp.ne.s32.totalorder %s246, %s247
      %p256 = scmp.eq.s32.totalorder %s26, 0
      %p257 = por %p255, %p256
      %p258 = scmp.ne.s32.totalorder %s246, %s247
      %p259 = scmp.eq.s32.totalorder %s27, 1
      %p260 = por %p258, %p259
      %p262 = scmp.ne.s32.totalorder %s247, %s261
      %p263 = scmp.eq.s32.totalorder %s27, 0
      %p264 = por %p262, %p263
      %s266 = sadd.s32 %s265, 1
      %p269 = scmp.eq.s32.totalorder %s21, 1
      %p270 = scmp.ne.s32.totalorder %s265, %s267
      %p271 = scmp.eq.s32.totalorder %s21, 0
      %p272 = por %p270, %p271
      %p273 = scmp.ne.s32.totalorder %s265, %s267
      %p274 = scmp.eq.s32.totalorder %s26, 1
      %p275 = por %p273, %p274
      %p276 = scmp.ne.s32.totalorder %s267, %s268
      %p277 = scmp.eq.s32.totalorder %s26, 0
      %p278 = por %p276, %p277
      %p279 = scmp.ne.s32.totalorder %s267, %s268
      %p280 = scmp.eq.s32.totalorder %s27, 1
      %p281 = por %p279, %p280
      %p283 = scmp.ne.s32.totalorder %s268, %s282
      %p284 = scmp.eq.s32.totalorder %s27, 0
      %p285 = por %p283, %p284
      %s286 = ssub.s32 %s21, %s28
      %p287 = scmp.eq.s32.totalorder %s286, 0
      %s289 = sadd.s32 %s288, 1
      %s290 = scalar_select %p287, %s288, %s289
      %p293 = pneg %p287
      %p294 = scmp.eq.s32.totalorder %s21, 1
      %p295 = por %p293, %p294
      %p296 = scmp.ne.s32.totalorder %s288, %s291
      %p297 = scmp.eq.s32.totalorder %s21, 0
      %p298 = por %p296, %p297
      %p299 = scmp.ne.s32.totalorder %s288, %s291
      %p300 = scmp.eq.s32.totalorder %s26, 1
      %p301 = por %p299, %p300
      %p302 = scmp.ne.s32.totalorder %s291, %s292
      %p303 = scmp.eq.s32.totalorder %s26, 0
      %p304 = por %p302, %p303
      %p305 = scmp.ne.s32.totalorder %s291, %s292
      %p306 = scmp.eq.s32.totalorder %s27, 1
      %p307 = por %p305, %p306
      %p309 = scmp.ne.s32.totalorder %s292, %s308
      %p310 = scmp.eq.s32.totalorder %s27, 0
      %p311 = por %p309, %p310
      %p312 = scmp.le.s32.totalorder 1, %s21
      %p313 = scmp.lt.s32.totalorder %s21, 3
      %p314 = pnand %p312, %p313
      %p315 = pneg %p314
      // Predicated region
      $region9: #{down_forward.1} parent=5 // pred_check
        _
      $region10: #{down_forward.1} parent=5 // pred_check_branch
        %317 = sbr.rel (%p314) target = $region12
      $region11: #{down_forward.1} parent=5 // pred_region
        %s318 = ssub.s32 %s21, 1
        // Predicated region
        $region13: #{down_forward.1} parent=11 // pred_check
          %p319 = pneg %p68
        $region14: #{down_forward.1} parent=11 // pred_check_branch
          %321 = sbr.rel (%p319) target = $region16
        $region15: #{down_forward.1} parent=11 // pred_region
          _
        $region16: #{down_forward.1} parent=11 // pred_fallthru
          _
        // Predicated region
        $region17: #{down_forward.1} parent=11 // pred_check
          %p322 = pneg %p89
        $region18: #{down_forward.1} parent=11 // pred_check_branch
          %324 = sbr.rel (%p322) target = $region20
        $region19: #{down_forward.1} parent=11 // pred_region
          _
        $region20: #{down_forward.1} parent=11 // pred_fallthru
          _
        // Predicated region
        $region21: #{down_forward.1} parent=11 // pred_check
          %p325 = pneg %p110
        $region22: #{down_forward.1} parent=11 // pred_check_branch
          %327 = sbr.rel (%p325) target = $region24
        $region23: #{down_forward.1} parent=11 // pred_region
          _
        $region24: #{down_forward.1} parent=11 // pred_fallthru
          _
        // Predicated region
        $region25: #{down_forward.1} parent=11 // pred_check
          %p328 = pneg %p131
        $region26: #{down_forward.1} parent=11 // pred_check_branch
          %330 = sbr.rel (%p328) target = $region28
        $region27: #{down_forward.1} parent=11 // pred_region
          _
        $region28: #{down_forward.1} parent=11 // pred_fallthru
          _
        // Predicated region
        $region29: #{down_forward.1} parent=11 // pred_check
          %p331 = pneg %p152
        $region30: #{down_forward.1} parent=11 // pred_check_branch
          %333 = sbr.rel (%p331) target = $region32
        $region31: #{down_forward.1} parent=11 // pred_region
          _
        $region32: #{down_forward.1} parent=11 // pred_fallthru
          _
        // Predicated region
        $region33: #{down_forward.1} parent=11 // pred_check
          %p334 = pneg %p173
        $region34: #{down_forward.1} parent=11 // pred_check_branch
          %336 = sbr.rel (%p334) target = $region36
        $region35: #{down_forward.1} parent=11 // pred_region
          _
        $region36: #{down_forward.1} parent=11 // pred_fallthru
          _
        // Predicated region
        $region37: #{down_forward.1} parent=11 // pred_check
          %p337 = pneg %p194
        $region38: #{down_forward.1} parent=11 // pred_check_branch
          %339 = sbr.rel (%p337) target = $region40
        $region39: #{down_forward.1} parent=11 // pred_region
          _
        $region40: #{down_forward.1} parent=11 // pred_fallthru
          _
        // Predicated region
        $region41: #{down_forward.1} parent=11 // pred_check
          %p340 = pneg %p215
        $region42: #{down_forward.1} parent=11 // pred_check_branch
          %342 = sbr.rel (%p340) target = $region44
        $region43: #{down_forward.1} parent=11 // pred_region
          _
        $region44: #{down_forward.1} parent=11 // pred_fallthru
          _
        // Predicated region
        $region45: #{down_forward.1} parent=11 // pred_check
          %p343 = pneg %p236
        $region46: #{down_forward.1} parent=11 // pred_check_branch
          %345 = sbr.rel (%p343) target = $region48
        $region47: #{down_forward.1} parent=11 // pred_region
          _
        $region48: #{down_forward.1} parent=11 // pred_fallthru
          _
        // Predicated region
        $region49: #{down_forward.1} parent=11 // pred_check
          %p346 = pneg %p257
        $region50: #{down_forward.1} parent=11 // pred_check_branch
          %348 = sbr.rel (%p346) target = $region52
        $region51: #{down_forward.1} parent=11 // pred_region
          _
        $region52: #{down_forward.1} parent=11 // pred_fallthru
          _
        // Predicated region
        $region53: #{down_forward.1} parent=11 // pred_check
          %p349 = pneg %p278
        $region54: #{down_forward.1} parent=11 // pred_check_branch
          %351 = sbr.rel (%p349) target = $region56
        $region55: #{down_forward.1} parent=11 // pred_region
          _
        $region56: #{down_forward.1} parent=11 // pred_fallthru
          _
      $region12: #{down_forward.1} parent=5 // pred_fallthru
        _
      %p352 = scmp.lt.s32.totalorder %s21, 2
      // Predicated region
      $region57: #{down_forward.1} parent=5 // pred_check
        %p353 = pneg %p352
      $region58: #{down_forward.1} parent=5 // pred_check_branch
        %355 = sbr.rel (%p353) target = $region60
      $region59: #{down_forward.1} parent=5 // pred_region
        // Predicated region
        $region61: #{down_forward.1} parent=59 // pred_check
          %p356 = pneg %p41
        $region62: #{down_forward.1} parent=59 // pred_check_branch
          %358 = sbr.rel (%p356) target = $region64
        $region63: #{down_forward.1} parent=59 // pred_region
          %p359 = scmp.lt.s32.totalorder %s21, 1
          %s360 = scalar_select %p359, %s21, 1
          %s361 = smul.addr %s360, 32
          %s362 = smul.addr %s361, 8
          %s363 = scalar_lea.vmem %s0, %s362
        $region64: #{down_forward.1} parent=59 // pred_fallthru
          _
      $region60: #{down_forward.1} parent=5 // pred_fallthru
        _
      %p364 = scmp.le.s32.totalorder 1, %s21
      %p365 = scmp.lt.s32.totalorder %s21, 3
      %p366 = pnand %p364, %p365
      %p367 = pneg %p366
      // Predicated region
      $region65: #{down_forward.1} parent=5 // pred_check
        _
      $region66: #{down_forward.1} parent=5 // pred_check_branch
        %369 = sbr.rel (%p366) target = $region68
      $region67: #{down_forward.1} parent=5 // pred_region
        %s370 = ssub.s32 %s21, 1
        %p371 = scmp.lt.s32.totalorder %s26, 1
        %s372 = scalar_select %p371, %s26, 1
        %s373 = smul.addr %s372, 32
        %s374 = smul.addr %s373, 8
        %s375 = scalar_lea.vmem %s0, %s374
        %p376 = pneg %p47
        %p377 = pneg %p44
        %p378 = pneg %p68
        %p379 = pneg %p65
        %p380 = pneg %p89
        %p381 = pneg %p86
        %p382 = pneg %p110
        %p383 = pneg %p107
        %p384 = pneg %p131
        %p385 = pneg %p128
        %p386 = pneg %p152
        %p387 = pneg %p149
        %p388 = pneg %p173
        %p389 = pneg %p170
        %p390 = pneg %p194
        %p391 = pneg %p191
        %p392 = pneg %p215
        %p393 = pneg %p212
        %p394 = pneg %p236
        %p395 = pneg %p233
        %p396 = pneg %p257
        %p397 = pneg %p254
        %p398 = pneg %p278
        %p399 = pneg %p275
        %p400 = pneg %p304
        %p401 = pneg %p301
        %s402 = sand.u32 %s291, 1
        %s403 = scalar_lea.sflag [#allocation3], %s402
        %s404 = sand.u32 %s291, 1
        %s405 = smul.addr %s404, 64
        %s406 = scalar_lea.vmem [#allocation2], %s405
        %p407 = scmp.lt.s32.totalorder %s26, 1
        %s408 = scalar_select %p407, %s26, 1
        %s409 = smul.addr %s408, 32
        %s410 = smul.addr %s409, 8
        %s411 = scalar_lea.vmem %s0, %s410
        %v412 = vld [vmem:[%s411] sm:$0xff]
        %v413 = vld [vmem:[%s411 + $0x8] sm:$0xff]
        %v414 = vld [vmem:[%s411 + $0x10] sm:$0xff]
        %v415 = vld [vmem:[%s411 + $0x18] sm:$0xff]
        %v416 = vld [vmem:[%s411 + $0x20] sm:$0xff]
        %v417 = vld [vmem:[%s411 + $0x28] sm:$0xff]
        %v418 = vld [vmem:[%s411 + $0x30] sm:$0xff]
        %v419 = vld [vmem:[%s411 + $0x38] sm:$0xff]
        %v420 = vld [vmem:[%s411 + $0x40] sm:$0xff]
        %v421 = vld [vmem:[%s411 + $0x48] sm:$0xff]
        %v422 = vld [vmem:[%s411 + $0x50] sm:$0xff]
        %v423 = vld [vmem:[%s411 + $0x58] sm:$0xff]
        %v424 = vld [vmem:[%s411 + $0x60] sm:$0xff]
        %v425 = vld [vmem:[%s411 + $0x68] sm:$0xff]
        %v426 = vld [vmem:[%s411 + $0x70] sm:$0xff]
        %v427 = vld [vmem:[%s411 + $0x78] sm:$0xff]
        %v428 = vld [vmem:[%s411 + $0x80] sm:$0xff]
        %v429 = vld [vmem:[%s411 + $0x88] sm:$0xff]
        %v430 = vld [vmem:[%s411 + $0x90] sm:$0xff]
        %v431 = vld [vmem:[%s411 + $0x98] sm:$0xff]
        %v432 = vld [vmem:[%s411 + $0xa0] sm:$0xff]
        %v433 = vld [vmem:[%s411 + $0xa8] sm:$0xff]
        %v434 = vld [vmem:[%s411 + $0xb0] sm:$0xff]
        %v435 = vld [vmem:[%s411 + $0xb8] sm:$0xff]
        %v436 = vld [vmem:[%s411 + $0xc0] sm:$0xff]
        %v437 = vld [vmem:[%s411 + $0xc8] sm:$0xff]
        %v438 = vld [vmem:[%s411 + $0xd0] sm:$0xff]
        %v439 = vld [vmem:[%s411 + $0xd8] sm:$0xff]
        %v440 = vld [vmem:[%s411 + $0xe0] sm:$0xff]
        %v441 = vld [vmem:[%s411 + $0xe8] sm:$0xff]
        %v442 = vld [vmem:[%s411 + $0xf0] sm:$0xff]
        %v443 = vld [vmem:[%s411 + $0xf8] sm:$0xff]
        %vm444 = vcmask 31744
        %v445 = vsel %vm444, %v412, -inf
        %v446 = vsel %vm444, %v420, -inf
        %v447 = vmax.f32 %v445, %v446
        %v448 = vsel %vm444, %v428, -inf
        %v449 = vmax.f32 %v447, %v448
        %v450 = vsel %vm444, %v436, -inf
        %v451 = vmax.f32 %v449, %v450
        %v452 = vsel %vm444, %v413, -inf
        %v453 = vsel %vm444, %v421, -inf
        %v454 = vmax.f32 %v452, %v453
        %v455 = vsel %vm444, %v429, -inf
        %v456 = vmax.f32 %v454, %v455
        %v457 = vsel %vm444, %v437, -inf
        %v458 = vmax.f32 %v456, %v457
        %v459 = vsel %vm444, %v414, -inf
        %v460 = vsel %vm444, %v422, -inf
        %v461 = vmax.f32 %v459, %v460
        %v462 = vsel %vm444, %v430, -inf
        %v463 = vmax.f32 %v461, %v462
        %v464 = vsel %vm444, %v438, -inf
        %v465 = vmax.f32 %v463, %v464
        %v466 = vsel %vm444, %v415, -inf
        %v467 = vsel %vm444, %v423, -inf
        %v468 = vmax.f32 %v466, %v467
        %v469 = vsel %vm444, %v431, -inf
        %v470 = vmax.f32 %v468, %v469
        %v471 = vsel %vm444, %v439, -inf
        %v472 = vmax.f32 %v470, %v471
        %v473 = vsel %vm444, %v416, -inf
        %v474 = vsel %vm444, %v424, -inf
        %v475 = vmax.f32 %v473, %v474
        %v476 = vsel %vm444, %v432, -inf
        %v477 = vmax.f32 %v475, %v476
        %v478 = vsel %vm444, %v440, -inf
        %v479 = vmax.f32 %v477, %v478
        %v480 = vsel %vm444, %v417, -inf
        %v481 = vsel %vm444, %v425, -inf
        %v482 = vmax.f32 %v480, %v481
        %v483 = vsel %vm444, %v433, -inf
        %v484 = vmax.f32 %v482, %v483
        %v485 = vsel %vm444, %v441, -inf
        %v486 = vmax.f32 %v484, %v485
        %v487 = vsel %vm444, %v418, -inf
        %v488 = vsel %vm444, %v426, -inf
        %v489 = vmax.f32 %v487, %v488
        %v490 = vsel %vm444, %v434, -inf
        %v491 = vmax.f32 %v489, %v490
        %v492 = vsel %vm444, %v442, -inf
        %v493 = vmax.f32 %v491, %v492
        %v494 = vsel %vm444, %v419, -inf
        %v495 = vsel %vm444, %v427, -inf
        %v496 = vmax.f32 %v494, %v495
        %v497 = vsel %vm444, %v435, -inf
        %v498 = vmax.f32 %v496, %v497
        %v499 = vsel %vm444, %v443, -inf
        %v500 = vmax.f32 %v498, %v499
        %v501 = vld [vmem:[%s1] sm:$0xff]
        %v502 = vld [vmem:[%s1 + $0x8] sm:$0xff]
        %v503 = vld [vmem:[%s1 + $0x10] sm:$0xff]
        %v504 = vld [vmem:[%s1 + $0x18] sm:$0xff]
        %v505 = vld [vmem:[%s1 + $0x20] sm:$0xff]
        %v506 = vld [vmem:[%s1 + $0x28] sm:$0xff]
        %v507 = vld [vmem:[%s1 + $0x30] sm:$0xff]
        %v508 = vld [vmem:[%s1 + $0x38] sm:$0xff]
        %vm509 = vcmask 523264
        %v511 = vsel %vm509, %v501, 0
        %v514 = vsel %vm509, %v502, 0
        %v517 = vsel %vm509, %v503, 0
        %v520 = vsel %vm509, %v504, 0
        %v523 = vsel %vm509, %v505, 0
        %v526 = vsel %vm509, %v506, 0
        %v529 = vsel %vm509, %v507, 0
        %v532 = vsel %vm509, %v508, 0
        %534 = vmatprep.subr.mxu0 0.0
        %535 = vmatpush1.msra.mxu0 %v451
        %536 = vmatprep.subr.mxu0 0.0
        %537 = vmatpush1.msra.mxu0 %v458
        %538 = vmatprep.subr.mxu0 0.0
        %539 = vmatpush1.msra.mxu0 %v465
        %540 = vmatprep.subr.mxu0 0.0
        %541 = vmatpush1.msra.mxu0 %v472
        %542 = vmatprep.subr.mxu0 0.0
        %543 = vmatpush1.msra.mxu0 %v479
        %544 = vmatprep.subr.mxu0 0.0
        %545 = vmatpush1.msra.mxu0 %v486
        %546 = vmatprep.subr.mxu0 0.0
        %547 = vmatpush1.msra.mxu0 %v493
        %548 = vmatprep.subr.mxu0 0.0
        %549 = vmatpush1.msra.mxu0 %v500
        %550 = vmatprep.subr.mxu0 0.0
        %551 = vmatpush1.msra.mxu0 0.0
        %552 = vmatprep.subr.mxu0 0.0
        %553 = vmatpush1.msra.mxu0 0.0
        %554 = vmatprep.subr.mxu0 0.0
        %555 = vmatpush1.msra.mxu0 0.0
        %556 = vmatprep.subr.mxu0 0.0
        %557 = vmatpush1.msra.mxu0 0.0
        %558 = vmatprep.subr.mxu0 0.0
        %559 = vmatpush1.msra.mxu0 0.0
        %560 = vmatprep.subr.mxu0 0.0
        %561 = vmatpush1.msra.mxu0 0.0
        %562 = vmatprep.subr.mxu0 0.0
        %563 = vmatpush1.msra.mxu0 0.0
        %564 = vmatprep.subr.mxu0 0.0
        %565 = vmatpush1.msra.mxu0 0.0
        %566 = vmatprep.subr.mxu0 0.0
        %567 = vmatpush1.msra.mxu0 0.0
        %568 = vmatprep.subr.mxu0 0.0
        %569 = vmatpush1.msra.mxu0 0.0
        %570 = vmatprep.subr.mxu0 0.0
        %571 = vmatpush1.msra.mxu0 0.0
        %572 = vmatprep.subr.mxu0 0.0
        %573 = vmatpush1.msra.mxu0 0.0
        %574 = vmatprep.subr.mxu0 0.0
        %575 = vmatpush1.msra.mxu0 0.0
        %576 = vmatprep.subr.mxu0 0.0
        %577 = vmatpush1.msra.mxu0 0.0
        %578 = vmatprep.subr.mxu0 0.0
        %579 = vmatpush1.msra.mxu0 0.0
        %580 = vmatprep.subr.mxu0 0.0
        %581 = vmatpush1.msra.mxu0 0.0
        %582 = vmatprep.subr.mxu0 0.0
        %583 = vmatpush1.msra.mxu0 0.0
        %584 = vmatprep.subr.mxu0 0.0
        %585 = vmatpush1.msra.mxu0 0.0
        %586 = vmatprep.subr.mxu0 0.0
        %587 = vmatpush1.msra.mxu0 0.0
        %588 = vmatprep.subr.mxu0 0.0
        %589 = vmatpush1.msra.mxu0 0.0
        %590 = vmatprep.subr.mxu0 0.0
        %591 = vmatpush1.msra.mxu0 0.0
        %592 = vmatprep.subr.mxu0 0.0
        %593 = vmatpush1.msra.mxu0 0.0
        %594 = vmatprep.subr.mxu0 0.0
        %595 = vmatpush1.msra.mxu0 0.0
        %596 = vmatprep.subr.mxu0 0.0
        %597 = vmatpush1.msra.mxu0 0.0
        %598 = vmatprep.mubr.f32.mxu0 0.0
        %599 = vmatmul.mubr.f32.gmra.mrb[0].mxu0 %v511
        %v600 = vpop.f32.mrb[0].mxu0
        %v601 = vadd.f32 0.0, %v600
        %v602 = vpop.f32.mrb[0].mxu0
        %603 = vmatprep.mubr.f32.mxu0 0.0
        %604 = vmatmul.mubr.f32.gmra.mrb[0].mxu0 %v514
        %v605 = vpop.f32.mrb[0].mxu0
        %v606 = vadd.f32 0.0, %v605
        %v607 = vpop.f32.mrb[0].mxu0
        %608 = vmatprep.mubr.f32.mxu0 0.0
        %609 = vmatmul.mubr.f32.gmra.mrb[0].mxu0 %v517
        %v610 = vpop.f32.mrb[0].mxu0
        %v611 = vadd.f32 0.0, %v610
        %v612 = vpop.f32.mrb[0].mxu0
        %613 = vmatprep.mubr.f32.mxu0 0.0
        %614 = vmatmul.mubr.f32.gmra.mrb[0].mxu0 %v520
        %v615 = vpop.f32.mrb[0].mxu0
        %v616 = vadd.f32 0.0, %v615
        %v617 = vpop.f32.mrb[0].mxu0
        %618 = vmatprep.mubr.f32.mxu0 0.0
        %619 = vmatmul.mubr.f32.gmra.mrb[0].mxu0 %v523
        %v620 = vpop.f32.mrb[0].mxu0
        %v621 = vadd.f32 0.0, %v620
        %v622 = vpop.f32.mrb[0].mxu0
        %623 = vmatprep.mubr.f32.mxu0 0.0
        %624 = vmatmul.mubr.f32.gmra.mrb[0].mxu0 %v526
        %v625 = vpop.f32.mrb[0].mxu0
        %v626 = vadd.f32 0.0, %v625
        %v627 = vpop.f32.mrb[0].mxu0
        %628 = vmatprep.mubr.f32.mxu0 0.0
        %629 = vmatmul.mubr.f32.gmra.mrb[0].mxu0 %v529
        %v630 = vpop.f32.mrb[0].mxu0
        %v631 = vadd.f32 0.0, %v630
        %v632 = vpop.f32.mrb[0].mxu0
        %633 = vmatprep.mubr.f32.mxu0 0.0
        %634 = vmatmul.mubr.f32.gmra.mrb[0].mxu0 %v532
        %v635 = vpop.f32.mrb[0].mxu0
        %v636 = vadd.f32 0.0, %v635
        %v637 = vpop.f32.mrb[0].mxu0
        %638 = vdwg.mxu0
        %v639 = vld [vmem:[%s2] sm:$0xf]
        %s640 = scalar_lea.vmem %s1, 64
        %v641 = vld [vmem:[%s640] sm:$0xff]
        %v642 = vld [vmem:[%s640 + $0x8] sm:$0xff]
        %v643 = vld [vmem:[%s640 + $0x10] sm:$0xff]
        %v644 = vld [vmem:[%s640 + $0x18] sm:$0xff]
        %v645 = vld [vmem:[%s640 + $0x20] sm:$0xff]
        %v646 = vld [vmem:[%s640 + $0x28] sm:$0xff]
        %v647 = vld [vmem:[%s640 + $0x30] sm:$0xff]
        %v648 = vld [vmem:[%s640 + $0x38] sm:$0xff]
        %v650 = vsel %vm509, %v641, 0
        %v653 = vsel %vm509, %v642, 0
        %v656 = vsel %vm509, %v643, 0
        %v659 = vsel %vm509, %v644, 0
        %v662 = vsel %vm509, %v645, 0
        %v665 = vsel %vm509, %v646, 0
        %v668 = vsel %vm509, %v647, 0
        %v671 = vsel %vm509, %v648, 0
        %673 = vmatprep.subr.mxu0 0.0
        %674 = vmatpush1.msra.mxu0 %v451
        %675 = vmatprep.subr.mxu0 0.0
        %676 = vmatpush1.msra.mxu0 %v458
        %677 = vmatprep.subr.mxu0 0.0
        %678 = vmatpush1.msra.mxu0 %v465
        %679 = vmatprep.subr.mxu0 0.0
        %680 = vmatpush1.msra.mxu0 %v472
        %681 = vmatprep.subr.mxu0 0.0
        %682 = vmatpush1.msra.mxu0 %v479
        %683 = vmatprep.subr.mxu0 0.0
        %684 = vmatpush1.msra.mxu0 %v486
        %685 = vmatprep.subr.mxu0 0.0
        %686 = vmatpush1.msra.mxu0 %v493
        %687 = vmatprep.subr.mxu0 0.0
        %688 = vmatpush1.msra.mxu0 %v500
        %689 = vmatprep.subr.mxu0 0.0
        %690 = vmatpush1.msra.mxu0 0.0
        %691 = vmatprep.subr.mxu0 0.0
        %692 = vmatpush1.msra.mxu0 0.0
        %693 = vmatprep.subr.mxu0 0.0
        %694 = vmatpush1.msra.mxu0 0.0
        %695 = vmatprep.subr.mxu0 0.0
        %696 = vmatpush1.msra.mxu0 0.0
        %697 = vmatprep.subr.mxu0 0.0
        %698 = vmatpush1.msra.mxu0 0.0
        %699 = vmatprep.subr.mxu0 0.0
        %700 = vmatpush1.msra.mxu0 0.0
        %701 = vmatprep.subr.mxu0 0.0
        %702 = vmatpush1.msra.mxu0 0.0
        %703 = vmatprep.subr.mxu0 0.0
        %704 = vmatpush1.msra.mxu0 0.0
        %705 = vmatprep.subr.mxu0 0.0
        %706 = vmatpush1.msra.mxu0 0.0
        %707 = vmatprep.subr.mxu0 0.0
        %708 = vmatpush1.msra.mxu0 0.0
        %709 = vmatprep.subr.mxu0 0.0
        %710 = vmatpush1.msra.mxu0 0.0
        %711 = vmatprep.subr.mxu0 0.0
        %712 = vmatpush1.msra.mxu0 0.0
        %713 = vmatprep.subr.mxu0 0.0
        %714 = vmatpush1.msra.mxu0 0.0
        %715 = vmatprep.subr.mxu0 0.0
        %716 = vmatpush1.msra.mxu0 0.0
        %717 = vmatprep.subr.mxu0 0.0
        %718 = vmatpush1.msra.mxu0 0.0
        %719 = vmatprep.subr.mxu0 0.0
        %720 = vmatpush1.msra.mxu0 0.0
        %721 = vmatprep.subr.mxu0 0.0
        %722 = vmatpush1.msra.mxu0 0.0
        %723 = vmatprep.subr.mxu0 0.0
        %724 = vmatpush1.msra.mxu0 0.0
        %725 = vmatprep.subr.mxu0 0.0
        %726 = vmatpush1.msra.mxu0 0.0
        %727 = vmatprep.subr.mxu0 0.0
        %728 = vmatpush1.msra.mxu0 0.0
        %729 = vmatprep.subr.mxu0 0.0
        %730 = vmatpush1.msra.mxu0 0.0
        %731 = vmatprep.subr.mxu0 0.0
        %732 = vmatpush1.msra.mxu0 0.0
        %733 = vmatprep.subr.mxu0 0.0
        %734 = vmatpush1.msra.mxu0 0.0
        %735 = vmatprep.subr.mxu0 0.0
        %736 = vmatpush1.msra.mxu0 0.0
        %737 = vmatprep.mubr.f32.mxu0 0.0
        %738 = vmatmul.mubr.f32.gmra.mrb[0].mxu0 %v650
        %v739 = vpop.f32.mrb[0].mxu0
        %v740 = vadd.f32 0.0, %v739
        %v741 = vpop.f32.mrb[0].mxu0
        %742 = vmatprep.mubr.f32.mxu0 0.0
        %743 = vmatmul.mubr.f32.gmra.mrb[0].mxu0 %v653
        %v744 = vpop.f32.mrb[0].mxu0
        %v745 = vadd.f32 0.0, %v744
        %v746 = vpop.f32.mrb[0].mxu0
        %747 = vmatprep.mubr.f32.mxu0 0.0
        %748 = vmatmul.mubr.f32.gmra.mrb[0].mxu0 %v656
        %v749 = vpop.f32.mrb[0].mxu0
        %v750 = vadd.f32 0.0, %v749
        %v751 = vpop.f32.mrb[0].mxu0
        %752 = vmatprep.mubr.f32.mxu0 0.0
        %753 = vmatmul.mubr.f32.gmra.mrb[0].mxu0 %v659
        %v754 = vpop.f32.mrb[0].mxu0
        %v755 = vadd.f32 0.0, %v754
        %v756 = vpop.f32.mrb[0].mxu0
        %757 = vmatprep.mubr.f32.mxu0 0.0
        %758 = vmatmul.mubr.f32.gmra.mrb[0].mxu0 %v662
        %v759 = vpop.f32.mrb[0].mxu0
        %v760 = vadd.f32 0.0, %v759
        %v761 = vpop.f32.mrb[0].mxu0
        %762 = vmatprep.mubr.f32.mxu0 0.0
        %763 = vmatmul.mubr.f32.gmra.mrb[0].mxu0 %v665
        %v764 = vpop.f32.mrb[0].mxu0
        %v765 = vadd.f32 0.0, %v764
        %v766 = vpop.f32.mrb[0].mxu0
        %767 = vmatprep.mubr.f32.mxu0 0.0
        %768 = vmatmul.mubr.f32.gmra.mrb[0].mxu0 %v668
        %v769 = vpop.f32.mrb[0].mxu0
        %v770 = vadd.f32 0.0, %v769
        %v771 = vpop.f32.mrb[0].mxu0
        %772 = vmatprep.mubr.f32.mxu0 0.0
        %773 = vmatmul.mubr.f32.gmra.mrb[0].mxu0 %v671
        %v774 = vpop.f32.mrb[0].mxu0
        %v775 = vadd.f32 0.0, %v774
        %v776 = vpop.f32.mrb[0].mxu0
        %777 = vdwg.mxu0
        %s778 = scalar_lea.vmem %s2, 4
        %v779 = vld [vmem:[%s778] sm:$0xf]
        %v781 = vsel %vm444, %v740, 0
        %v784 = vsel %vm444, %v745, 0
        %v787 = vsel %vm444, %v750, 0
        %v790 = vsel %vm444, %v755, 0
        %v793 = vsel %vm444, %v760, 0
        %v796 = vsel %vm444, %v765, 0
        %v799 = vsel %vm444, %v770, 0
        %v802 = vsel %vm444, %v775, 0
        %vm804 = vcmask 1043456
        %v806 = vsel %vm804, %v779, 0
        %808 = vmatprep.subr.mxu0 0.0
        %809 = vmatpush1.msra.mxu0 %v806
        %810 = vmatprep.subr.mxu0 0.0
        %811 = vmatpush1.msra.mxu0 0.0
        %812 = vmatprep.subr.mxu0 0.0
        %813 = vmatpush1.msra.mxu0 0.0
        %814 = vmatprep.subr.mxu0 0.0
        %815 = vmatpush1.msra.mxu0 0.0
        %816 = vmatprep.subr.mxu0 0.0
        %817 = vmatpush1.msra.mxu0 0.0
        %818 = vmatprep.subr.mxu0 0.0
        %819 = vmatpush1.msra.mxu0 0.0
        %820 = vmatprep.subr.mxu0 0.0
        %821 = vmatpush1.msra.mxu0 0.0
        %822 = vmatprep.subr.mxu0 0.0
        %823 = vmatpush1.msra.mxu0 0.0
        %824 = vmatprep.subr.mxu0 0.0
        %825 = vmatpush1.msra.mxu0 0.0
        %826 = vmatprep.subr.mxu0 0.0
        %827 = vmatpush1.msra.mxu0 0.0
        %828 = vmatprep.subr.mxu0 0.0
        %829 = vmatpush1.msra.mxu0 0.0
        %830 = vmatprep.subr.mxu0 0.0
        %831 = vmatpush1.msra.mxu0 0.0
        %832 = vmatprep.subr.mxu0 0.0
        %833 = vmatpush1.msra.mxu0 0.0
        %834 = vmatprep.subr.mxu0 0.0
        %835 = vmatpush1.msra.mxu0 0.0
        %836 = vmatprep.subr.mxu0 0.0
        %837 = vmatpush1.msra.mxu0 0.0
        %838 = vmatprep.subr.mxu0 0.0
        %839 = vmatpush1.msra.mxu0 0.0
        %840 = vmatprep.subr.mxu0 0.0
        %841 = vmatpush1.msra.mxu0 0.0
        %842 = vmatprep.subr.mxu0 0.0
        %843 = vmatpush1.msra.mxu0 0.0
        %844 = vmatprep.subr.mxu0 0.0
        %845 = vmatpush1.msra.mxu0 0.0
        %846 = vmatprep.subr.mxu0 0.0
        %847 = vmatpush1.msra.mxu0 0.0
        %848 = vmatprep.subr.mxu0 0.0
        %849 = vmatpush1.msra.mxu0 0.0
        %850 = vmatprep.subr.mxu0 0.0
        %851 = vmatpush1.msra.mxu0 0.0
        %852 = vmatprep.subr.mxu0 0.0
        %853 = vmatpush1.msra.mxu0 0.0
        %854 = vmatprep.subr.mxu0 0.0
        %855 = vmatpush1.msra.mxu0 0.0
        %856 = vmatprep.subr.mxu0 0.0
        %857 = vmatpush1.msra.mxu0 0.0
        %858 = vmatprep.subr.mxu0 0.0
        %859 = vmatpush1.msra.mxu0 0.0
        %860 = vmatprep.subr.mxu0 0.0
        %861 = vmatpush1.msra.mxu0 0.0
        %862 = vmatprep.subr.mxu0 0.0
        %863 = vmatpush1.msra.mxu0 0.0
        %864 = vmatprep.subr.mxu0 0.0
        %865 = vmatpush1.msra.mxu0 0.0
        %866 = vmatprep.subr.mxu0 0.0
        %867 = vmatpush1.msra.mxu0 0.0
        %868 = vmatprep.subr.mxu0 0.0
        %869 = vmatpush1.msra.mxu0 0.0
        %870 = vmatprep.subr.mxu0 0.0
        %871 = vmatpush1.msra.mxu0 0.0
        %872 = vmatprep.mubr.f32.mxu0 0.0
        %873 = vmatmul.mubr.f32.gmra.mrb[0].mxu0 %v781
        %v874 = vpop.f32.mrb[0].mxu0
        %v875 = vadd.f32 0.0, %v874
        %v876 = vpop.f32.mrb[0].mxu0
        %877 = vmatprep.mubr.f32.mxu0 0.0
        %878 = vmatmul.mubr.f32.gmra.mrb[0].mxu0 %v784
        %v879 = vpop.f32.mrb[0].mxu0
        %v880 = vadd.f32 0.0, %v879
        %v881 = vpop.f32.mrb[0].mxu0
        %882 = vmatprep.mubr.f32.mxu0 0.0
        %883 = vmatmul.mubr.f32.gmra.mrb[0].mxu0 %v787
        %v884 = vpop.f32.mrb[0].mxu0
        %v885 = vadd.f32 0.0, %v884
        %v886 = vpop.f32.mrb[0].mxu0
        %887 = vmatprep.mubr.f32.mxu0 0.0
        %888 = vmatmul.mubr.f32.gmra.mrb[0].mxu0 %v790
        %v889 = vpop.f32.mrb[0].mxu0
        %v890 = vadd.f32 0.0, %v889
        %v891 = vpop.f32.mrb[0].mxu0
        %892 = vmatprep.mubr.f32.mxu0 0.0
        %893 = vmatmul.mubr.f32.gmra.mrb[0].mxu0 %v793
        %v894 = vpop.f32.mrb[0].mxu0
        %v895 = vadd.f32 0.0, %v894
        %v896 = vpop.f32.mrb[0].mxu0
        %897 = vmatprep.mubr.f32.mxu0 0.0
        %898 = vmatmul.mubr.f32.gmra.mrb[0].mxu0 %v796
        %v899 = vpop.f32.mrb[0].mxu0
        %v900 = vadd.f32 0.0, %v899
        %v901 = vpop.f32.mrb[0].mxu0
        %902 = vmatprep.mubr.f32.mxu0 0.0
        %903 = vmatmul.mubr.f32.gmra.mrb[0].mxu0 %v799
        %v904 = vpop.f32.mrb[0].mxu0
        %v905 = vadd.f32 0.0, %v904
        %v906 = vpop.f32.mrb[0].mxu0
        %907 = vmatprep.mubr.f32.mxu0 0.0
        %908 = vmatmul.mubr.f32.gmra.mrb[0].mxu0 %v802
        %v909 = vpop.f32.mrb[0].mxu0
        %v910 = vadd.f32 0.0, %v909
        %v911 = vpop.f32.mrb[0].mxu0
        %912 = vdwg.mxu0
        %v914 = vsel %vm444, %v601, 0
        %v917 = vsel %vm444, %v606, 0
        %v920 = vsel %vm444, %v611, 0
        %v923 = vsel %vm444, %v616, 0
        %v926 = vsel %vm444, %v621, 0
        %v929 = vsel %vm444, %v626, 0
        %v932 = vsel %vm444, %v631, 0
        %v935 = vsel %vm444, %v636, 0
        %v938 = vsel %vm804, %v639, 0
        %940 = vmatprep.subr.mxu0 0.0
        %941 = vmatpush1.msra.mxu0 %v938
        %942 = vmatprep.subr.mxu0 0.0
        %943 = vmatpush1.msra.mxu0 0.0
        %944 = vmatprep.subr.mxu0 0.0
        %945 = vmatpush1.msra.mxu0 0.0
        %946 = vmatprep.subr.mxu0 0.0
        %947 = vmatpush1.msra.mxu0 0.0
        %948 = vmatprep.subr.mxu0 0.0
        %949 = vmatpush1.msra.mxu0 0.0
        %950 = vmatprep.subr.mxu0 0.0
        %951 = vmatpush1.msra.mxu0 0.0
        %952 = vmatprep.subr.mxu0 0.0
        %953 = vmatpush1.msra.mxu0 0.0
        %954 = vmatprep.subr.mxu0 0.0
        %955 = vmatpush1.msra.mxu0 0.0
        %956 = vmatprep.subr.mxu0 0.0
        %957 = vmatpush1.msra.mxu0 0.0
        %958 = vmatprep.subr.mxu0 0.0
        %959 = vmatpush1.msra.mxu0 0.0
        %960 = vmatprep.subr.mxu0 0.0
        %961 = vmatpush1.msra.mxu0 0.0
        %962 = vmatprep.subr.mxu0 0.0
        %963 = vmatpush1.msra.mxu0 0.0
        %964 = vmatprep.subr.mxu0 0.0
        %965 = vmatpush1.msra.mxu0 0.0
        %966 = vmatprep.subr.mxu0 0.0
        %967 = vmatpush1.msra.mxu0 0.0
        %968 = vmatprep.subr.mxu0 0.0
        %969 = vmatpush1.msra.mxu0 0.0
        %970 = vmatprep.subr.mxu0 0.0
        %971 = vmatpush1.msra.mxu0 0.0
        %972 = vmatprep.subr.mxu0 0.0
        %973 = vmatpush1.msra.mxu0 0.0
        %974 = vmatprep.subr.mxu0 0.0
        %975 = vmatpush1.msra.mxu0 0.0
        %976 = vmatprep.subr.mxu0 0.0
        %977 = vmatpush1.msra.mxu0 0.0
        %978 = vmatprep.subr.mxu0 0.0
        %979 = vmatpush1.msra.mxu0 0.0
        %980 = vmatprep.subr.mxu0 0.0
        %981 = vmatpush1.msra.mxu0 0.0
        %982 = vmatprep.subr.mxu0 0.0
        %983 = vmatpush1.msra.mxu0 0.0
        %984 = vmatprep.subr.mxu0 0.0
        %985 = vmatpush1.msra.mxu0 0.0
        %986 = vmatprep.subr.mxu0 0.0
        %987 = vmatpush1.msra.mxu0 0.0
        %988 = vmatprep.subr.mxu0 0.0
        %989 = vmatpush1.msra.mxu0 0.0
        %990 = vmatprep.subr.mxu0 0.0
        %991 = vmatpush1.msra.mxu0 0.0
        %992 = vmatprep.subr.mxu0 0.0
        %993 = vmatpush1.msra.mxu0 0.0
        %994 = vmatprep.subr.mxu0 0.0
        %995 = vmatpush1.msra.mxu0 0.0
        %996 = vmatprep.subr.mxu0 0.0
        %997 = vmatpush1.msra.mxu0 0.0
        %998 = vmatprep.subr.mxu0 0.0
        %999 = vmatpush1.msra.mxu0 0.0
        %1000 = vmatprep.subr.mxu0 0.0
        %1001 = vmatpush1.msra.mxu0 0.0
        %1002 = vmatprep.subr.mxu0 0.0
        %1003 = vmatpush1.msra.mxu0 0.0
        %1004 = vmatprep.mubr.f32.mxu0 0.0
        %1005 = vmatmul.mubr.f32.gmra.mrb[0].mxu0 %v914
        %v1006 = vpop.f32.mrb[0].mxu0
        %v1007 = vadd.f32 %v875, %v1006
        %v1008 = vpop.f32.mrb[0].mxu0
        %1009 = vmatprep.mubr.f32.mxu0 0.0
        %1010 = vmatmul.mubr.f32.gmra.mrb[0].mxu0 %v917
        %v1011 = vpop.f32.mrb[0].mxu0
        %v1012 = vadd.f32 %v880, %v1011
        %v1013 = vpop.f32.mrb[0].mxu0
        %1014 = vmatprep.mubr.f32.mxu0 0.0
        %1015 = vmatmul.mubr.f32.gmra.mrb[0].mxu0 %v920
        %v1016 = vpop.f32.mrb[0].mxu0
        %v1017 = vadd.f32 %v885, %v1016
        %v1018 = vpop.f32.mrb[0].mxu0
        %1019 = vmatprep.mubr.f32.mxu0 0.0
        %1020 = vmatmul.mubr.f32.gmra.mrb[0].mxu0 %v923
        %v1021 = vpop.f32.mrb[0].mxu0
        %v1022 = vadd.f32 %v890, %v1021
        %v1023 = vpop.f32.mrb[0].mxu0
        %1024 = vmatprep.mubr.f32.mxu0 0.0
        %1025 = vmatmul.mubr.f32.gmra.mrb[0].mxu0 %v926
        %v1026 = vpop.f32.mrb[0].mxu0
        %v1027 = vadd.f32 %v895, %v1026
        %v1028 = vpop.f32.mrb[0].mxu0
        %1029 = vmatprep.mubr.f32.mxu0 0.0
        %1030 = vmatmul.mubr.f32.gmra.mrb[0].mxu0 %v929
        %v1031 = vpop.f32.mrb[0].mxu0
        %v1032 = vadd.f32 %v900, %v1031
        %v1033 = vpop.f32.mrb[0].mxu0
        %1034 = vmatprep.mubr.f32.mxu0 0.0
        %1035 = vmatmul.mubr.f32.gmra.mrb[0].mxu0 %v932
        %v1036 = vpop.f32.mrb[0].mxu0
        %v1037 = vadd.f32 %v905, %v1036
        %v1038 = vpop.f32.mrb[0].mxu0
        %1039 = vmatprep.mubr.f32.mxu0 0.0
        %1040 = vmatmul.mubr.f32.gmra.mrb[0].mxu0 %v935
        %v1041 = vpop.f32.mrb[0].mxu0
        %v1042 = vadd.f32 %v910, %v1041
        %v1043 = vpop.f32.mrb[0].mxu0
        %1044 = vdwg.mxu0
        %s1045 = scalar_lea.vmem %s1, 128
        %v1046 = vld [vmem:[%s1045] sm:$0xff]
        %v1047 = vld [vmem:[%s1045 + $0x8] sm:$0xff]
        %v1048 = vld [vmem:[%s1045 + $0x10] sm:$0xff]
        %v1049 = vld [vmem:[%s1045 + $0x18] sm:$0xff]
        %v1050 = vld [vmem:[%s1045 + $0x20] sm:$0xff]
        %v1051 = vld [vmem:[%s1045 + $0x28] sm:$0xff]
        %v1052 = vld [vmem:[%s1045 + $0x30] sm:$0xff]
        %v1053 = vld [vmem:[%s1045 + $0x38] sm:$0xff]
        %v1055 = vsel %vm509, %v1046, 0
        %v1058 = vsel %vm509, %v1047, 0
        %v1061 = vsel %vm509, %v1048, 0
        %v1064 = vsel %vm509, %v1049, 0
        %v1067 = vsel %vm509, %v1050, 0
        %v1070 = vsel %vm509, %v1051, 0
        %v1073 = vsel %vm509, %v1052, 0
        %v1076 = vsel %vm509, %v1053, 0
        %1078 = vmatprep.subr.mxu0 0.0
        %1079 = vmatpush1.msra.mxu0 %v451
        %1080 = vmatprep.subr.mxu0 0.0
        %1081 = vmatpush1.msra.mxu0 %v458
        %1082 = vmatprep.subr.mxu0 0.0
        %1083 = vmatpush1.msra.mxu0 %v465
        %1084 = vmatprep.subr.mxu0 0.0
        %1085 = vmatpush1.msra.mxu0 %v472
        %1086 = vmatprep.subr.mxu0 0.0
        %1087 = vmatpush1.msra.mxu0 %v479
        %1088 = vmatprep.subr.mxu0 0.0
        %1089 = vmatpush1.msra.mxu0 %v486
        %1090 = vmatprep.subr.mxu0 0.0
        %1091 = vmatpush1.msra.mxu0 %v493
        %1092 = vmatprep.subr.mxu0 0.0
        %1093 = vmatpush1.msra.mxu0 %v500
        %1094 = vmatprep.subr.mxu0 0.0
        %1095 = vmatpush1.msra.mxu0 0.0
        %1096 = vmatprep.subr.mxu0 0.0
        %1097 = vmatpush1.msra.mxu0 0.0
        %1098 = vmatprep.subr.mxu0 0.0
        %1099 = vmatpush1.msra.mxu0 0.0
        %1100 = vmatprep.subr.mxu0 0.0
        %1101 = vmatpush1.msra.mxu0 0.0
        %1102 = vmatprep.subr.mxu0 0.0
        %1103 = vmatpush1.msra.mxu0 0.0
        %1104 = vmatprep.subr.mxu0 0.0
        %1105 = vmatpush1.msra.mxu0 0.0
        %1106 = vmatprep.subr.mxu0 0.0
        %1107 = vmatpush1.msra.mxu0 0.0
        %1108 = vmatprep.subr.mxu0 0.0
        %1109 = vmatpush1.msra.mxu0 0.0
        %1110 = vmatprep.subr.mxu0 0.0
        %1111 = vmatpush1.msra.mxu0 0.0
        %1112 = vmatprep.subr.mxu0 0.0
        %1113 = vmatpush1.msra.mxu0 0.0
        %1114 = vmatprep.subr.mxu0 0.0
        %1115 = vmatpush1.msra.mxu0 0.0
        %1116 = vmatprep.subr.mxu0 0.0
        %1117 = vmatpush1.msra.mxu0 0.0
        %1118 = vmatprep.subr.mxu0 0.0
        %1119 = vmatpush1.msra.mxu0 0.0
        %1120 = vmatprep.subr.mxu0 0.0
        %1121 = vmatpush1.msra.mxu0 0.0
        %1122 = vmatprep.subr.mxu0 0.0
        %1123 = vmatpush1.msra.mxu0 0.0
        %1124 = vmatprep.subr.mxu0 0.0
        %1125 = vmatpush1.msra.mxu0 0.0
        %1126 = vmatprep.subr.mxu0 0.0
        %1127 = vmatpush1.msra.mxu0 0.0
        %1128 = vmatprep.subr.mxu0 0.0
        %1129 = vmatpush1.msra.mxu0 0.0
        %1130 = vmatprep.subr.mxu0 0.0
        %1131 = vmatpush1.msra.mxu0 0.0
        %1132 = vmatprep.subr.mxu0 0.0
        %1133 = vmatpush1.msra.mxu0 0.0
        %1134 = vmatprep.subr.mxu0 0.0
        %1135 = vmatpush1.msra.mxu0 0.0
        %1136 = vmatprep.subr.mxu0 0.0
        %1137 = vmatpush1.msra.mxu0 0.0
        %1138 = vmatprep.subr.mxu0 0.0
        %1139 = vmatpush1.msra.mxu0 0.0
        %1140 = vmatprep.subr.mxu0 0.0
        %1141 = vmatpush1.msra.mxu0 0.0
        %1142 = vmatprep.mubr.f32.mxu0 0.0
        %1143 = vmatmul.mubr.f32.gmra.mrb[0].mxu0 %v1055
        %v1144 = vpop.f32.mrb[0].mxu0
        %v1145 = vadd.f32 0.0, %v1144
        %v1146 = vpop.f32.mrb[0].mxu0
        %1147 = vmatprep.mubr.f32.mxu0 0.0
        %1148 = vmatmul.mubr.f32.gmra.mrb[0].mxu0 %v1058
        %v1149 = vpop.f32.mrb[0].mxu0
        %v1150 = vadd.f32 0.0, %v1149
        %v1151 = vpop.f32.mrb[0].mxu0
        %1152 = vmatprep.mubr.f32.mxu0 0.0
        %1153 = vmatmul.mubr.f32.gmra.mrb[0].mxu0 %v1061
        %v1154 = vpop.f32.mrb[0].mxu0
        %v1155 = vadd.f32 0.0, %v1154
        %v1156 = vpop.f32.mrb[0].mxu0
        %1157 = vmatprep.mubr.f32.mxu0 0.0
        %1158 = vmatmul.mubr.f32.gmra.mrb[0].mxu0 %v1064
        %v1159 = vpop.f32.mrb[0].mxu0
        %v1160 = vadd.f32 0.0, %v1159
        %v1161 = vpop.f32.mrb[0].mxu0
        %1162 = vmatprep.mubr.f32.mxu0 0.0
        %1163 = vmatmul.mubr.f32.gmra.mrb[0].mxu0 %v1067
        %v1164 = vpop.f32.mrb[0].mxu0
        %v1165 = vadd.f32 0.0, %v1164
        %v1166 = vpop.f32.mrb[0].mxu0
        %1167 = vmatprep.mubr.f32.mxu0 0.0
        %1168 = vmatmul.mubr.f32.gmra.mrb[0].mxu0 %v1070
        %v1169 = vpop.f32.mrb[0].mxu0
        %v1170 = vadd.f32 0.0, %v1169
        %v1171 = vpop.f32.mrb[0].mxu0
        %1172 = vmatprep.mubr.f32.mxu0 0.0
        %1173 = vmatmul.mubr.f32.gmra.mrb[0].mxu0 %v1073
        %v1174 = vpop.f32.mrb[0].mxu0
        %v1175 = vadd.f32 0.0, %v1174
        %v1176 = vpop.f32.mrb[0].mxu0
        %1177 = vmatprep.mubr.f32.mxu0 0.0
        %1178 = vmatmul.mubr.f32.gmra.mrb[0].mxu0 %v1076
        %v1179 = vpop.f32.mrb[0].mxu0
        %v1180 = vadd.f32 0.0, %v1179
        %v1181 = vpop.f32.mrb[0].mxu0
        %1182 = vdwg.mxu0
        %s1183 = scalar_lea.vmem %s2, 8
        %v1184 = vld [vmem:[%s1183] sm:$0xf]
        %v1186 = vsel %vm444, %v1145, 0
        %v1189 = vsel %vm444, %v1150, 0
        %v1192 = vsel %vm444, %v1155, 0
        %v1195 = vsel %vm444, %v1160, 0
        %v1198 = vsel %vm444, %v1165, 0
        %v1201 = vsel %vm444, %v1170, 0
        %v1204 = vsel %vm444, %v1175, 0
        %v1207 = vsel %vm444, %v1180, 0
        %v1210 = vsel %vm804, %v1184, 0
        %1212 = vmatprep.subr.mxu0 0.0
        %1213 = vmatpush1.msra.mxu0 %v1210
        %1214 = vmatprep.subr.mxu0 0.0
        %1215 = vmatpush1.msra.mxu0 0.0
        %1216 = vmatprep.subr.mxu0 0.0
        %1217 = vmatpush1.msra.mxu0 0.0
        %1218 = vmatprep.subr.mxu0 0.0
        %1219 = vmatpush1.msra.mxu0 0.0
        %1220 = vmatprep.subr.mxu0 0.0
        %1221 = vmatpush1.msra.mxu0 0.0
        %1222 = vmatprep.subr.mxu0 0.0
        %1223 = vmatpush1.msra.mxu0 0.0
        %1224 = vmatprep.subr.mxu0 0.0
        %1225 = vmatpush1.msra.mxu0 0.0
        %1226 = vmatprep.subr.mxu0 0.0
        %1227 = vmatpush1.msra.mxu0 0.0
        %1228 = vmatprep.subr.mxu0 0.0
        %1229 = vmatpush1.msra.mxu0 0.0
        %1230 = vmatprep.subr.mxu0 0.0
        %1231 = vmatpush1.msra.mxu0 0.0
        %1232 = vmatprep.subr.mxu0 0.0
        %1233 = vmatpush1.msra.mxu0 0.0
        %1234 = vmatprep.subr.mxu0 0.0
        %1235 = vmatpush1.msra.mxu0 0.0
        %1236 = vmatprep.subr.mxu0 0.0
        %1237 = vmatpush1.msra.mxu0 0.0
        %1238 = vmatprep.subr.mxu0 0.0
        %1239 = vmatpush1.msra.mxu0 0.0
        %1240 = vmatprep.subr.mxu0 0.0
        %1241 = vmatpush1.msra.mxu0 0.0
        %1242 = vmatprep.subr.mxu0 0.0
        %1243 = vmatpush1.msra.mxu0 0.0
        %1244 = vmatprep.subr.mxu0 0.0
        %1245 = vmatpush1.msra.mxu0 0.0
        %1246 = vmatprep.subr.mxu0 0.0
        %1247 = vmatpush1.msra.mxu0 0.0
        %1248 = vmatprep.subr.mxu0 0.0
        %1249 = vmatpush1.msra.mxu0 0.0
        %1250 = vmatprep.subr.mxu0 0.0
        %1251 = vmatpush1.msra.mxu0 0.0
        %1252 = vmatprep.subr.mxu0 0.0
        %1253 = vmatpush1.msra.mxu0 0.0
        %1254 = vmatprep.subr.mxu0 0.0
        %1255 = vmatpush1.msra.mxu0 0.0
        %1256 = vmatprep.subr.mxu0 0.0
        %1257 = vmatpush1.msra.mxu0 0.0
        %1258 = vmatprep.subr.mxu0 0.0
        %1259 = vmatpush1.msra.mxu0 0.0
        %1260 = vmatprep.subr.mxu0 0.0
        %1261 = vmatpush1.msra.mxu0 0.0
        %1262 = vmatprep.subr.mxu0 0.0
        %1263 = vmatpush1.msra.mxu0 0.0
        %1264 = vmatprep.subr.mxu0 0.0
        %1265 = vmatpush1.msra.mxu0 0.0
        %1266 = vmatprep.subr.mxu0 0.0
        %1267 = vmatpush1.msra.mxu0 0.0
        %1268 = vmatprep.subr.mxu0 0.0
        %1269 = vmatpush1.msra.mxu0 0.0
        %1270 = vmatprep.subr.mxu0 0.0
        %1271 = vmatpush1.msra.mxu0 0.0
        %1272 = vmatprep.subr.mxu0 0.0
        %1273 = vmatpush1.msra.mxu0 0.0
        %1274 = vmatprep.subr.mxu0 0.0
        %1275 = vmatpush1.msra.mxu0 0.0
        %1276 = vmatprep.mubr.f32.mxu0 0.0
        %1277 = vmatmul.mubr.f32.gmra.mrb[0].mxu0 %v1186
        %v1278 = vpop.f32.mrb[0].mxu0
        %v1279 = vadd.f32 0.0, %v1278
        %v1280 = vpop.f32.mrb[0].mxu0
        %1281 = vmatprep.mubr.f32.mxu0 0.0
        %1282 = vmatmul.mubr.f32.gmra.mrb[0].mxu0 %v1189
        %v1283 = vpop.f32.mrb[0].mxu0
        %v1284 = vadd.f32 0.0, %v1283
        %v1285 = vpop.f32.mrb[0].mxu0
        %1286 = vmatprep.mubr.f32.mxu0 0.0
        %1287 = vmatmul.mubr.f32.gmra.mrb[0].mxu0 %v1192
        %v1288 = vpop.f32.mrb[0].mxu0
        %v1289 = vadd.f32 0.0, %v1288
        %v1290 = vpop.f32.mrb[0].mxu0
        %1291 = vmatprep.mubr.f32.mxu0 0.0
        %1292 = vmatmul.mubr.f32.gmra.mrb[0].mxu0 %v1195
        %v1293 = vpop.f32.mrb[0].mxu0
        %v1294 = vadd.f32 0.0, %v1293
        %v1295 = vpop.f32.mrb[0].mxu0
        %1296 = vmatprep.mubr.f32.mxu0 0.0
        %1297 = vmatmul.mubr.f32.gmra.mrb[0].mxu0 %v1198
        %v1298 = vpop.f32.mrb[0].mxu0
        %v1299 = vadd.f32 0.0, %v1298
        %v1300 = vpop.f32.mrb[0].mxu0
        %1301 = vmatprep.mubr.f32.mxu0 0.0
        %1302 = vmatmul.mubr.f32.gmra.mrb[0].mxu0 %v1201
        %v1303 = vpop.f32.mrb[0].mxu0
        %v1304 = vadd.f32 0.0, %v1303
        %v1305 = vpop.f32.mrb[0].mxu0
        %1306 = vmatprep.mubr.f32.mxu0 0.0
        %1307 = vmatmul.mubr.f32.gmra.mrb[0].mxu0 %v1204
        %v1308 = vpop.f32.mrb[0].mxu0
        %v1309 = vadd.f32 0.0, %v1308
        %v1310 = vpop.f32.mrb[0].mxu0
        %1311 = vmatprep.mubr.f32.mxu0 0.0
        %1312 = vmatmul.mubr.f32.gmra.mrb[0].mxu0 %v1207
        %v1313 = vpop.f32.mrb[0].mxu0
        %v1314 = vadd.f32 0.0, %v1313
        %v1315 = vpop.f32.mrb[0].mxu0
        %1316 = vdwg.mxu0
        %v1317 = vadd.f32 %v1007, %v1279
        %v1318 = vadd.f32 %v1012, %v1284
        %v1319 = vadd.f32 %v1017, %v1289
        %v1320 = vadd.f32 %v1022, %v1294
        %v1321 = vadd.f32 %v1027, %v1299
        %v1322 = vadd.f32 %v1032, %v1304
        %v1323 = vadd.f32 %v1037, %v1309
        %v1324 = vadd.f32 %v1042, %v1314
        %s1325 = scalar_lea.vmem %s1, 192
        %v1326 = vld [vmem:[%s1325] sm:$0xff]
        %v1327 = vld [vmem:[%s1325 + $0x8] sm:$0xff]
        %v1328 = vld [vmem:[%s1325 + $0x10] sm:$0xff]
        %v1329 = vld [vmem:[%s1325 + $0x18] sm:$0xff]
        %v1330 = vld [vmem:[%s1325 + $0x20] sm:$0xff]
        %v1331 = vld [vmem:[%s1325 + $0x28] sm:$0xff]
        %v1332 = vld [vmem:[%s1325 + $0x30] sm:$0xff]
        %v1333 = vld [vmem:[%s1325 + $0x38] sm:$0xff]
        %v1335 = vsel %vm509, %v1326, 0
        %v1338 = vsel %vm509, %v1327, 0
        %v1341 = vsel %vm509, %v1328, 0
        %v1344 = vsel %vm509, %v1329, 0
        %v1347 = vsel %vm509, %v1330, 0
        %v1350 = vsel %vm509, %v1331, 0
        %v1353 = vsel %vm509, %v1332, 0
        %v1356 = vsel %vm509, %v1333, 0
        %1358 = vmatprep.subr.mxu0 0.0
        %1359 = vmatpush1.msra.mxu0 %v451
        %1360 = vmatprep.subr.mxu0 0.0
        %1361 = vmatpush1.msra.mxu0 %v458
        %1362 = vmatprep.subr.mxu0 0.0
        %1363 = vmatpush1.msra.mxu0 %v465
        %1364 = vmatprep.subr.mxu0 0.0
        %1365 = vmatpush1.msra.mxu0 %v472
        %1366 = vmatprep.subr.mxu0 0.0
        %1367 = vmatpush1.msra.mxu0 %v479
        %1368 = vmatprep.subr.mxu0 0.0
        %1369 = vmatpush1.msra.mxu0 %v486
        %1370 = vmatprep.subr.mxu0 0.0
        %1371 = vmatpush1.msra.mxu0 %v493
        %1372 = vmatprep.subr.mxu0 0.0
        %1373 = vmatpush1.msra.mxu0 %v500
        %1374 = vmatprep.subr.mxu0 0.0
        %1375 = vmatpush1.msra.mxu0 0.0
        %1376 = vmatprep.subr.mxu0 0.0
        %1377 = vmatpush1.msra.mxu0 0.0
        %1378 = vmatprep.subr.mxu0 0.0
        %1379 = vmatpush1.msra.mxu0 0.0
        %1380 = vmatprep.subr.mxu0 0.0
        %1381 = vmatpush1.msra.mxu0 0.0
        %1382 = vmatprep.subr.mxu0 0.0
        %1383 = vmatpush1.msra.mxu0 0.0
        %1384 = vmatprep.subr.mxu0 0.0
        %1385 = vmatpush1.msra.mxu0 0.0
        %1386 = vmatprep.subr.mxu0 0.0
        %1387 = vmatpush1.msra.mxu0 0.0
        %1388 = vmatprep.subr.mxu0 0.0
        %1389 = vmatpush1.msra.mxu0 0.0
        %1390 = vmatprep.subr.mxu0 0.0
        %1391 = vmatpush1.msra.mxu0 0.0
        %1392 = vmatprep.subr.mxu0 0.0
        %1393 = vmatpush1.msra.mxu0 0.0
        %1394 = vmatprep.subr.mxu0 0.0
        %1395 = vmatpush1.msra.mxu0 0.0
        %1396 = vmatprep.subr.mxu0 0.0
        %1397 = vmatpush1.msra.mxu0 0.0
        %1398 = vmatprep.subr.mxu0 0.0
        %1399 = vmatpush1.msra.mxu0 0.0
        %1400 = vmatprep.subr.mxu0 0.0
        %1401 = vmatpush1.msra.mxu0 0.0
        %1402 = vmatprep.subr.mxu0 0.0
        %1403 = vmatpush1.msra.mxu0 0.0
        %1404 = vmatprep.subr.mxu0 0.0
        %1405 = vmatpush1.msra.mxu0 0.0
        %1406 = vmatprep.subr.mxu0 0.0
        %1407 = vmatpush1.msra.mxu0 0.0
        %1408 = vmatprep.subr.mxu0 0.0
        %1409 = vmatpush1.msra.mxu0 0.0
        %1410 = vmatprep.subr.mxu0 0.0
        %1411 = vmatpush1.msra.mxu0 0.0
        %1412 = vmatprep.subr.mxu0 0.0
        %1413 = vmatpush1.msra.mxu0 0.0
        %1414 = vmatprep.subr.mxu0 0.0
        %1415 = vmatpush1.msra.mxu0 0.0
        %1416 = vmatprep.subr.mxu0 0.0
        %1417 = vmatpush1.msra.mxu0 0.0
        %1418 = vmatprep.subr.mxu0 0.0
        %1419 = vmatpush1.msra.mxu0 0.0
        %1420 = vmatprep.subr.mxu0 0.0
        %1421 = vmatpush1.msra.mxu0 0.0
        %1422 = vmatprep.mubr.f32.mxu0 0.0
        %1423 = vmatmul.mubr.f32.gmra.mrb[0].mxu0 %v1335
        %v1424 = vpop.f32.mrb[0].mxu0
        %v1425 = vadd.f32 0.0, %v1424
        %v1426 = vpop.f32.mrb[0].mxu0
        %1427 = vmatprep.mubr.f32.mxu0 0.0
        %1428 = vmatmul.mubr.f32.gmra.mrb[0].mxu0 %v1338
        %v1429 = vpop.f32.mrb[0].mxu0
        %v1430 = vadd.f32 0.0, %v1429
        %v1431 = vpop.f32.mrb[0].mxu0
        %1432 = vmatprep.mubr.f32.mxu0 0.0
        %1433 = vmatmul.mubr.f32.gmra.mrb[0].mxu0 %v1341
        %v1434 = vpop.f32.mrb[0].mxu0
        %v1435 = vadd.f32 0.0, %v1434
        %v1436 = vpop.f32.mrb[0].mxu0
        %1437 = vmatprep.mubr.f32.mxu0 0.0
        %1438 = vmatmul.mubr.f32.gmra.mrb[0].mxu0 %v1344
        %v1439 = vpop.f32.mrb[0].mxu0
        %v1440 = vadd.f32 0.0, %v1439
        %v1441 = vpop.f32.mrb[0].mxu0
        %1442 = vmatprep.mubr.f32.mxu0 0.0
        %1443 = vmatmul.mubr.f32.gmra.mrb[0].mxu0 %v1347
        %v1444 = vpop.f32.mrb[0].mxu0
        %v1445 = vadd.f32 0.0, %v1444
        %v1446 = vpop.f32.mrb[0].mxu0
        %1447 = vmatprep.mubr.f32.mxu0 0.0
        %1448 = vmatmul.mubr.f32.gmra.mrb[0].mxu0 %v1350
        %v1449 = vpop.f32.mrb[0].mxu0
        %v1450 = vadd.f32 0.0, %v1449
        %v1451 = vpop.f32.mrb[0].mxu0
        %1452 = vmatprep.mubr.f32.mxu0 0.0
        %1453 = vmatmul.mubr.f32.gmra.mrb[0].mxu0 %v1353
        %v1454 = vpop.f32.mrb[0].mxu0
        %v1455 = vadd.f32 0.0, %v1454
        %v1456 = vpop.f32.mrb[0].mxu0
        %1457 = vmatprep.mubr.f32.mxu0 0.0
        %1458 = vmatmul.mubr.f32.gmra.mrb[0].mxu0 %v1356
        %v1459 = vpop.f32.mrb[0].mxu0
        %v1460 = vadd.f32 0.0, %v1459
        %v1461 = vpop.f32.mrb[0].mxu0
        %1462 = vdwg.mxu0
        %s1463 = scalar_lea.vmem %s2, 12
        %v1464 = vld [vmem:[%s1463] sm:$0xf]
        %v1466 = vsel %vm444, %v1425, 0
        %v1469 = vsel %vm444, %v1430, 0
        %v1472 = vsel %vm444, %v1435, 0
        %v1475 = vsel %vm444, %v1440, 0
        %v1478 = vsel %vm444, %v1445, 0
        %v1481 = vsel %vm444, %v1450, 0
        %v1484 = vsel %vm444, %v1455, 0
        %v1487 = vsel %vm444, %v1460, 0
        %v1490 = vsel %vm804, %v1464, 0
        %1492 = vmatprep.subr.mxu0 0.0
        %1493 = vmatpush1.msra.mxu0 %v1490
        %1494 = vmatprep.subr.mxu0 0.0
        %1495 = vmatpush1.msra.mxu0 0.0
        %1496 = vmatprep.subr.mxu0 0.0
        %1497 = vmatpush1.msra.mxu0 0.0
        %1498 = vmatprep.subr.mxu0 0.0
        %1499 = vmatpush1.msra.mxu0 0.0
        %1500 = vmatprep.subr.mxu0 0.0
        %1501 = vmatpush1.msra.mxu0 0.0
        %1502 = vmatprep.subr.mxu0 0.0
        %1503 = vmatpush1.msra.mxu0 0.0
        %1504 = vmatprep.subr.mxu0 0.0
        %1505 = vmatpush1.msra.mxu0 0.0
        %1506 = vmatprep.subr.mxu0 0.0
        %1507 = vmatpush1.msra.mxu0 0.0
        %1508 = vmatprep.subr.mxu0 0.0
        %1509 = vmatpush1.msra.mxu0 0.0
        %1510 = vmatprep.subr.mxu0 0.0
        %1511 = vmatpush1.msra.mxu0 0.0
        %1512 = vmatprep.subr.mxu0 0.0
        %1513 = vmatpush1.msra.mxu0 0.0
        %1514 = vmatprep.subr.mxu0 0.0
        %1515 = vmatpush1.msra.mxu0 0.0
        %1516 = vmatprep.subr.mxu0 0.0
        %1517 = vmatpush1.msra.mxu0 0.0
        %1518 = vmatprep.subr.mxu0 0.0
        %1519 = vmatpush1.msra.mxu0 0.0
        %1520 = vmatprep.subr.mxu0 0.0
        %1521 = vmatpush1.msra.mxu0 0.0
        %1522 = vmatprep.subr.mxu0 0.0
        %1523 = vmatpush1.msra.mxu0 0.0
        %1524 = vmatprep.subr.mxu0 0.0
        %1525 = vmatpush1.msra.mxu0 0.0
        %1526 = vmatprep.subr.mxu0 0.0
        %1527 = vmatpush1.msra.mxu0 0.0
        %1528 = vmatprep.subr.mxu0 0.0
        %1529 = vmatpush1.msra.mxu0 0.0
        %1530 = vmatprep.subr.mxu0 0.0
        %1531 = vmatpush1.msra.mxu0 0.0
        %1532 = vmatprep.subr.mxu0 0.0
        %1533 = vmatpush1.msra.mxu0 0.0
        %1534 = vmatprep.subr.mxu0 0.0
        %1535 = vmatpush1.msra.mxu0 0.0
        %1536 = vmatprep.subr.mxu0 0.0
        %1537 = vmatpush1.msra.mxu0 0.0
        %1538 = vmatprep.subr.mxu0 0.0
        %1539 = vmatpush1.msra.mxu0 0.0
        %1540 = vmatprep.subr.mxu0 0.0
        %1541 = vmatpush1.msra.mxu0 0.0
        %1542 = vmatprep.subr.mxu0 0.0
        %1543 = vmatpush1.msra.mxu0 0.0
        %1544 = vmatprep.subr.mxu0 0.0
        %1545 = vmatpush1.msra.mxu0 0.0
        %1546 = vmatprep.subr.mxu0 0.0
        %1547 = vmatpush1.msra.mxu0 0.0
        %1548 = vmatprep.subr.mxu0 0.0
        %1549 = vmatpush1.msra.mxu0 0.0
        %1550 = vmatprep.subr.mxu0 0.0
        %1551 = vmatpush1.msra.mxu0 0.0
        %1552 = vmatprep.subr.mxu0 0.0
        %1553 = vmatpush1.msra.mxu0 0.0
        %1554 = vmatprep.subr.mxu0 0.0
        %1555 = vmatpush1.msra.mxu0 0.0
        %1556 = vmatprep.mubr.f32.mxu0 0.0
        %1557 = vmatmul.mubr.f32.gmra.mrb[0].mxu0 %v1466
        %v1558 = vpop.f32.mrb[0].mxu0
        %v1559 = vadd.f32 0.0, %v1558
        %v1560 = vpop.f32.mrb[0].mxu0
        %1561 = vmatprep.mubr.f32.mxu0 0.0
        %1562 = vmatmul.mubr.f32.gmra.mrb[0].mxu0 %v1469
        %v1563 = vpop.f32.mrb[0].mxu0
        %v1564 = vadd.f32 0.0, %v1563
        %v1565 = vpop.f32.mrb[0].mxu0
        %1566 = vmatprep.mubr.f32.mxu0 0.0
        %1567 = vmatmul.mubr.f32.gmra.mrb[0].mxu0 %v1472
        %v1568 = vpop.f32.mrb[0].mxu0
        %v1569 = vadd.f32 0.0, %v1568
        %v1570 = vpop.f32.mrb[0].mxu0
        %1571 = vmatprep.mubr.f32.mxu0 0.0
        %1572 = vmatmul.mubr.f32.gmra.mrb[0].mxu0 %v1475
        %v1573 = vpop.f32.mrb[0].mxu0
        %v1574 = vadd.f32 0.0, %v1573
        %v1575 = vpop.f32.mrb[0].mxu0
        %1576 = vmatprep.mubr.f32.mxu0 0.0
        %1577 = vmatmul.mubr.f32.gmra.mrb[0].mxu0 %v1478
        %v1578 = vpop.f32.mrb[0].mxu0
        %v1579 = vadd.f32 0.0, %v1578
        %v1580 = vpop.f32.mrb[0].mxu0
        %1581 = vmatprep.mubr.f32.mxu0 0.0
        %1582 = vmatmul.mubr.f32.gmra.mrb[0].mxu0 %v1481
        %v1583 = vpop.f32.mrb[0].mxu0
        %v1584 = vadd.f32 0.0, %v1583
        %v1585 = vpop.f32.mrb[0].mxu0
        %1586 = vmatprep.mubr.f32.mxu0 0.0
        %1587 = vmatmul.mubr.f32.gmra.mrb[0].mxu0 %v1484
        %v1588 = vpop.f32.mrb[0].mxu0
        %v1589 = vadd.f32 0.0, %v1588
        %v1590 = vpop.f32.mrb[0].mxu0
        %1591 = vmatprep.mubr.f32.mxu0 0.0
        %1592 = vmatmul.mubr.f32.gmra.mrb[0].mxu0 %v1487
        %v1593 = vpop.f32.mrb[0].mxu0
        %v1594 = vadd.f32 0.0, %v1593
        %v1595 = vpop.f32.mrb[0].mxu0
        %1596 = vdwg.mxu0
        %v1597 = vadd.f32 %v1317, %v1559
        %v1598 = vadd.f32 %v1318, %v1564
        %v1599 = vadd.f32 %v1319, %v1569
        %v1600 = vadd.f32 %v1320, %v1574
        %v1601 = vadd.f32 %v1321, %v1579
        %v1602 = vadd.f32 %v1322, %v1584
        %v1603 = vadd.f32 %v1323, %v1589
        %v1604 = vadd.f32 %v1324, %v1594
        %s1605 = scalar_lea.vmem %s1, 256
        %v1606 = vld [vmem:[%s1605] sm:$0xff]
        %v1607 = vld [vmem:[%s1605 + $0x8] sm:$0xff]
        %v1608 = vld [vmem:[%s1605 + $0x10] sm:$0xff]
        %v1609 = vld [vmem:[%s1605 + $0x18] sm:$0xff]
        %v1610 = vld [vmem:[%s1605 + $0x20] sm:$0xff]
        %v1611 = vld [vmem:[%s1605 + $0x28] sm:$0xff]
        %v1612 = vld [vmem:[%s1605 + $0x30] sm:$0xff]
        %v1613 = vld [vmem:[%s1605 + $0x38] sm:$0xff]
        %v1615 = vsel %vm509, %v1606, 0
        %v1618 = vsel %vm509, %v1607, 0
        %v1621 = vsel %vm509, %v1608, 0
        %v1624 = vsel %vm509, %v1609, 0
        %v1627 = vsel %vm509, %v1610, 0
        %v1630 = vsel %vm509, %v1611, 0
        %v1633 = vsel %vm509, %v1612, 0
        %v1636 = vsel %vm509, %v1613, 0
        %1638 = vmatprep.subr.mxu0 0.0
        %1639 = vmatpush1.msra.mxu0 %v451
        %1640 = vmatprep.subr.mxu0 0.0
        %1641 = vmatpush1.msra.mxu0 %v458
        %1642 = vmatprep.subr.mxu0 0.0
        %1643 = vmatpush1.msra.mxu0 %v465
        %1644 = vmatprep.subr.mxu0 0.0
        %1645 = vmatpush1.msra.mxu0 %v472
        %1646 = vmatprep.subr.mxu0 0.0
        %1647 = vmatpush1.msra.mxu0 %v479
        %1648 = vmatprep.subr.mxu0 0.0
        %1649 = vmatpush1.msra.mxu0 %v486
        %1650 = vmatprep.subr.mxu0 0.0
        %1651 = vmatpush1.msra.mxu0 %v493
        %1652 = vmatprep.subr.mxu0 0.0
        %1653 = vmatpush1.msra.mxu0 %v500
        %1654 = vmatprep.subr.mxu0 0.0
        %1655 = vmatpush1.msra.mxu0 0.0
        %1656 = vmatprep.subr.mxu0 0.0
        %1657 = vmatpush1.msra.mxu0 0.0
        %1658 = vmatprep.subr.mxu0 0.0
        %1659 = vmatpush1.msra.mxu0 0.0
        %1660 = vmatprep.subr.mxu0 0.0
        %1661 = vmatpush1.msra.mxu0 0.0
        %1662 = vmatprep.subr.mxu0 0.0
        %1663 = vmatpush1.msra.mxu0 0.0
        %1664 = vmatprep.subr.mxu0 0.0
        %1665 = vmatpush1.msra.mxu0 0.0
        %1666 = vmatprep.subr.mxu0 0.0
        %1667 = vmatpush1.msra.mxu0 0.0
        %1668 = vmatprep.subr.mxu0 0.0
        %1669 = vmatpush1.msra.mxu0 0.0
        %1670 = vmatprep.subr.mxu0 0.0
        %1671 = vmatpush1.msra.mxu0 0.0
        %1672 = vmatprep.subr.mxu0 0.0
        %1673 = vmatpush1.msra.mxu0 0.0
        %1674 = vmatprep.subr.mxu0 0.0
        %1675 = vmatpush1.msra.mxu0 0.0
        %1676 = vmatprep.subr.mxu0 0.0
        %1677 = vmatpush1.msra.mxu0 0.0
        %1678 = vmatprep.subr.mxu0 0.0
        %1679 = vmatpush1.msra.mxu0 0.0
        %1680 = vmatprep.subr.mxu0 0.0
        %1681 = vmatpush1.msra.mxu0 0.0
        %1682 = vmatprep.subr.mxu0 0.0
        %1683 = vmatpush1.msra.mxu0 0.0
        %1684 = vmatprep.subr.mxu0 0.0
        %1685 = vmatpush1.msra.mxu0 0.0
        %1686 = vmatprep.subr.mxu0 0.0
        %1687 = vmatpush1.msra.mxu0 0.0
        %1688 = vmatprep.subr.mxu0 0.0
        %1689 = vmatpush1.msra.mxu0 0.0
        %1690 = vmatprep.subr.mxu0 0.0
        %1691 = vmatpush1.msra.mxu0 0.0
        %1692 = vmatprep.subr.mxu0 0.0
        %1693 = vmatpush1.msra.mxu0 0.0
        %1694 = vmatprep.subr.mxu0 0.0
        %1695 = vmatpush1.msra.mxu0 0.0
        %1696 = vmatprep.subr.mxu0 0.0
        %1697 = vmatpush1.msra.mxu0 0.0
        %1698 = vmatprep.subr.mxu0 0.0
        %1699 = vmatpush1.msra.mxu0 0.0
        %1700 = vmatprep.subr.mxu0 0.0
        %1701 = vmatpush1.msra.mxu0 0.0
        %1702 = vmatprep.mubr.f32.mxu0 0.0
        %1703 = vmatmul.mubr.f32.gmra.mrb[0].mxu0 %v1615
        %v1704 = vpop.f32.mrb[0].mxu0
        %v1705 = vadd.f32 0.0, %v1704
        %v1706 = vpop.f32.mrb[0].mxu0
        %1707 = vmatprep.mubr.f32.mxu0 0.0
        %1708 = vmatmul.mubr.f32.gmra.mrb[0].mxu0 %v1618
        %v1709 = vpop.f32.mrb[0].mxu0
        %v1710 = vadd.f32 0.0, %v1709
        %v1711 = vpop.f32.mrb[0].mxu0
        %1712 = vmatprep.mubr.f32.mxu0 0.0
        %1713 = vmatmul.mubr.f32.gmra.mrb[0].mxu0 %v1621
        %v1714 = vpop.f32.mrb[0].mxu0
        %v1715 = vadd.f32 0.0, %v1714
        %v1716 = vpop.f32.mrb[0].mxu0
        %1717 = vmatprep.mubr.f32.mxu0 0.0
        %1718 = vmatmul.mubr.f32.gmra.mrb[0].mxu0 %v1624
        %v1719 = vpop.f32.mrb[0].mxu0
        %v1720 = vadd.f32 0.0, %v1719
        %v1721 = vpop.f32.mrb[0].mxu0
        %1722 = vmatprep.mubr.f32.mxu0 0.0
        %1723 = vmatmul.mubr.f32.gmra.mrb[0].mxu0 %v1627
        %v1724 = vpop.f32.mrb[0].mxu0
        %v1725 = vadd.f32 0.0, %v1724
        %v1726 = vpop.f32.mrb[0].mxu0
        %1727 = vmatprep.mubr.f32.mxu0 0.0
        %1728 = vmatmul.mubr.f32.gmra.mrb[0].mxu0 %v1630
        %v1729 = vpop.f32.mrb[0].mxu0
        %v1730 = vadd.f32 0.0, %v1729
        %v1731 = vpop.f32.mrb[0].mxu0
        %1732 = vmatprep.mubr.f32.mxu0 0.0
        %1733 = vmatmul.mubr.f32.gmra.mrb[0].mxu0 %v1633
        %v1734 = vpop.f32.mrb[0].mxu0
        %v1735 = vadd.f32 0.0, %v1734
        %v1736 = vpop.f32.mrb[0].mxu0
        %1737 = vmatprep.mubr.f32.mxu0 0.0
        %1738 = vmatmul.mubr.f32.gmra.mrb[0].mxu0 %v1636
        %v1739 = vpop.f32.mrb[0].mxu0
        %v1740 = vadd.f32 0.0, %v1739
        %v1741 = vpop.f32.mrb[0].mxu0
        %1742 = vdwg.mxu0
        %s1743 = scalar_lea.vmem %s2, 16
        %v1744 = vld [vmem:[%s1743] sm:$0xf]
        %v1746 = vsel %vm444, %v1705, 0
        %v1749 = vsel %vm444, %v1710, 0
        %v1752 = vsel %vm444, %v1715, 0
        %v1755 = vsel %vm444, %v1720, 0
        %v1758 = vsel %vm444, %v1725, 0
        %v1761 = vsel %vm444, %v1730, 0
        %v1764 = vsel %vm444, %v1735, 0
        %v1767 = vsel %vm444, %v1740, 0
        %v1770 = vsel %vm804, %v1744, 0
        %1772 = vmatprep.subr.mxu0 0.0
        %1773 = vmatpush1.msra.mxu0 %v1770
        %1774 = vmatprep.subr.mxu0 0.0
        %1775 = vmatpush1.msra.mxu0 0.0
        %1776 = vmatprep.subr.mxu0 0.0
        %1777 = vmatpush1.msra.mxu0 0.0
        %1778 = vmatprep.subr.mxu0 0.0
        %1779 = vmatpush1.msra.mxu0 0.0
        %1780 = vmatprep.subr.mxu0 0.0
        %1781 = vmatpush1.msra.mxu0 0.0
        %1782 = vmatprep.subr.mxu0 0.0
        %1783 = vmatpush1.msra.mxu0 0.0
        %1784 = vmatprep.subr.mxu0 0.0
        %1785 = vmatpush1.msra.mxu0 0.0
        %1786 = vmatprep.subr.mxu0 0.0
        %1787 = vmatpush1.msra.mxu0 0.0
        %1788 = vmatprep.subr.mxu0 0.0
        %1789 = vmatpush1.msra.mxu0 0.0
        %1790 = vmatprep.subr.mxu0 0.0
        %1791 = vmatpush1.msra.mxu0 0.0
        %1792 = vmatprep.subr.mxu0 0.0
        %1793 = vmatpush1.msra.mxu0 0.0
        %1794 = vmatprep.subr.mxu0 0.0
        %1795 = vmatpush1.msra.mxu0 0.0
        %1796 = vmatprep.subr.mxu0 0.0
        %1797 = vmatpush1.msra.mxu0 0.0
        %1798 = vmatprep.subr.mxu0 0.0
        %1799 = vmatpush1.msra.mxu0 0.0
        %1800 = vmatprep.subr.mxu0 0.0
        %1801 = vmatpush1.msra.mxu0 0.0
        %1802 = vmatprep.subr.mxu0 0.0
        %1803 = vmatpush1.msra.mxu0 0.0
        %1804 = vmatprep.subr.mxu0 0.0
        %1805 = vmatpush1.msra.mxu0 0.0
        %1806 = vmatprep.subr.mxu0 0.0
        %1807 = vmatpush1.msra.mxu0 0.0
        %1808 = vmatprep.subr.mxu0 0.0
        %1809 = vmatpush1.msra.mxu0 0.0
        %1810 = vmatprep.subr.mxu0 0.0
        %1811 = vmatpush1.msra.mxu0 0.0
        %1812 = vmatprep.subr.mxu0 0.0
        %1813 = vmatpush1.msra.mxu0 0.0
        %1814 = vmatprep.subr.mxu0 0.0
        %1815 = vmatpush1.msra.mxu0 0.0
        %1816 = vmatprep.subr.mxu0 0.0
        %1817 = vmatpush1.msra.mxu0 0.0
        %1818 = vmatprep.subr.mxu0 0.0
        %1819 = vmatpush1.msra.mxu0 0.0
        %1820 = vmatprep.subr.mxu0 0.0
        %1821 = vmatpush1.msra.mxu0 0.0
        %1822 = vmatprep.subr.mxu0 0.0
        %1823 = vmatpush1.msra.mxu0 0.0
        %1824 = vmatprep.subr.mxu0 0.0
        %1825 = vmatpush1.msra.mxu0 0.0
        %1826 = vmatprep.subr.mxu0 0.0
        %1827 = vmatpush1.msra.mxu0 0.0
        %1828 = vmatprep.subr.mxu0 0.0
        %1829 = vmatpush1.msra.mxu0 0.0
        %1830 = vmatprep.subr.mxu0 0.0
        %1831 = vmatpush1.msra.mxu0 0.0
        %1832 = vmatprep.subr.mxu0 0.0
        %1833 = vmatpush1.msra.mxu0 0.0
        %1834 = vmatprep.subr.mxu0 0.0
        %1835 = vmatpush1.msra.mxu0 0.0
        %1836 = vmatprep.mubr.f32.mxu0 0.0
        %1837 = vmatmul.mubr.f32.gmra.mrb[0].mxu0 %v1746
        %v1838 = vpop.f32.mrb[0].mxu0
        %v1839 = vadd.f32 0.0, %v1838
        %v1840 = vpop.f32.mrb[0].mxu0
        %1841 = vmatprep.mubr.f32.mxu0 0.0
        %1842 = vmatmul.mubr.f32.gmra.mrb[0].mxu0 %v1749
        %v1843 = vpop.f32.mrb[0].mxu0
        %v1844 = vadd.f32 0.0, %v1843
        %v1845 = vpop.f32.mrb[0].mxu0
        %1846 = vmatprep.mubr.f32.mxu0 0.0
        %1847 = vmatmul.mubr.f32.gmra.mrb[0].mxu0 %v1752
        %v1848 = vpop.f32.mrb[0].mxu0
        %v1849 = vadd.f32 0.0, %v1848
        %v1850 = vpop.f32.mrb[0].mxu0
        %1851 = vmatprep.mubr.f32.mxu0 0.0
        %1852 = vmatmul.mubr.f32.gmra.mrb[0].mxu0 %v1755
        %v1853 = vpop.f32.mrb[0].mxu0
        %v1854 = vadd.f32 0.0, %v1853
        %v1855 = vpop.f32.mrb[0].mxu0
        %1856 = vmatprep.mubr.f32.mxu0 0.0
        %1857 = vmatmul.mubr.f32.gmra.mrb[0].mxu0 %v1758
        %v1858 = vpop.f32.mrb[0].mxu0
        %v1859 = vadd.f32 0.0, %v1858
        %v1860 = vpop.f32.mrb[0].mxu0
        %1861 = vmatprep.mubr.f32.mxu0 0.0
        %1862 = vmatmul.mubr.f32.gmra.mrb[0].mxu0 %v1761
        %v1863 = vpop.f32.mrb[0].mxu0
        %v1864 = vadd.f32 0.0, %v1863
        %v1865 = vpop.f32.mrb[0].mxu0
        %1866 = vmatprep.mubr.f32.mxu0 0.0
        %1867 = vmatmul.mubr.f32.gmra.mrb[0].mxu0 %v1764
        %v1868 = vpop.f32.mrb[0].mxu0
        %v1869 = vadd.f32 0.0, %v1868
        %v1870 = vpop.f32.mrb[0].mxu0
        %1871 = vmatprep.mubr.f32.mxu0 0.0
        %1872 = vmatmul.mubr.f32.gmra.mrb[0].mxu0 %v1767
        %v1873 = vpop.f32.mrb[0].mxu0
        %v1874 = vadd.f32 0.0, %v1873
        %v1875 = vpop.f32.mrb[0].mxu0
        %1876 = vdwg.mxu0
        %v1877 = vadd.f32 %v1597, %v1839
        %v1878 = vadd.f32 %v1598, %v1844
        %v1879 = vadd.f32 %v1599, %v1849
        %v1880 = vadd.f32 %v1600, %v1854
        %v1881 = vadd.f32 %v1601, %v1859
        %v1882 = vadd.f32 %v1602, %v1864
        %v1883 = vadd.f32 %v1603, %v1869
        %v1884 = vadd.f32 %v1604, %v1874
        %s1885 = scalar_lea.vmem %s1, 320
        %v1886 = vld [vmem:[%s1885] sm:$0xff]
        %v1887 = vld [vmem:[%s1885 + $0x8] sm:$0xff]
        %v1888 = vld [vmem:[%s1885 + $0x10] sm:$0xff]
        %v1889 = vld [vmem:[%s1885 + $0x18] sm:$0xff]
        %v1890 = vld [vmem:[%s1885 + $0x20] sm:$0xff]
        %v1891 = vld [vmem:[%s1885 + $0x28] sm:$0xff]
        %v1892 = vld [vmem:[%s1885 + $0x30] sm:$0xff]
        %v1893 = vld [vmem:[%s1885 + $0x38] sm:$0xff]
        %v1895 = vsel %vm509, %v1886, 0
        %v1898 = vsel %vm509, %v1887, 0
        %v1901 = vsel %vm509, %v1888, 0
        %v1904 = vsel %vm509, %v1889, 0
        %v1907 = vsel %vm509, %v1890, 0
        %v1910 = vsel %vm509, %v1891, 0
        %v1913 = vsel %vm509, %v1892, 0
        %v1916 = vsel %vm509, %v1893, 0
        %1918 = vmatprep.subr.mxu0 0.0
        %1919 = vmatpush1.msra.mxu0 %v451
        %1920 = vmatprep.subr.mxu0 0.0
        %1921 = vmatpush1.msra.mxu0 %v458
        %1922 = vmatprep.subr.mxu0 0.0
        %1923 = vmatpush1.msra.mxu0 %v465
        %1924 = vmatprep.subr.mxu0 0.0
        %1925 = vmatpush1.msra.mxu0 %v472
        %1926 = vmatprep.subr.mxu0 0.0
        %1927 = vmatpush1.msra.mxu0 %v479
        %1928 = vmatprep.subr.mxu0 0.0
        %1929 = vmatpush1.msra.mxu0 %v486
        %1930 = vmatprep.subr.mxu0 0.0
        %1931 = vmatpush1.msra.mxu0 %v493
        %1932 = vmatprep.subr.mxu0 0.0
        %1933 = vmatpush1.msra.mxu0 %v500
        %1934 = vmatprep.subr.mxu0 0.0
        %1935 = vmatpush1.msra.mxu0 0.0
        %1936 = vmatprep.subr.mxu0 0.0
        %1937 = vmatpush1.msra.mxu0 0.0
        %1938 = vmatprep.subr.mxu0 0.0
        %1939 = vmatpush1.msra.mxu0 0.0
        %1940 = vmatprep.subr.mxu0 0.0
        %1941 = vmatpush1.msra.mxu0 0.0
        %1942 = vmatprep.subr.mxu0 0.0
        %1943 = vmatpush1.msra.mxu0 0.0
        %1944 = vmatprep.subr.mxu0 0.0
        %1945 = vmatpush1.msra.mxu0 0.0
        %1946 = vmatprep.subr.mxu0 0.0
        %1947 = vmatpush1.msra.mxu0 0.0
        %1948 = vmatprep.subr.mxu0 0.0
        %1949 = vmatpush1.msra.mxu0 0.0
        %1950 = vmatprep.subr.mxu0 0.0
        %1951 = vmatpush1.msra.mxu0 0.0
        %1952 = vmatprep.subr.mxu0 0.0
        %1953 = vmatpush1.msra.mxu0 0.0
        %1954 = vmatprep.subr.mxu0 0.0
        %1955 = vmatpush1.msra.mxu0 0.0
        %1956 = vmatprep.subr.mxu0 0.0
        %1957 = vmatpush1.msra.mxu0 0.0
        %1958 = vmatprep.subr.mxu0 0.0
        %1959 = vmatpush1.msra.mxu0 0.0
        %1960 = vmatprep.subr.mxu0 0.0
        %1961 = vmatpush1.msra.mxu0 0.0
        %1962 = vmatprep.subr.mxu0 0.0
        %1963 = vmatpush1.msra.mxu0 0.0
        %1964 = vmatprep.subr.mxu0 0.0
        %1965 = vmatpush1.msra.mxu0 0.0
        %1966 = vmatprep.subr.mxu0 0.0
        %1967 = vmatpush1.msra.mxu0 0.0
        %1968 = vmatprep.subr.mxu0 0.0
        %1969 = vmatpush1.msra.mxu0 0.0
        %1970 = vmatprep.subr.mxu0 0.0
        %1971 = vmatpush1.msra.mxu0 0.0
        %1972 = vmatprep.subr.mxu0 0.0
        %1973 = vmatpush1.msra.mxu0 0.0
        %1974 = vmatprep.subr.mxu0 0.0
        %1975 = vmatpush1.msra.mxu0 0.0
        %1976 = vmatprep.subr.mxu0 0.0
        %1977 = vmatpush1.msra.mxu0 0.0
        %1978 = vmatprep.subr.mxu0 0.0
        %1979 = vmatpush1.msra.mxu0 0.0
        %1980 = vmatprep.subr.mxu0 0.0
        %1981 = vmatpush1.msra.mxu0 0.0
        %1982 = vmatprep.mubr.f32.mxu0 0.0
        %1983 = vmatmul.mubr.f32.gmra.mrb[0].mxu0 %v1895
        %v1984 = vpop.f32.mrb[0].mxu0
        %v1985 = vadd.f32 0.0, %v1984
        %v1986 = vpop.f32.mrb[0].mxu0
        %1987 = vmatprep.mubr.f32.mxu0 0.0
        %1988 = vmatmul.mubr.f32.gmra.mrb[0].mxu0 %v1898
        %v1989 = vpop.f32.mrb[0].mxu0
        %v1990 = vadd.f32 0.0, %v1989
        %v1991 = vpop.f32.mrb[0].mxu0
        %1992 = vmatprep.mubr.f32.mxu0 0.0
        %1993 = vmatmul.mubr.f32.gmra.mrb[0].mxu0 %v1901
        %v1994 = vpop.f32.mrb[0].mxu0
        %v1995 = vadd.f32 0.0, %v1994
        %v1996 = vpop.f32.mrb[0].mxu0
        %1997 = vmatprep.mubr.f32.mxu0 0.0
        %1998 = vmatmul.mubr.f32.gmra.mrb[0].mxu0 %v1904
        %v1999 = vpop.f32.mrb[0].mxu0
        %v2000 = vadd.f32 0.0, %v1999
        %v2001 = vpop.f32.mrb[0].mxu0
        %2002 = vmatprep.mubr.f32.mxu0 0.0
        %2003 = vmatmul.mubr.f32.gmra.mrb[0].mxu0 %v1907
        %v2004 = vpop.f32.mrb[0].mxu0
        %v2005 = vadd.f32 0.0, %v2004
        %v2006 = vpop.f32.mrb[0].mxu0
        %2007 = vmatprep.mubr.f32.mxu0 0.0
        %2008 = vmatmul.mubr.f32.gmra.mrb[0].mxu0 %v1910
        %v2009 = vpop.f32.mrb[0].mxu0
        %v2010 = vadd.f32 0.0, %v2009
        %v2011 = vpop.f32.mrb[0].mxu0
        %2012 = vmatprep.mubr.f32.mxu0 0.0
        %2013 = vmatmul.mubr.f32.gmra.mrb[0].mxu0 %v1913
        %v2014 = vpop.f32.mrb[0].mxu0
        %v2015 = vadd.f32 0.0, %v2014
        %v2016 = vpop.f32.mrb[0].mxu0
        %2017 = vmatprep.mubr.f32.mxu0 0.0
        %2018 = vmatmul.mubr.f32.gmra.mrb[0].mxu0 %v1916
        %v2019 = vpop.f32.mrb[0].mxu0
        %v2020 = vadd.f32 0.0, %v2019
        %v2021 = vpop.f32.mrb[0].mxu0
        %2022 = vdwg.mxu0
        %s2023 = scalar_lea.vmem %s2, 20
        %v2024 = vld [vmem:[%s2023] sm:$0xf]
        %v2026 = vsel %vm444, %v1985, 0
        %v2029 = vsel %vm444, %v1990, 0
        %v2032 = vsel %vm444, %v1995, 0
        %v2035 = vsel %vm444, %v2000, 0
        %v2038 = vsel %vm444, %v2005, 0
        %v2041 = vsel %vm444, %v2010, 0
        %v2044 = vsel %vm444, %v2015, 0
        %v2047 = vsel %vm444, %v2020, 0
        %v2050 = vsel %vm804, %v2024, 0
        %2052 = vmatprep.subr.mxu0 0.0
        %2053 = vmatpush1.msra.mxu0 %v2050
        %2054 = vmatprep.subr.mxu0 0.0
        %2055 = vmatpush1.msra.mxu0 0.0
        %2056 = vmatprep.subr.mxu0 0.0
        %2057 = vmatpush1.msra.mxu0 0.0
        %2058 = vmatprep.subr.mxu0 0.0
        %2059 = vmatpush1.msra.mxu0 0.0
        %2060 = vmatprep.subr.mxu0 0.0
        %2061 = vmatpush1.msra.mxu0 0.0
        %2062 = vmatprep.subr.mxu0 0.0
        %2063 = vmatpush1.msra.mxu0 0.0
        %2064 = vmatprep.subr.mxu0 0.0
        %2065 = vmatpush1.msra.mxu0 0.0
        %2066 = vmatprep.subr.mxu0 0.0
        %2067 = vmatpush1.msra.mxu0 0.0
        %2068 = vmatprep.subr.mxu0 0.0
        %2069 = vmatpush1.msra.mxu0 0.0
        %2070 = vmatprep.subr.mxu0 0.0
        %2071 = vmatpush1.msra.mxu0 0.0
        %2072 = vmatprep.subr.mxu0 0.0
        %2073 = vmatpush1.msra.mxu0 0.0
        %2074 = vmatprep.subr.mxu0 0.0
        %2075 = vmatpush1.msra.mxu0 0.0
        %2076 = vmatprep.subr.mxu0 0.0
        %2077 = vmatpush1.msra.mxu0 0.0
        %2078 = vmatprep.subr.mxu0 0.0
        %2079 = vmatpush1.msra.mxu0 0.0
        %2080 = vmatprep.subr.mxu0 0.0
        %2081 = vmatpush1.msra.mxu0 0.0
        %2082 = vmatprep.subr.mxu0 0.0
        %2083 = vmatpush1.msra.mxu0 0.0
        %2084 = vmatprep.subr.mxu0 0.0
        %2085 = vmatpush1.msra.mxu0 0.0
        %2086 = vmatprep.subr.mxu0 0.0
        %2087 = vmatpush1.msra.mxu0 0.0
        %2088 = vmatprep.subr.mxu0 0.0
        %2089 = vmatpush1.msra.mxu0 0.0
        %2090 = vmatprep.subr.mxu0 0.0
        %2091 = vmatpush1.msra.mxu0 0.0
        %2092 = vmatprep.subr.mxu0 0.0
        %2093 = vmatpush1.msra.mxu0 0.0
        %2094 = vmatprep.subr.mxu0 0.0
        %2095 = vmatpush1.msra.mxu0 0.0
        %2096 = vmatprep.subr.mxu0 0.0
        %2097 = vmatpush1.msra.mxu0 0.0
        %2098 = vmatprep.subr.mxu0 0.0
        %2099 = vmatpush1.msra.mxu0 0.0
        %2100 = vmatprep.subr.mxu0 0.0
        %2101 = vmatpush1.msra.mxu0 0.0
        %2102 = vmatprep.subr.mxu0 0.0
        %2103 = vmatpush1.msra.mxu0 0.0
        %2104 = vmatprep.subr.mxu0 0.0
        %2105 = vmatpush1.msra.mxu0 0.0
        %2106 = vmatprep.subr.mxu0 0.0
        %2107 = vmatpush1.msra.mxu0 0.0
        %2108 = vmatprep.subr.mxu0 0.0
        %2109 = vmatpush1.msra.mxu0 0.0
        %2110 = vmatprep.subr.mxu0 0.0
        %2111 = vmatpush1.msra.mxu0 0.0
        %2112 = vmatprep.subr.mxu0 0.0
        %2113 = vmatpush1.msra.mxu0 0.0
        %2114 = vmatprep.subr.mxu0 0.0
        %2115 = vmatpush1.msra.mxu0 0.0
        %2116 = vmatprep.mubr.f32.mxu0 0.0
        %2117 = vmatmul.mubr.f32.gmra.mrb[0].mxu0 %v2026
        %v2118 = vpop.f32.mrb[0].mxu0
        %v2119 = vadd.f32 0.0, %v2118
        %v2120 = vpop.f32.mrb[0].mxu0
        %2121 = vmatprep.mubr.f32.mxu0 0.0
        %2122 = vmatmul.mubr.f32.gmra.mrb[0].mxu0 %v2029
        %v2123 = vpop.f32.mrb[0].mxu0
        %v2124 = vadd.f32 0.0, %v2123
        %v2125 = vpop.f32.mrb[0].mxu0
        %2126 = vmatprep.mubr.f32.mxu0 0.0
        %2127 = vmatmul.mubr.f32.gmra.mrb[0].mxu0 %v2032
        %v2128 = vpop.f32.mrb[0].mxu0
        %v2129 = vadd.f32 0.0, %v2128
        %v2130 = vpop.f32.mrb[0].mxu0
        %2131 = vmatprep.mubr.f32.mxu0 0.0
        %2132 = vmatmul.mubr.f32.gmra.mrb[0].mxu0 %v2035
        %v2133 = vpop.f32.mrb[0].mxu0
        %v2134 = vadd.f32 0.0, %v2133
        %v2135 = vpop.f32.mrb[0].mxu0
        %2136 = vmatprep.mubr.f32.mxu0 0.0
        %2137 = vmatmul.mubr.f32.gmra.mrb[0].mxu0 %v2038
        %v2138 = vpop.f32.mrb[0].mxu0
        %v2139 = vadd.f32 0.0, %v2138
        %v2140 = vpop.f32.mrb[0].mxu0
        %2141 = vmatprep.mubr.f32.mxu0 0.0
        %2142 = vmatmul.mubr.f32.gmra.mrb[0].mxu0 %v2041
        %v2143 = vpop.f32.mrb[0].mxu0
        %v2144 = vadd.f32 0.0, %v2143
        %v2145 = vpop.f32.mrb[0].mxu0
        %2146 = vmatprep.mubr.f32.mxu0 0.0
        %2147 = vmatmul.mubr.f32.gmra.mrb[0].mxu0 %v2044
        %v2148 = vpop.f32.mrb[0].mxu0
        %v2149 = vadd.f32 0.0, %v2148
        %v2150 = vpop.f32.mrb[0].mxu0
        %2151 = vmatprep.mubr.f32.mxu0 0.0
        %2152 = vmatmul.mubr.f32.gmra.mrb[0].mxu0 %v2047
        %v2153 = vpop.f32.mrb[0].mxu0
        %v2154 = vadd.f32 0.0, %v2153
        %v2155 = vpop.f32.mrb[0].mxu0
        %2156 = vdwg.mxu0
        %v2157 = vadd.f32 %v1877, %v2119
        %v2158 = vadd.f32 %v1878, %v2124
        %v2159 = vadd.f32 %v1879, %v2129
        %v2160 = vadd.f32 %v1880, %v2134
        %v2161 = vadd.f32 %v1881, %v2139
        %v2162 = vadd.f32 %v1882, %v2144
        %v2163 = vadd.f32 %v1883, %v2149
        %v2164 = vadd.f32 %v1884, %v2154
        %s2165 = scalar_lea.vmem %s1, 384
        %v2166 = vld [vmem:[%s2165] sm:$0xff]
        %v2167 = vld [vmem:[%s2165 + $0x8] sm:$0xff]
        %v2168 = vld [vmem:[%s2165 + $0x10] sm:$0xff]
        %v2169 = vld [vmem:[%s2165 + $0x18] sm:$0xff]
        %v2170 = vld [vmem:[%s2165 + $0x20] sm:$0xff]
        %v2171 = vld [vmem:[%s2165 + $0x28] sm:$0xff]
        %v2172 = vld [vmem:[%s2165 + $0x30] sm:$0xff]
        %v2173 = vld [vmem:[%s2165 + $0x38] sm:$0xff]
        %v2175 = vsel %vm509, %v2166, 0
        %v2178 = vsel %vm509, %v2167, 0
        %v2181 = vsel %vm509, %v2168, 0
        %v2184 = vsel %vm509, %v2169, 0
        %v2187 = vsel %vm509, %v2170, 0
        %v2190 = vsel %vm509, %v2171, 0
        %v2193 = vsel %vm509, %v2172, 0
        %v2196 = vsel %vm509, %v2173, 0
        %2198 = vmatprep.subr.mxu0 0.0
        %2199 = vmatpush1.msra.mxu0 %v451
        %2200 = vmatprep.subr.mxu0 0.0
        %2201 = vmatpush1.msra.mxu0 %v458
        %2202 = vmatprep.subr.mxu0 0.0
        %2203 = vmatpush1.msra.mxu0 %v465
        %2204 = vmatprep.subr.mxu0 0.0
        %2205 = vmatpush1.msra.mxu0 %v472
        %2206 = vmatprep.subr.mxu0 0.0
        %2207 = vmatpush1.msra.mxu0 %v479
        %2208 = vmatprep.subr.mxu0 0.0
        %2209 = vmatpush1.msra.mxu0 %v486
        %2210 = vmatprep.subr.mxu0 0.0
        %2211 = vmatpush1.msra.mxu0 %v493
        %2212 = vmatprep.subr.mxu0 0.0
        %2213 = vmatpush1.msra.mxu0 %v500
        %2214 = vmatprep.subr.mxu0 0.0
        %2215 = vmatpush1.msra.mxu0 0.0
        %2216 = vmatprep.subr.mxu0 0.0
        %2217 = vmatpush1.msra.mxu0 0.0
        %2218 = vmatprep.subr.mxu0 0.0
        %2219 = vmatpush1.msra.mxu0 0.0
        %2220 = vmatprep.subr.mxu0 0.0
        %2221 = vmatpush1.msra.mxu0 0.0
        %2222 = vmatprep.subr.mxu0 0.0
        %2223 = vmatpush1.msra.mxu0 0.0
        %2224 = vmatprep.subr.mxu0 0.0
        %2225 = vmatpush1.msra.mxu0 0.0
        %2226 = vmatprep.subr.mxu0 0.0
        %2227 = vmatpush1.msra.mxu0 0.0
        %2228 = vmatprep.subr.mxu0 0.0
        %2229 = vmatpush1.msra.mxu0 0.0
        %2230 = vmatprep.subr.mxu0 0.0
        %2231 = vmatpush1.msra.mxu0 0.0
        %2232 = vmatprep.subr.mxu0 0.0
        %2233 = vmatpush1.msra.mxu0 0.0
        %2234 = vmatprep.subr.mxu0 0.0
        %2235 = vmatpush1.msra.mxu0 0.0
        %2236 = vmatprep.subr.mxu0 0.0
        %2237 = vmatpush1.msra.mxu0 0.0
        %2238 = vmatprep.subr.mxu0 0.0
        %2239 = vmatpush1.msra.mxu0 0.0
        %2240 = vmatprep.subr.mxu0 0.0
        %2241 = vmatpush1.msra.mxu0 0.0
        %2242 = vmatprep.subr.mxu0 0.0
        %2243 = vmatpush1.msra.mxu0 0.0
        %2244 = vmatprep.subr.mxu0 0.0
        %2245 = vmatpush1.msra.mxu0 0.0
        %2246 = vmatprep.subr.mxu0 0.0
        %2247 = vmatpush1.msra.mxu0 0.0
        %2248 = vmatprep.subr.mxu0 0.0
        %2249 = vmatpush1.msra.mxu0 0.0
        %2250 = vmatprep.subr.mxu0 0.0
        %2251 = vmatpush1.msra.mxu0 0.0
        %2252 = vmatprep.subr.mxu0 0.0
        %2253 = vmatpush1.msra.mxu0 0.0
        %2254 = vmatprep.subr.mxu0 0.0
        %2255 = vmatpush1.msra.mxu0 0.0
        %2256 = vmatprep.subr.mxu0 0.0
        %2257 = vmatpush1.msra.mxu0 0.0
        %2258 = vmatprep.subr.mxu0 0.0
        %2259 = vmatpush1.msra.mxu0 0.0
        %2260 = vmatprep.subr.mxu0 0.0
        %2261 = vmatpush1.msra.mxu0 0.0
        %2262 = vmatprep.mubr.f32.mxu0 0.0
        %2263 = vmatmul.mubr.f32.gmra.mrb[0].mxu0 %v2175
        %v2264 = vpop.f32.mrb[0].mxu0
        %v2265 = vadd.f32 0.0, %v2264
        %v2266 = vpop.f32.mrb[0].mxu0
        %2267 = vmatprep.mubr.f32.mxu0 0.0
        %2268 = vmatmul.mubr.f32.gmra.mrb[0].mxu0 %v2178
        %v2269 = vpop.f32.mrb[0].mxu0
        %v2270 = vadd.f32 0.0, %v2269
        %v2271 = vpop.f32.mrb[0].mxu0
        %2272 = vmatprep.mubr.f32.mxu0 0.0
        %2273 = vmatmul.mubr.f32.gmra.mrb[0].mxu0 %v2181
        %v2274 = vpop.f32.mrb[0].mxu0
        %v2275 = vadd.f32 0.0, %v2274
        %v2276 = vpop.f32.mrb[0].mxu0
        %2277 = vmatprep.mubr.f32.mxu0 0.0
        %2278 = vmatmul.mubr.f32.gmra.mrb[0].mxu0 %v2184
        %v2279 = vpop.f32.mrb[0].mxu0
        %v2280 = vadd.f32 0.0, %v2279
        %v2281 = vpop.f32.mrb[0].mxu0
        %2282 = vmatprep.mubr.f32.mxu0 0.0
        %2283 = vmatmul.mubr.f32.gmra.mrb[0].mxu0 %v2187
        %v2284 = vpop.f32.mrb[0].mxu0
        %v2285 = vadd.f32 0.0, %v2284
        %v2286 = vpop.f32.mrb[0].mxu0
        %2287 = vmatprep.mubr.f32.mxu0 0.0
        %2288 = vmatmul.mubr.f32.gmra.mrb[0].mxu0 %v2190
        %v2289 = vpop.f32.mrb[0].mxu0
        %v2290 = vadd.f32 0.0, %v2289
        %v2291 = vpop.f32.mrb[0].mxu0
        %2292 = vmatprep.mubr.f32.mxu0 0.0
        %2293 = vmatmul.mubr.f32.gmra.mrb[0].mxu0 %v2193
        %v2294 = vpop.f32.mrb[0].mxu0
        %v2295 = vadd.f32 0.0, %v2294
        %v2296 = vpop.f32.mrb[0].mxu0
        %2297 = vmatprep.mubr.f32.mxu0 0.0
        %2298 = vmatmul.mubr.f32.gmra.mrb[0].mxu0 %v2196
        %v2299 = vpop.f32.mrb[0].mxu0
        %v2300 = vadd.f32 0.0, %v2299
        %v2301 = vpop.f32.mrb[0].mxu0
        %2302 = vdwg.mxu0
        %s2303 = scalar_lea.vmem %s2, 24
        %v2304 = vld [vmem:[%s2303] sm:$0xf]
        %v2306 = vsel %vm444, %v2265, 0
        %v2309 = vsel %vm444, %v2270, 0
        %v2312 = vsel %vm444, %v2275, 0
        %v2315 = vsel %vm444, %v2280, 0
        %v2318 = vsel %vm444, %v2285, 0
        %v2321 = vsel %vm444, %v2290, 0
        %v2324 = vsel %vm444, %v2295, 0
        %v2327 = vsel %vm444, %v2300, 0
        %v2330 = vsel %vm804, %v2304, 0
        %2332 = vmatprep.subr.mxu0 0.0
        %2333 = vmatpush1.msra.mxu0 %v2330
        %2334 = vmatprep.subr.mxu0 0.0
        %2335 = vmatpush1.msra.mxu0 0.0
        %2336 = vmatprep.subr.mxu0 0.0
        %2337 = vmatpush1.msra.mxu0 0.0
        %2338 = vmatprep.subr.mxu0 0.0
        %2339 = vmatpush1.msra.mxu0 0.0
        %2340 = vmatprep.subr.mxu0 0.0
        %2341 = vmatpush1.msra.mxu0 0.0
        %2342 = vmatprep.subr.mxu0 0.0
        %2343 = vmatpush1.msra.mxu0 0.0
        %2344 = vmatprep.subr.mxu0 0.0
        %2345 = vmatpush1.msra.mxu0 0.0
        %2346 = vmatprep.subr.mxu0 0.0
        %2347 = vmatpush1.msra.mxu0 0.0
        %2348 = vmatprep.subr.mxu0 0.0
        %2349 = vmatpush1.msra.mxu0 0.0
        %2350 = vmatprep.subr.mxu0 0.0
        %2351 = vmatpush1.msra.mxu0 0.0
        %2352 = vmatprep.subr.mxu0 0.0
        %2353 = vmatpush1.msra.mxu0 0.0
        %2354 = vmatprep.subr.mxu0 0.0
        %2355 = vmatpush1.msra.mxu0 0.0
        %2356 = vmatprep.subr.mxu0 0.0
        %2357 = vmatpush1.msra.mxu0 0.0
        %2358 = vmatprep.subr.mxu0 0.0
        %2359 = vmatpush1.msra.mxu0 0.0
        %2360 = vmatprep.subr.mxu0 0.0
        %2361 = vmatpush1.msra.mxu0 0.0
        %2362 = vmatprep.subr.mxu0 0.0
        %2363 = vmatpush1.msra.mxu0 0.0
        %2364 = vmatprep.subr.mxu0 0.0
        %2365 = vmatpush1.msra.mxu0 0.0
        %2366 = vmatprep.subr.mxu0 0.0
        %2367 = vmatpush1.msra.mxu0 0.0
        %2368 = vmatprep.subr.mxu0 0.0
        %2369 = vmatpush1.msra.mxu0 0.0
        %2370 = vmatprep.subr.mxu0 0.0
        %2371 = vmatpush1.msra.mxu0 0.0
        %2372 = vmatprep.subr.mxu0 0.0
        %2373 = vmatpush1.msra.mxu0 0.0
        %2374 = vmatprep.subr.mxu0 0.0
        %2375 = vmatpush1.msra.mxu0 0.0
        %2376 = vmatprep.subr.mxu0 0.0
        %2377 = vmatpush1.msra.mxu0 0.0
        %2378 = vmatprep.subr.mxu0 0.0
        %2379 = vmatpush1.msra.mxu0 0.0
        %2380 = vmatprep.subr.mxu0 0.0
        %2381 = vmatpush1.msra.mxu0 0.0
        %2382 = vmatprep.subr.mxu0 0.0
        %2383 = vmatpush1.msra.mxu0 0.0
        %2384 = vmatprep.subr.mxu0 0.0
        %2385 = vmatpush1.msra.mxu0 0.0
        %2386 = vmatprep.subr.mxu0 0.0
        %2387 = vmatpush1.msra.mxu0 0.0
        %2388 = vmatprep.subr.mxu0 0.0
        %2389 = vmatpush1.msra.mxu0 0.0
        %2390 = vmatprep.subr.mxu0 0.0
        %2391 = vmatpush1.msra.mxu0 0.0
        %2392 = vmatprep.subr.mxu0 0.0
        %2393 = vmatpush1.msra.mxu0 0.0
        %2394 = vmatprep.subr.mxu0 0.0
        %2395 = vmatpush1.msra.mxu0 0.0
        %2396 = vmatprep.mubr.f32.mxu0 0.0
        %2397 = vmatmul.mubr.f32.gmra.mrb[0].mxu0 %v2306
        %v2398 = vpop.f32.mrb[0].mxu0
        %v2399 = vadd.f32 0.0, %v2398
        %v2400 = vpop.f32.mrb[0].mxu0
        %2401 = vmatprep.mubr.f32.mxu0 0.0
        %2402 = vmatmul.mubr.f32.gmra.mrb[0].mxu0 %v2309
        %v2403 = vpop.f32.mrb[0].mxu0
        %v2404 = vadd.f32 0.0, %v2403
        %v2405 = vpop.f32.mrb[0].mxu0
        %2406 = vmatprep.mubr.f32.mxu0 0.0
        %2407 = vmatmul.mubr.f32.gmra.mrb[0].mxu0 %v2312
        %v2408 = vpop.f32.mrb[0].mxu0
        %v2409 = vadd.f32 0.0, %v2408
        %v2410 = vpop.f32.mrb[0].mxu0
        %2411 = vmatprep.mubr.f32.mxu0 0.0
        %2412 = vmatmul.mubr.f32.gmra.mrb[0].mxu0 %v2315
        %v2413 = vpop.f32.mrb[0].mxu0
        %v2414 = vadd.f32 0.0, %v2413
        %v2415 = vpop.f32.mrb[0].mxu0
        %2416 = vmatprep.mubr.f32.mxu0 0.0
        %2417 = vmatmul.mubr.f32.gmra.mrb[0].mxu0 %v2318
        %v2418 = vpop.f32.mrb[0].mxu0
        %v2419 = vadd.f32 0.0, %v2418
        %v2420 = vpop.f32.mrb[0].mxu0
        %2421 = vmatprep.mubr.f32.mxu0 0.0
        %2422 = vmatmul.mubr.f32.gmra.mrb[0].mxu0 %v2321
        %v2423 = vpop.f32.mrb[0].mxu0
        %v2424 = vadd.f32 0.0, %v2423
        %v2425 = vpop.f32.mrb[0].mxu0
        %2426 = vmatprep.mubr.f32.mxu0 0.0
        %2427 = vmatmul.mubr.f32.gmra.mrb[0].mxu0 %v2324
        %v2428 = vpop.f32.mrb[0].mxu0
        %v2429 = vadd.f32 0.0, %v2428
        %v2430 = vpop.f32.mrb[0].mxu0
        %2431 = vmatprep.mubr.f32.mxu0 0.0
        %2432 = vmatmul.mubr.f32.gmra.mrb[0].mxu0 %v2327
        %v2433 = vpop.f32.mrb[0].mxu0
        %v2434 = vadd.f32 0.0, %v2433
        %v2435 = vpop.f32.mrb[0].mxu0
        %2436 = vdwg.mxu0
        %v2437 = vadd.f32 %v2157, %v2399
        %v2438 = vadd.f32 %v2158, %v2404
        %v2439 = vadd.f32 %v2159, %v2409
        %v2440 = vadd.f32 %v2160, %v2414
        %v2441 = vadd.f32 %v2161, %v2419
        %v2442 = vadd.f32 %v2162, %v2424
        %v2443 = vadd.f32 %v2163, %v2429
        %v2444 = vadd.f32 %v2164, %v2434
        %s2445 = scalar_lea.vmem %s1, 448
        %v2446 = vld [vmem:[%s2445] sm:$0xff]
        %v2447 = vld [vmem:[%s2445 + $0x8] sm:$0xff]
        %v2448 = vld [vmem:[%s2445 + $0x10] sm:$0xff]
        %v2449 = vld [vmem:[%s2445 + $0x18] sm:$0xff]
        %v2450 = vld [vmem:[%s2445 + $0x20] sm:$0xff]
        %v2451 = vld [vmem:[%s2445 + $0x28] sm:$0xff]
        %v2452 = vld [vmem:[%s2445 + $0x30] sm:$0xff]
        %v2453 = vld [vmem:[%s2445 + $0x38] sm:$0xff]
        %v2455 = vsel %vm509, %v2446, 0
        %v2458 = vsel %vm509, %v2447, 0
        %v2461 = vsel %vm509, %v2448, 0
        %v2464 = vsel %vm509, %v2449, 0
        %v2467 = vsel %vm509, %v2450, 0
        %v2470 = vsel %vm509, %v2451, 0
        %v2473 = vsel %vm509, %v2452, 0
        %v2476 = vsel %vm509, %v2453, 0
        %2478 = vmatprep.subr.mxu0 0.0
        %2479 = vmatpush1.msra.mxu0 %v451
        %2480 = vmatprep.subr.mxu0 0.0
        %2481 = vmatpush1.msra.mxu0 %v458
        %2482 = vmatprep.subr.mxu0 0.0
        %2483 = vmatpush1.msra.mxu0 %v465
        %2484 = vmatprep.subr.mxu0 0.0
        %2485 = vmatpush1.msra.mxu0 %v472
        %2486 = vmatprep.subr.mxu0 0.0
        %2487 = vmatpush1.msra.mxu0 %v479
        %2488 = vmatprep.subr.mxu0 0.0
        %2489 = vmatpush1.msra.mxu0 %v486
        %2490 = vmatprep.subr.mxu0 0.0
        %2491 = vmatpush1.msra.mxu0 %v493
        %2492 = vmatprep.subr.mxu0 0.0
        %2493 = vmatpush1.msra.mxu0 %v500
        %2494 = vmatprep.subr.mxu0 0.0
        %2495 = vmatpush1.msra.mxu0 0.0
        %2496 = vmatprep.subr.mxu0 0.0
        %2497 = vmatpush1.msra.mxu0 0.0
        %2498 = vmatprep.subr.mxu0 0.0
        %2499 = vmatpush1.msra.mxu0 0.0
        %2500 = vmatprep.subr.mxu0 0.0
        %2501 = vmatpush1.msra.mxu0 0.0
        %2502 = vmatprep.subr.mxu0 0.0
        %2503 = vmatpush1.msra.mxu0 0.0
        %2504 = vmatprep.subr.mxu0 0.0
        %2505 = vmatpush1.msra.mxu0 0.0
        %2506 = vmatprep.subr.mxu0 0.0
        %2507 = vmatpush1.msra.mxu0 0.0
        %2508 = vmatprep.subr.mxu0 0.0
        %2509 = vmatpush1.msra.mxu0 0.0
        %2510 = vmatprep.subr.mxu0 0.0
        %2511 = vmatpush1.msra.mxu0 0.0
        %2512 = vmatprep.subr.mxu0 0.0
        %2513 = vmatpush1.msra.mxu0 0.0
        %2514 = vmatprep.subr.mxu0 0.0
        %2515 = vmatpush1.msra.mxu0 0.0
        %2516 = vmatprep.subr.mxu0 0.0
        %2517 = vmatpush1.msra.mxu0 0.0
        %2518 = vmatprep.subr.mxu0 0.0
        %2519 = vmatpush1.msra.mxu0 0.0
        %2520 = vmatprep.subr.mxu0 0.0
        %2521 = vmatpush1.msra.mxu0 0.0
        %2522 = vmatprep.subr.mxu0 0.0
        %2523 = vmatpush1.msra.mxu0 0.0
        %2524 = vmatprep.subr.mxu0 0.0
        %2525 = vmatpush1.msra.mxu0 0.0
        %2526 = vmatprep.subr.mxu0 0.0
        %2527 = vmatpush1.msra.mxu0 0.0
        %2528 = vmatprep.subr.mxu0 0.0
        %2529 = vmatpush1.msra.mxu0 0.0
        %2530 = vmatprep.subr.mxu0 0.0
        %2531 = vmatpush1.msra.mxu0 0.0
        %2532 = vmatprep.subr.mxu0 0.0
        %2533 = vmatpush1.msra.mxu0 0.0
        %2534 = vmatprep.subr.mxu0 0.0
        %2535 = vmatpush1.msra.mxu0 0.0
        %2536 = vmatprep.subr.mxu0 0.0
        %2537 = vmatpush1.msra.mxu0 0.0
        %2538 = vmatprep.subr.mxu0 0.0
        %2539 = vmatpush1.msra.mxu0 0.0
        %2540 = vmatprep.subr.mxu0 0.0
        %2541 = vmatpush1.msra.mxu0 0.0
        %2542 = vmatprep.mubr.f32.mxu0 0.0
        %2543 = vmatmul.mubr.f32.gmra.mrb[0].mxu0 %v2455
        %v2544 = vpop.f32.mrb[0].mxu0
        %v2545 = vadd.f32 0.0, %v2544
        %v2546 = vpop.f32.mrb[0].mxu0
        %2547 = vmatprep.mubr.f32.mxu0 0.0
        %2548 = vmatmul.mubr.f32.gmra.mrb[0].mxu0 %v2458
        %v2549 = vpop.f32.mrb[0].mxu0
        %v2550 = vadd.f32 0.0, %v2549
        %v2551 = vpop.f32.mrb[0].mxu0
        %2552 = vmatprep.mubr.f32.mxu0 0.0
        %2553 = vmatmul.mubr.f32.gmra.mrb[0].mxu0 %v2461
        %v2554 = vpop.f32.mrb[0].mxu0
        %v2555 = vadd.f32 0.0, %v2554
        %v2556 = vpop.f32.mrb[0].mxu0
        %2557 = vmatprep.mubr.f32.mxu0 0.0
        %2558 = vmatmul.mubr.f32.gmra.mrb[0].mxu0 %v2464
        %v2559 = vpop.f32.mrb[0].mxu0
        %v2560 = vadd.f32 0.0, %v2559
        %v2561 = vpop.f32.mrb[0].mxu0
        %2562 = vmatprep.mubr.f32.mxu0 0.0
        %2563 = vmatmul.mubr.f32.gmra.mrb[0].mxu0 %v2467
        %v2564 = vpop.f32.mrb[0].mxu0
        %v2565 = vadd.f32 0.0, %v2564
        %v2566 = vpop.f32.mrb[0].mxu0
        %2567 = vmatprep.mubr.f32.mxu0 0.0
        %2568 = vmatmul.mubr.f32.gmra.mrb[0].mxu0 %v2470
        %v2569 = vpop.f32.mrb[0].mxu0
        %v2570 = vadd.f32 0.0, %v2569
        %v2571 = vpop.f32.mrb[0].mxu0
        %2572 = vmatprep.mubr.f32.mxu0 0.0
        %2573 = vmatmul.mubr.f32.gmra.mrb[0].mxu0 %v2473
        %v2574 = vpop.f32.mrb[0].mxu0
        %v2575 = vadd.f32 0.0, %v2574
        %v2576 = vpop.f32.mrb[0].mxu0
        %2577 = vmatprep.mubr.f32.mxu0 0.0
        %2578 = vmatmul.mubr.f32.gmra.mrb[0].mxu0 %v2476
        %v2579 = vpop.f32.mrb[0].mxu0
        %v2580 = vadd.f32 0.0, %v2579
        %v2581 = vpop.f32.mrb[0].mxu0
        %2582 = vdwg.mxu0
        %s2583 = scalar_lea.vmem %s2, 28
        %v2584 = vld [vmem:[%s2583] sm:$0xf]
        %v2586 = vsel %vm444, %v2545, 0
        %v2589 = vsel %vm444, %v2550, 0
        %v2592 = vsel %vm444, %v2555, 0
        %v2595 = vsel %vm444, %v2560, 0
        %v2598 = vsel %vm444, %v2565, 0
        %v2601 = vsel %vm444, %v2570, 0
        %v2604 = vsel %vm444, %v2575, 0
        %v2607 = vsel %vm444, %v2580, 0
        %v2610 = vsel %vm804, %v2584, 0
        %2612 = vmatprep.subr.mxu0 0.0
        %2613 = vmatpush1.msra.mxu0 %v2610
        %2614 = vmatprep.subr.mxu0 0.0
        %2615 = vmatpush1.msra.mxu0 0.0
        %2616 = vmatprep.subr.mxu0 0.0
        %2617 = vmatpush1.msra.mxu0 0.0
        %2618 = vmatprep.subr.mxu0 0.0
        %2619 = vmatpush1.msra.mxu0 0.0
        %2620 = vmatprep.subr.mxu0 0.0
        %2621 = vmatpush1.msra.mxu0 0.0
        %2622 = vmatprep.subr.mxu0 0.0
        %2623 = vmatpush1.msra.mxu0 0.0
        %2624 = vmatprep.subr.mxu0 0.0
        %2625 = vmatpush1.msra.mxu0 0.0
        %2626 = vmatprep.subr.mxu0 0.0
        %2627 = vmatpush1.msra.mxu0 0.0
        %2628 = vmatprep.subr.mxu0 0.0
        %2629 = vmatpush1.msra.mxu0 0.0
        %2630 = vmatprep.subr.mxu0 0.0
        %2631 = vmatpush1.msra.mxu0 0.0
        %2632 = vmatprep.subr.mxu0 0.0
        %2633 = vmatpush1.msra.mxu0 0.0
        %2634 = vmatprep.subr.mxu0 0.0
        %2635 = vmatpush1.msra.mxu0 0.0
        %2636 = vmatprep.subr.mxu0 0.0
        %2637 = vmatpush1.msra.mxu0 0.0
        %2638 = vmatprep.subr.mxu0 0.0
        %2639 = vmatpush1.msra.mxu0 0.0
        %2640 = vmatprep.subr.mxu0 0.0
        %2641 = vmatpush1.msra.mxu0 0.0
        %2642 = vmatprep.subr.mxu0 0.0
        %2643 = vmatpush1.msra.mxu0 0.0
        %2644 = vmatprep.subr.mxu0 0.0
        %2645 = vmatpush1.msra.mxu0 0.0
        %2646 = vmatprep.subr.mxu0 0.0
        %2647 = vmatpush1.msra.mxu0 0.0
        %2648 = vmatprep.subr.mxu0 0.0
        %2649 = vmatpush1.msra.mxu0 0.0
        %2650 = vmatprep.subr.mxu0 0.0
        %2651 = vmatpush1.msra.mxu0 0.0
        %2652 = vmatprep.subr.mxu0 0.0
        %2653 = vmatpush1.msra.mxu0 0.0
        %2654 = vmatprep.subr.mxu0 0.0
        %2655 = vmatpush1.msra.mxu0 0.0
        %2656 = vmatprep.subr.mxu0 0.0
        %2657 = vmatpush1.msra.mxu0 0.0
        %2658 = vmatprep.subr.mxu0 0.0
        %2659 = vmatpush1.msra.mxu0 0.0
        %2660 = vmatprep.subr.mxu0 0.0
        %2661 = vmatpush1.msra.mxu0 0.0
        %2662 = vmatprep.subr.mxu0 0.0
        %2663 = vmatpush1.msra.mxu0 0.0
        %2664 = vmatprep.subr.mxu0 0.0
        %2665 = vmatpush1.msra.mxu0 0.0
        %2666 = vmatprep.subr.mxu0 0.0
        %2667 = vmatpush1.msra.mxu0 0.0
        %2668 = vmatprep.subr.mxu0 0.0
        %2669 = vmatpush1.msra.mxu0 0.0
        %2670 = vmatprep.subr.mxu0 0.0
        %2671 = vmatpush1.msra.mxu0 0.0
        %2672 = vmatprep.subr.mxu0 0.0
        %2673 = vmatpush1.msra.mxu0 0.0
        %2674 = vmatprep.subr.mxu0 0.0
        %2675 = vmatpush1.msra.mxu0 0.0
        %2676 = vmatprep.mubr.f32.mxu0 0.0
        %2677 = vmatmul.mubr.f32.gmra.mrb[0].mxu0 %v2586
        %v2678 = vpop.f32.mrb[0].mxu0
        %v2679 = vadd.f32 0.0, %v2678
        %v2680 = vpop.f32.mrb[0].mxu0
        %2681 = vmatprep.mubr.f32.mxu0 0.0
        %2682 = vmatmul.mubr.f32.gmra.mrb[0].mxu0 %v2589
        %v2683 = vpop.f32.mrb[0].mxu0
        %v2684 = vadd.f32 0.0, %v2683
        %v2685 = vpop.f32.mrb[0].mxu0
        %2686 = vmatprep.mubr.f32.mxu0 0.0
        %2687 = vmatmul.mubr.f32.gmra.mrb[0].mxu0 %v2592
        %v2688 = vpop.f32.mrb[0].mxu0
        %v2689 = vadd.f32 0.0, %v2688
        %v2690 = vpop.f32.mrb[0].mxu0
        %2691 = vmatprep.mubr.f32.mxu0 0.0
        %2692 = vmatmul.mubr.f32.gmra.mrb[0].mxu0 %v2595
        %v2693 = vpop.f32.mrb[0].mxu0
        %v2694 = vadd.f32 0.0, %v2693
        %v2695 = vpop.f32.mrb[0].mxu0
        %2696 = vmatprep.mubr.f32.mxu0 0.0
        %2697 = vmatmul.mubr.f32.gmra.mrb[0].mxu0 %v2598
        %v2698 = vpop.f32.mrb[0].mxu0
        %v2699 = vadd.f32 0.0, %v2698
        %v2700 = vpop.f32.mrb[0].mxu0
        %2701 = vmatprep.mubr.f32.mxu0 0.0
        %2702 = vmatmul.mubr.f32.gmra.mrb[0].mxu0 %v2601
        %v2703 = vpop.f32.mrb[0].mxu0
        %v2704 = vadd.f32 0.0, %v2703
        %v2705 = vpop.f32.mrb[0].mxu0
        %2706 = vmatprep.mubr.f32.mxu0 0.0
        %2707 = vmatmul.mubr.f32.gmra.mrb[0].mxu0 %v2604
        %v2708 = vpop.f32.mrb[0].mxu0
        %v2709 = vadd.f32 0.0, %v2708
        %v2710 = vpop.f32.mrb[0].mxu0
        %2711 = vmatprep.mubr.f32.mxu0 0.0
        %2712 = vmatmul.mubr.f32.gmra.mrb[0].mxu0 %v2607
        %v2713 = vpop.f32.mrb[0].mxu0
        %v2714 = vadd.f32 0.0, %v2713
        %v2715 = vpop.f32.mrb[0].mxu0
        %2716 = vdwg.mxu0
        %v2717 = vadd.f32 %v2437, %v2679
        %v2718 = vadd.f32 %v2438, %v2684
        %v2719 = vadd.f32 %v2439, %v2689
        %v2720 = vadd.f32 %v2440, %v2694
        %v2721 = vadd.f32 %v2441, %v2699
        %v2722 = vadd.f32 %v2442, %v2704
        %v2723 = vadd.f32 %v2443, %v2709
        %v2724 = vadd.f32 %v2444, %v2714
        %s2725 = scalar_lea.vmem %s1, 512
        %v2726 = vld [vmem:[%s2725] sm:$0xff]
        %v2727 = vld [vmem:[%s2725 + $0x8] sm:$0xff]
        %v2728 = vld [vmem:[%s2725 + $0x10] sm:$0xff]
        %v2729 = vld [vmem:[%s2725 + $0x18] sm:$0xff]
        %v2730 = vld [vmem:[%s2725 + $0x20] sm:$0xff]
        %v2731 = vld [vmem:[%s2725 + $0x28] sm:$0xff]
        %v2732 = vld [vmem:[%s2725 + $0x30] sm:$0xff]
        %v2733 = vld [vmem:[%s2725 + $0x38] sm:$0xff]
        %v2735 = vsel %vm509, %v2726, 0
        %v2738 = vsel %vm509, %v2727, 0
        %v2741 = vsel %vm509, %v2728, 0
        %v2744 = vsel %vm509, %v2729, 0
        %v2747 = vsel %vm509, %v2730, 0
        %v2750 = vsel %vm509, %v2731, 0
        %v2753 = vsel %vm509, %v2732, 0
        %v2756 = vsel %vm509, %v2733, 0
        %2758 = vmatprep.subr.mxu0 0.0
        %2759 = vmatpush1.msra.mxu0 %v451
        %2760 = vmatprep.subr.mxu0 0.0
        %2761 = vmatpush1.msra.mxu0 %v458
        %2762 = vmatprep.subr.mxu0 0.0
        %2763 = vmatpush1.msra.mxu0 %v465
        %2764 = vmatprep.subr.mxu0 0.0
        %2765 = vmatpush1.msra.mxu0 %v472
        %2766 = vmatprep.subr.mxu0 0.0
        %2767 = vmatpush1.msra.mxu0 %v479
        %2768 = vmatprep.subr.mxu0 0.0
        %2769 = vmatpush1.msra.mxu0 %v486
        %2770 = vmatprep.subr.mxu0 0.0
        %2771 = vmatpush1.msra.mxu0 %v493
        %2772 = vmatprep.subr.mxu0 0.0
        %2773 = vmatpush1.msra.mxu0 %v500
        %2774 = vmatprep.subr.mxu0 0.0
        %2775 = vmatpush1.msra.mxu0 0.0
        %2776 = vmatprep.subr.mxu0 0.0
        %2777 = vmatpush1.msra.mxu0 0.0
        %2778 = vmatprep.subr.mxu0 0.0
        %2779 = vmatpush1.msra.mxu0 0.0
        %2780 = vmatprep.subr.mxu0 0.0
        %2781 = vmatpush1.msra.mxu0 0.0
        %2782 = vmatprep.subr.mxu0 0.0
        %2783 = vmatpush1.msra.mxu0 0.0
        %2784 = vmatprep.subr.mxu0 0.0
        %2785 = vmatpush1.msra.mxu0 0.0
        %2786 = vmatprep.subr.mxu0 0.0
        %2787 = vmatpush1.msra.mxu0 0.0
        %2788 = vmatprep.subr.mxu0 0.0
        %2789 = vmatpush1.msra.mxu0 0.0
        %2790 = vmatprep.subr.mxu0 0.0
        %2791 = vmatpush1.msra.mxu0 0.0
        %2792 = vmatprep.subr.mxu0 0.0
        %2793 = vmatpush1.msra.mxu0 0.0
        %2794 = vmatprep.subr.mxu0 0.0
        %2795 = vmatpush1.msra.mxu0 0.0
        %2796 = vmatprep.subr.mxu0 0.0
        %2797 = vmatpush1.msra.mxu0 0.0
        %2798 = vmatprep.subr.mxu0 0.0
        %2799 = vmatpush1.msra.mxu0 0.0
        %2800 = vmatprep.subr.mxu0 0.0
        %2801 = vmatpush1.msra.mxu0 0.0
        %2802 = vmatprep.subr.mxu0 0.0
        %2803 = vmatpush1.msra.mxu0 0.0
        %2804 = vmatprep.subr.mxu0 0.0
        %2805 = vmatpush1.msra.mxu0 0.0
        %2806 = vmatprep.subr.mxu0 0.0
        %2807 = vmatpush1.msra.mxu0 0.0
        %2808 = vmatprep.subr.mxu0 0.0
        %2809 = vmatpush1.msra.mxu0 0.0
        %2810 = vmatprep.subr.mxu0 0.0
        %2811 = vmatpush1.msra.mxu0 0.0
        %2812 = vmatprep.subr.mxu0 0.0
        %2813 = vmatpush1.msra.mxu0 0.0
        %2814 = vmatprep.subr.mxu0 0.0
        %2815 = vmatpush1.msra.mxu0 0.0
        %2816 = vmatprep.subr.mxu0 0.0
        %2817 = vmatpush1.msra.mxu0 0.0
        %2818 = vmatprep.subr.mxu0 0.0
        %2819 = vmatpush1.msra.mxu0 0.0
        %2820 = vmatprep.subr.mxu0 0.0
        %2821 = vmatpush1.msra.mxu0 0.0
        %2822 = vmatprep.mubr.f32.mxu0 0.0
        %2823 = vmatmul.mubr.f32.gmra.mrb[0].mxu0 %v2735
        %v2824 = vpop.f32.mrb[0].mxu0
        %v2825 = vadd.f32 0.0, %v2824
        %v2826 = vpop.f32.mrb[0].mxu0
        %2827 = vmatprep.mubr.f32.mxu0 0.0
        %2828 = vmatmul.mubr.f32.gmra.mrb[0].mxu0 %v2738
        %v2829 = vpop.f32.mrb[0].mxu0
        %v2830 = vadd.f32 0.0, %v2829
        %v2831 = vpop.f32.mrb[0].mxu0
        %2832 = vmatprep.mubr.f32.mxu0 0.0
        %2833 = vmatmul.mubr.f32.gmra.mrb[0].mxu0 %v2741
        %v2834 = vpop.f32.mrb[0].mxu0
        %v2835 = vadd.f32 0.0, %v2834
        %v2836 = vpop.f32.mrb[0].mxu0
        %2837 = vmatprep.mubr.f32.mxu0 0.0
        %2838 = vmatmul.mubr.f32.gmra.mrb[0].mxu0 %v2744
        %v2839 = vpop.f32.mrb[0].mxu0
        %v2840 = vadd.f32 0.0, %v2839
        %v2841 = vpop.f32.mrb[0].mxu0
        %2842 = vmatprep.mubr.f32.mxu0 0.0
        %2843 = vmatmul.mubr.f32.gmra.mrb[0].mxu0 %v2747
        %v2844 = vpop.f32.mrb[0].mxu0
        %v2845 = vadd.f32 0.0, %v2844
        %v2846 = vpop.f32.mrb[0].mxu0
        %2847 = vmatprep.mubr.f32.mxu0 0.0
        %2848 = vmatmul.mubr.f32.gmra.mrb[0].mxu0 %v2750
        %v2849 = vpop.f32.mrb[0].mxu0
        %v2850 = vadd.f32 0.0, %v2849
        %v2851 = vpop.f32.mrb[0].mxu0
        %2852 = vmatprep.mubr.f32.mxu0 0.0
        %2853 = vmatmul.mubr.f32.gmra.mrb[0].mxu0 %v2753
        %v2854 = vpop.f32.mrb[0].mxu0
        %v2855 = vadd.f32 0.0, %v2854
        %v2856 = vpop.f32.mrb[0].mxu0
        %2857 = vmatprep.mubr.f32.mxu0 0.0
        %2858 = vmatmul.mubr.f32.gmra.mrb[0].mxu0 %v2756
        %v2859 = vpop.f32.mrb[0].mxu0
        %v2860 = vadd.f32 0.0, %v2859
        %v2861 = vpop.f32.mrb[0].mxu0
        %2862 = vdwg.mxu0
        %s2863 = scalar_lea.vmem %s2, 32
        %v2864 = vld [vmem:[%s2863] sm:$0xf]
        %v2866 = vsel %vm444, %v2825, 0
        %v2869 = vsel %vm444, %v2830, 0
        %v2872 = vsel %vm444, %v2835, 0
        %v2875 = vsel %vm444, %v2840, 0
        %v2878 = vsel %vm444, %v2845, 0
        %v2881 = vsel %vm444, %v2850, 0
        %v2884 = vsel %vm444, %v2855, 0
        %v2887 = vsel %vm444, %v2860, 0
        %v2890 = vsel %vm804, %v2864, 0
        %2892 = vmatprep.subr.mxu0 0.0
        %2893 = vmatpush1.msra.mxu0 %v2890
        %2894 = vmatprep.subr.mxu0 0.0
        %2895 = vmatpush1.msra.mxu0 0.0
        %2896 = vmatprep.subr.mxu0 0.0
        %2897 = vmatpush1.msra.mxu0 0.0
        %2898 = vmatprep.subr.mxu0 0.0
        %2899 = vmatpush1.msra.mxu0 0.0
        %2900 = vmatprep.subr.mxu0 0.0
        %2901 = vmatpush1.msra.mxu0 0.0
        %2902 = vmatprep.subr.mxu0 0.0
        %2903 = vmatpush1.msra.mxu0 0.0
        %2904 = vmatprep.subr.mxu0 0.0
        %2905 = vmatpush1.msra.mxu0 0.0
        %2906 = vmatprep.subr.mxu0 0.0
        %2907 = vmatpush1.msra.mxu0 0.0
        %2908 = vmatprep.subr.mxu0 0.0
        %2909 = vmatpush1.msra.mxu0 0.0
        %2910 = vmatprep.subr.mxu0 0.0
        %2911 = vmatpush1.msra.mxu0 0.0
        %2912 = vmatprep.subr.mxu0 0.0
        %2913 = vmatpush1.msra.mxu0 0.0
        %2914 = vmatprep.subr.mxu0 0.0
        %2915 = vmatpush1.msra.mxu0 0.0
        %2916 = vmatprep.subr.mxu0 0.0
        %2917 = vmatpush1.msra.mxu0 0.0
        %2918 = vmatprep.subr.mxu0 0.0
        %2919 = vmatpush1.msra.mxu0 0.0
        %2920 = vmatprep.subr.mxu0 0.0
        %2921 = vmatpush1.msra.mxu0 0.0
        %2922 = vmatprep.subr.mxu0 0.0
        %2923 = vmatpush1.msra.mxu0 0.0
        %2924 = vmatprep.subr.mxu0 0.0
        %2925 = vmatpush1.msra.mxu0 0.0
        %2926 = vmatprep.subr.mxu0 0.0
        %2927 = vmatpush1.msra.mxu0 0.0
        %2928 = vmatprep.subr.mxu0 0.0
        %2929 = vmatpush1.msra.mxu0 0.0
        %2930 = vmatprep.subr.mxu0 0.0
        %2931 = vmatpush1.msra.mxu0 0.0
        %2932 = vmatprep.subr.mxu0 0.0
        %2933 = vmatpush1.msra.mxu0 0.0
        %2934 = vmatprep.subr.mxu0 0.0
        %2935 = vmatpush1.msra.mxu0 0.0
        %2936 = vmatprep.subr.mxu0 0.0
        %2937 = vmatpush1.msra.mxu0 0.0
        %2938 = vmatprep.subr.mxu0 0.0
        %2939 = vmatpush1.msra.mxu0 0.0
        %2940 = vmatprep.subr.mxu0 0.0
        %2941 = vmatpush1.msra.mxu0 0.0
        %2942 = vmatprep.subr.mxu0 0.0
        %2943 = vmatpush1.msra.mxu0 0.0
        %2944 = vmatprep.subr.mxu0 0.0
        %2945 = vmatpush1.msra.mxu0 0.0
        %2946 = vmatprep.subr.mxu0 0.0
        %2947 = vmatpush1.msra.mxu0 0.0
        %2948 = vmatprep.subr.mxu0 0.0
        %2949 = vmatpush1.msra.mxu0 0.0
        %2950 = vmatprep.subr.mxu0 0.0
        %2951 = vmatpush1.msra.mxu0 0.0
        %2952 = vmatprep.subr.mxu0 0.0
        %2953 = vmatpush1.msra.mxu0 0.0
        %2954 = vmatprep.subr.mxu0 0.0
        %2955 = vmatpush1.msra.mxu0 0.0
        %2956 = vmatprep.mubr.f32.mxu0 0.0
        %2957 = vmatmul.mubr.f32.gmra.mrb[0].mxu0 %v2866
        %v2958 = vpop.f32.mrb[0].mxu0
        %v2959 = vadd.f32 0.0, %v2958
        %v2960 = vpop.f32.mrb[0].mxu0
        %2961 = vmatprep.mubr.f32.mxu0 0.0
        %2962 = vmatmul.mubr.f32.gmra.mrb[0].mxu0 %v2869
        %v2963 = vpop.f32.mrb[0].mxu0
        %v2964 = vadd.f32 0.0, %v2963
        %v2965 = vpop.f32.mrb[0].mxu0
        %2966 = vmatprep.mubr.f32.mxu0 0.0
        %2967 = vmatmul.mubr.f32.gmra.mrb[0].mxu0 %v2872
        %v2968 = vpop.f32.mrb[0].mxu0
        %v2969 = vadd.f32 0.0, %v2968
        %v2970 = vpop.f32.mrb[0].mxu0
        %2971 = vmatprep.mubr.f32.mxu0 0.0
        %2972 = vmatmul.mubr.f32.gmra.mrb[0].mxu0 %v2875
        %v2973 = vpop.f32.mrb[0].mxu0
        %v2974 = vadd.f32 0.0, %v2973
        %v2975 = vpop.f32.mrb[0].mxu0
        %2976 = vmatprep.mubr.f32.mxu0 0.0
        %2977 = vmatmul.mubr.f32.gmra.mrb[0].mxu0 %v2878
        %v2978 = vpop.f32.mrb[0].mxu0
        %v2979 = vadd.f32 0.0, %v2978
        %v2980 = vpop.f32.mrb[0].mxu0
        %2981 = vmatprep.mubr.f32.mxu0 0.0
        %2982 = vmatmul.mubr.f32.gmra.mrb[0].mxu0 %v2881
        %v2983 = vpop.f32.mrb[0].mxu0
        %v2984 = vadd.f32 0.0, %v2983
        %v2985 = vpop.f32.mrb[0].mxu0
        %2986 = vmatprep.mubr.f32.mxu0 0.0
        %2987 = vmatmul.mubr.f32.gmra.mrb[0].mxu0 %v2884
        %v2988 = vpop.f32.mrb[0].mxu0
        %v2989 = vadd.f32 0.0, %v2988
        %v2990 = vpop.f32.mrb[0].mxu0
        %2991 = vmatprep.mubr.f32.mxu0 0.0
        %2992 = vmatmul.mubr.f32.gmra.mrb[0].mxu0 %v2887
        %v2993 = vpop.f32.mrb[0].mxu0
        %v2994 = vadd.f32 0.0, %v2993
        %v2995 = vpop.f32.mrb[0].mxu0
        %2996 = vdwg.mxu0
        %v2997 = vadd.f32 %v2717, %v2959
        %v2998 = vadd.f32 %v2718, %v2964
        %v2999 = vadd.f32 %v2719, %v2969
        %v3000 = vadd.f32 %v2720, %v2974
        %v3001 = vadd.f32 %v2721, %v2979
        %v3002 = vadd.f32 %v2722, %v2984
        %v3003 = vadd.f32 %v2723, %v2989
        %v3004 = vadd.f32 %v2724, %v2994
        %v3005 = vld [vmem:[%s3] sm:$0x1]
        %v3007 = vlaneseq
        %v3008 = vshrl.u32 %v3007, 7
        %v3009 = vsub.s32 0, %v3008
        %v3010 = vrot.slane %v3005, %v3009
        %v3012 = vmul.f32 %v2997, %v3010
        %v3013 = vmul.f32 %v2998, %v3010
        %v3014 = vmul.f32 %v2999, %v3010
        %v3015 = vmul.f32 %v3000, %v3010
        %v3016 = vmul.f32 %v3001, %v3010
        %v3017 = vmul.f32 %v3002, %v3010
        %v3018 = vmul.f32 %v3003, %v3010
        %v3019 = vmul.f32 %v3004, %v3010
        %v3020 = vld [vmem:[%s4] sm:$0x1]
        %v3022 = vlaneseq
        %v3023 = vshrl.u32 %v3022, 7
        %v3024 = vsub.s32 0, %v3023
        %v3025 = vrot.slane %v3020, %v3024
        %v3027 = vadd.f32 %v3012, %v3025
        %v3028 = vadd.f32 %v3013, %v3025
        %v3029 = vadd.f32 %v3014, %v3025
        %v3030 = vadd.f32 %v3015, %v3025
        %v3031 = vadd.f32 %v3016, %v3025
        %v3032 = vadd.f32 %v3017, %v3025
        %v3033 = vadd.f32 %v3018, %v3025
        %v3034 = vadd.f32 %v3019, %v3025
        %v3035 = vmax.f32 %v3027, 0.0
        %v3036 = vmax.f32 %v3028, 0.0
        %v3037 = vmax.f32 %v3029, 0.0
        %v3038 = vmax.f32 %v3030, 0.0
        %v3039 = vmax.f32 %v3031, 0.0
        %v3040 = vmax.f32 %v3032, 0.0
        %v3041 = vmax.f32 %v3033, 0.0
        %v3042 = vmax.f32 %v3034, 0.0
        %3043 = vmatprep.subr.mxu0 0.0
        %3044 = vmatpush1.msra.mxu0 %v3035
        %3045 = vmatprep.subr.mxu0 0.0
        %3046 = vmatpush1.msra.mxu0 %v3036
        %3047 = vmatprep.subr.mxu0 0.0
        %3048 = vmatpush1.msra.mxu0 %v3037
        %3049 = vmatprep.subr.mxu0 0.0
        %3050 = vmatpush1.msra.mxu0 %v3038
        %3051 = vmatprep.subr.mxu0 0.0
        %3052 = vmatpush1.msra.mxu0 %v3039
        %3053 = vmatprep.subr.mxu0 0.0
        %3054 = vmatpush1.msra.mxu0 %v3040
        %3055 = vmatprep.subr.mxu0 0.0
        %3056 = vmatpush1.msra.mxu0 %v3041
        %3057 = vmatprep.subr.mxu0 0.0
        %3058 = vmatpush1.msra.mxu0 %v3042
        %3059 = vmatprep.subr.mxu0 0.0
        %3060 = vmatpush1.msra.mxu0 0.0
        %3061 = vmatprep.subr.mxu0 0.0
        %3062 = vmatpush1.msra.mxu0 0.0
        %3063 = vmatprep.subr.mxu0 0.0
        %3064 = vmatpush1.msra.mxu0 0.0
        %3065 = vmatprep.subr.mxu0 0.0
        %3066 = vmatpush1.msra.mxu0 0.0
        %3067 = vmatprep.subr.mxu0 0.0
        %3068 = vmatpush1.msra.mxu0 0.0
        %3069 = vmatprep.subr.mxu0 0.0
        %3070 = vmatpush1.msra.mxu0 0.0
        %3071 = vmatprep.subr.mxu0 0.0
        %3072 = vmatpush1.msra.mxu0 0.0
        %3073 = vmatprep.subr.mxu0 0.0
        %3074 = vmatpush1.msra.mxu0 0.0
        %3075 = vmatprep.subr.mxu0 0.0
        %3076 = vmatpush1.msra.mxu0 0.0
        %3077 = vmatprep.subr.mxu0 0.0
        %3078 = vmatpush1.msra.mxu0 0.0
        %3079 = vmatprep.subr.mxu0 0.0
        %3080 = vmatpush1.msra.mxu0 0.0
        %3081 = vmatprep.subr.mxu0 0.0
        %3082 = vmatpush1.msra.mxu0 0.0
        %3083 = vmatprep.subr.mxu0 0.0
        %3084 = vmatpush1.msra.mxu0 0.0
        %3085 = vmatprep.subr.mxu0 0.0
        %3086 = vmatpush1.msra.mxu0 0.0
        %3087 = vmatprep.subr.mxu0 0.0
        %3088 = vmatpush1.msra.mxu0 0.0
        %3089 = vmatprep.subr.mxu0 0.0
        %3090 = vmatpush1.msra.mxu0 0.0
        %3091 = vmatprep.subr.mxu0 0.0
        %3092 = vmatpush1.msra.mxu0 0.0
        %3093 = vmatprep.subr.mxu0 0.0
        %3094 = vmatpush1.msra.mxu0 0.0
        %3095 = vmatprep.subr.mxu0 0.0
        %3096 = vmatpush1.msra.mxu0 0.0
        %3097 = vmatprep.subr.mxu0 0.0
        %3098 = vmatpush1.msra.mxu0 0.0
        %3099 = vmatprep.subr.mxu0 0.0
        %3100 = vmatpush1.msra.mxu0 0.0
        %3101 = vmatprep.subr.mxu0 0.0
        %3102 = vmatpush1.msra.mxu0 0.0
        %3103 = vmatprep.subr.mxu0 0.0
        %3104 = vmatpush1.msra.mxu0 0.0
        %3105 = vmatprep.subr.mxu0 0.0
        %3106 = vmatpush1.msra.mxu0 0.0
        %3107 = vmatprep.mubr.f32.mxu0 0.0
        %3108 = vmatmul.mubr.f32.gmra.mrb[0].mxu0 %v511
        %v3109 = vpop.f32.mrb[0].mxu0
        %v3110 = vadd.f32 0.0, %v3109
        %v3111 = vpop.f32.mrb[0].mxu0
        %3112 = vmatprep.mubr.f32.mxu0 0.0
        %3113 = vmatmul.mubr.f32.gmra.mrb[0].mxu0 %v514
        %v3114 = vpop.f32.mrb[0].mxu0
        %v3115 = vadd.f32 0.0, %v3114
        %v3116 = vpop.f32.mrb[0].mxu0
        %3117 = vmatprep.mubr.f32.mxu0 0.0
        %3118 = vmatmul.mubr.f32.gmra.mrb[0].mxu0 %v517
        %v3119 = vpop.f32.mrb[0].mxu0
        %v3120 = vadd.f32 0.0, %v3119
        %v3121 = vpop.f32.mrb[0].mxu0
        %3122 = vmatprep.mubr.f32.mxu0 0.0
        %3123 = vmatmul.mubr.f32.gmra.mrb[0].mxu0 %v520
        %v3124 = vpop.f32.mrb[0].mxu0
        %v3125 = vadd.f32 0.0, %v3124
        %v3126 = vpop.f32.mrb[0].mxu0
        %3127 = vmatprep.mubr.f32.mxu0 0.0
        %3128 = vmatmul.mubr.f32.gmra.mrb[0].mxu0 %v523
        %v3129 = vpop.f32.mrb[0].mxu0
        %v3130 = vadd.f32 0.0, %v3129
        %v3131 = vpop.f32.mrb[0].mxu0
        %3132 = vmatprep.mubr.f32.mxu0 0.0
        %3133 = vmatmul.mubr.f32.gmra.mrb[0].mxu0 %v526
        %v3134 = vpop.f32.mrb[0].mxu0
        %v3135 = vadd.f32 0.0, %v3134
        %v3136 = vpop.f32.mrb[0].mxu0
        %3137 = vmatprep.mubr.f32.mxu0 0.0
        %3138 = vmatmul.mubr.f32.gmra.mrb[0].mxu0 %v529
        %v3139 = vpop.f32.mrb[0].mxu0
        %v3140 = vadd.f32 0.0, %v3139
        %v3141 = vpop.f32.mrb[0].mxu0
        %3142 = vmatprep.mubr.f32.mxu0 0.0
        %3143 = vmatmul.mubr.f32.gmra.mrb[0].mxu0 %v532
        %v3144 = vpop.f32.mrb[0].mxu0
        %v3145 = vadd.f32 0.0, %v3144
        %v3146 = vpop.f32.mrb[0].mxu0
        %3147 = vdwg.mxu0
        %v3148 = vld [vmem:[%s5] sm:$0xff]
        %v3149 = vld [vmem:[%s5 + $0x8] sm:$0xff]
        %v3150 = vld [vmem:[%s5 + $0x10] sm:$0xff]
        %v3151 = vld [vmem:[%s5 + $0x18] sm:$0xff]
        %3152 = vmatprep.subr.mxu0 0.0
        %3153 = vmatpush1.msra.mxu0 %v3035
        %3154 = vmatprep.subr.mxu0 0.0
        %3155 = vmatpush1.msra.mxu0 %v3036
        %3156 = vmatprep.subr.mxu0 0.0
        %3157 = vmatpush1.msra.mxu0 %v3037
        %3158 = vmatprep.subr.mxu0 0.0
        %3159 = vmatpush1.msra.mxu0 %v3038
        %3160 = vmatprep.subr.mxu0 0.0
        %3161 = vmatpush1.msra.mxu0 %v3039
        %3162 = vmatprep.subr.mxu0 0.0
        %3163 = vmatpush1.msra.mxu0 %v3040
        %3164 = vmatprep.subr.mxu0 0.0
        %3165 = vmatpush1.msra.mxu0 %v3041
        %3166 = vmatprep.subr.mxu0 0.0
        %3167 = vmatpush1.msra.mxu0 %v3042
        %3168 = vmatprep.subr.mxu0 0.0
        %3169 = vmatpush1.msra.mxu0 0.0
        %3170 = vmatprep.subr.mxu0 0.0
        %3171 = vmatpush1.msra.mxu0 0.0
        %3172 = vmatprep.subr.mxu0 0.0
        %3173 = vmatpush1.msra.mxu0 0.0
        %3174 = vmatprep.subr.mxu0 0.0
        %3175 = vmatpush1.msra.mxu0 0.0
        %3176 = vmatprep.subr.mxu0 0.0
        %3177 = vmatpush1.msra.mxu0 0.0
        %3178 = vmatprep.subr.mxu0 0.0
        %3179 = vmatpush1.msra.mxu0 0.0
        %3180 = vmatprep.subr.mxu0 0.0
        %3181 = vmatpush1.msra.mxu0 0.0
        %3182 = vmatprep.subr.mxu0 0.0
        %3183 = vmatpush1.msra.mxu0 0.0
        %3184 = vmatprep.subr.mxu0 0.0
        %3185 = vmatpush1.msra.mxu0 0.0
        %3186 = vmatprep.subr.mxu0 0.0
        %3187 = vmatpush1.msra.mxu0 0.0
        %3188 = vmatprep.subr.mxu0 0.0
        %3189 = vmatpush1.msra.mxu0 0.0
        %3190 = vmatprep.subr.mxu0 0.0
        %3191 = vmatpush1.msra.mxu0 0.0
        %3192 = vmatprep.subr.mxu0 0.0
        %3193 = vmatpush1.msra.mxu0 0.0
        %3194 = vmatprep.subr.mxu0 0.0
        %3195 = vmatpush1.msra.mxu0 0.0
        %3196 = vmatprep.subr.mxu0 0.0
        %3197 = vmatpush1.msra.mxu0 0.0
        %3198 = vmatprep.subr.mxu0 0.0
        %3199 = vmatpush1.msra.mxu0 0.0
        %3200 = vmatprep.subr.mxu0 0.0
        %3201 = vmatpush1.msra.mxu0 0.0
        %3202 = vmatprep.subr.mxu0 0.0
        %3203 = vmatpush1.msra.mxu0 0.0
        %3204 = vmatprep.subr.mxu0 0.0
        %3205 = vmatpush1.msra.mxu0 0.0
        %3206 = vmatprep.subr.mxu0 0.0
        %3207 = vmatpush1.msra.mxu0 0.0
        %3208 = vmatprep.subr.mxu0 0.0
        %3209 = vmatpush1.msra.mxu0 0.0
        %3210 = vmatprep.subr.mxu0 0.0
        %3211 = vmatpush1.msra.mxu0 0.0
        %3212 = vmatprep.subr.mxu0 0.0
        %3213 = vmatpush1.msra.mxu0 0.0
        %3214 = vmatprep.subr.mxu0 0.0
        %3215 = vmatpush1.msra.mxu0 0.0
        %3216 = vmatprep.mubr.f32.mxu0 0.0
        %3217 = vmatmul.mubr.f32.gmra.mrb[0].mxu0 %v650
        %v3218 = vpop.f32.mrb[0].mxu0
        %v3219 = vadd.f32 0.0, %v3218
        %v3220 = vpop.f32.mrb[0].mxu0
        %3221 = vmatprep.mubr.f32.mxu0 0.0
        %3222 = vmatmul.mubr.f32.gmra.mrb[0].mxu0 %v653
        %v3223 = vpop.f32.mrb[0].mxu0
        %v3224 = vadd.f32 0.0, %v3223
        %v3225 = vpop.f32.mrb[0].mxu0
        %3226 = vmatprep.mubr.f32.mxu0 0.0
        %3227 = vmatmul.mubr.f32.gmra.mrb[0].mxu0 %v656
        %v3228 = vpop.f32.mrb[0].mxu0
        %v3229 = vadd.f32 0.0, %v3228
        %v3230 = vpop.f32.mrb[0].mxu0
        %3231 = vmatprep.mubr.f32.mxu0 0.0
        %3232 = vmatmul.mubr.f32.gmra.mrb[0].mxu0 %v659
        %v3233 = vpop.f32.mrb[0].mxu0
        %v3234 = vadd.f32 0.0, %v3233
        %v3235 = vpop.f32.mrb[0].mxu0
        %3236 = vmatprep.mubr.f32.mxu0 0.0
        %3237 = vmatmul.mubr.f32.gmra.mrb[0].mxu0 %v662
        %v3238 = vpop.f32.mrb[0].mxu0
        %v3239 = vadd.f32 0.0, %v3238
        %v3240 = vpop.f32.mrb[0].mxu0
        %3241 = vmatprep.mubr.f32.mxu0 0.0
        %3242 = vmatmul.mubr.f32.gmra.mrb[0].mxu0 %v665
        %v3243 = vpop.f32.mrb[0].mxu0
        %v3244 = vadd.f32 0.0, %v3243
        %v3245 = vpop.f32.mrb[0].mxu0
        %3246 = vmatprep.mubr.f32.mxu0 0.0
        %3247 = vmatmul.mubr.f32.gmra.mrb[0].mxu0 %v668
        %v3248 = vpop.f32.mrb[0].mxu0
        %v3249 = vadd.f32 0.0, %v3248
        %v3250 = vpop.f32.mrb[0].mxu0
        %3251 = vmatprep.mubr.f32.mxu0 0.0
        %3252 = vmatmul.mubr.f32.gmra.mrb[0].mxu0 %v671
        %v3253 = vpop.f32.mrb[0].mxu0
        %v3254 = vadd.f32 0.0, %v3253
        %v3255 = vpop.f32.mrb[0].mxu0
        %3256 = vdwg.mxu0
        %s3257 = scalar_lea.vmem %s5, 32
        %v3258 = vld [vmem:[%s3257] sm:$0xff]
        %v3259 = vld [vmem:[%s3257 + $0x8] sm:$0xff]
        %v3260 = vld [vmem:[%s3257 + $0x10] sm:$0xff]
        %v3261 = vld [vmem:[%s3257 + $0x18] sm:$0xff]
        %vm3262 = vcmask 261120
        %v3264 = vsel %vm3262, %v3219, 0
        %v3267 = vsel %vm3262, %v3224, 0
        %v3270 = vsel %vm3262, %v3229, 0
        %v3273 = vsel %vm3262, %v3234, 0
        %v3276 = vsel %vm3262, %v3239, 0
        %v3279 = vsel %vm3262, %v3244, 0
        %v3282 = vsel %vm3262, %v3249, 0
        %v3285 = vsel %vm3262, %v3254, 0
        %3287 = vmatprep.subr.mxu0 0.0
        %3288 = vmatpush1.msra.mxu0 %v3258
        %3289 = vmatprep.subr.mxu0 0.0
        %3290 = vmatpush1.msra.mxu0 %v3259
        %3291 = vmatprep.subr.mxu0 0.0
        %3292 = vmatpush1.msra.mxu0 %v3260
        %3293 = vmatprep.subr.mxu0 0.0
        %3294 = vmatpush1.msra.mxu0 %v3261
        %3295 = vmatprep.subr.mxu0 0.0
        %3296 = vmatpush1.msra.mxu0 0.0
        %3297 = vmatprep.subr.mxu0 0.0
        %3298 = vmatpush1.msra.mxu0 0.0
        %3299 = vmatprep.subr.mxu0 0.0
        %3300 = vmatpush1.msra.mxu0 0.0
        %3301 = vmatprep.subr.mxu0 0.0
        %3302 = vmatpush1.msra.mxu0 0.0
        %3303 = vmatprep.subr.mxu0 0.0
        %3304 = vmatpush1.msra.mxu0 0.0
        %3305 = vmatprep.subr.mxu0 0.0
        %3306 = vmatpush1.msra.mxu0 0.0
        %3307 = vmatprep.subr.mxu0 0.0
        %3308 = vmatpush1.msra.mxu0 0.0
        %3309 = vmatprep.subr.mxu0 0.0
        %3310 = vmatpush1.msra.mxu0 0.0
        %3311 = vmatprep.subr.mxu0 0.0
        %3312 = vmatpush1.msra.mxu0 0.0
        %3313 = vmatprep.subr.mxu0 0.0
        %3314 = vmatpush1.msra.mxu0 0.0
        %3315 = vmatprep.subr.mxu0 0.0
        %3316 = vmatpush1.msra.mxu0 0.0
        %3317 = vmatprep.subr.mxu0 0.0
        %3318 = vmatpush1.msra.mxu0 0.0
        %3319 = vmatprep.subr.mxu0 0.0
        %3320 = vmatpush1.msra.mxu0 0.0
        %3321 = vmatprep.subr.mxu0 0.0
        %3322 = vmatpush1.msra.mxu0 0.0
        %3323 = vmatprep.subr.mxu0 0.0
        %3324 = vmatpush1.msra.mxu0 0.0
        %3325 = vmatprep.subr.mxu0 0.0
        %3326 = vmatpush1.msra.mxu0 0.0
        %3327 = vmatprep.subr.mxu0 0.0
        %3328 = vmatpush1.msra.mxu0 0.0
        %3329 = vmatprep.subr.mxu0 0.0
        %3330 = vmatpush1.msra.mxu0 0.0
        %3331 = vmatprep.subr.mxu0 0.0
        %3332 = vmatpush1.msra.mxu0 0.0
        %3333 = vmatprep.subr.mxu0 0.0
        %3334 = vmatpush1.msra.mxu0 0.0
        %3335 = vmatprep.subr.mxu0 0.0
        %3336 = vmatpush1.msra.mxu0 0.0
        %3337 = vmatprep.subr.mxu0 0.0
        %3338 = vmatpush1.msra.mxu0 0.0
        %3339 = vmatprep.subr.mxu0 0.0
        %3340 = vmatpush1.msra.mxu0 0.0
        %3341 = vmatprep.subr.mxu0 0.0
        %3342 = vmatpush1.msra.mxu0 0.0
        %3343 = vmatprep.subr.mxu0 0.0
        %3344 = vmatpush1.msra.mxu0 0.0
        %3345 = vmatprep.subr.mxu0 0.0
        %3346 = vmatpush1.msra.mxu0 0.0
        %3347 = vmatprep.subr.mxu0 0.0
        %3348 = vmatpush1.msra.mxu0 0.0
        %3349 = vmatprep.subr.mxu0 0.0
        %3350 = vmatpush1.msra.mxu0 0.0
        %3351 = vmatprep.mubr.f32.mxu0 0.0
        %3352 = vmatmul.mubr.f32.gmra.mrb[0].mxu0 %v3264
        %v3353 = vpop.f32.mrb[0].mxu0
        %v3354 = vadd.f32 0.0, %v3353
        %v3355 = vpop.f32.mrb[0].mxu0
        %3356 = vmatprep.mubr.f32.mxu0 0.0
        %3357 = vmatmul.mubr.f32.gmra.mrb[0].mxu0 %v3267
        %v3358 = vpop.f32.mrb[0].mxu0
        %v3359 = vadd.f32 0.0, %v3358
        %v3360 = vpop.f32.mrb[0].mxu0
        %3361 = vmatprep.mubr.f32.mxu0 0.0
        %3362 = vmatmul.mubr.f32.gmra.mrb[0].mxu0 %v3270
        %v3363 = vpop.f32.mrb[0].mxu0
        %v3364 = vadd.f32 0.0, %v3363
        %v3365 = vpop.f32.mrb[0].mxu0
        %3366 = vmatprep.mubr.f32.mxu0 0.0
        %3367 = vmatmul.mubr.f32.gmra.mrb[0].mxu0 %v3273
        %v3368 = vpop.f32.mrb[0].mxu0
        %v3369 = vadd.f32 0.0, %v3368
        %v3370 = vpop.f32.mrb[0].mxu0
        %3371 = vmatprep.mubr.f32.mxu0 0.0
        %3372 = vmatmul.mubr.f32.gmra.mrb[0].mxu0 %v3276
        %v3373 = vpop.f32.mrb[0].mxu0
        %v3374 = vadd.f32 0.0, %v3373
        %v3375 = vpop.f32.mrb[0].mxu0
        %3376 = vmatprep.mubr.f32.mxu0 0.0
        %3377 = vmatmul.mubr.f32.gmra.mrb[0].mxu0 %v3279
        %v3378 = vpop.f32.mrb[0].mxu0
        %v3379 = vadd.f32 0.0, %v3378
        %v3380 = vpop.f32.mrb[0].mxu0
        %3381 = vmatprep.mubr.f32.mxu0 0.0
        %3382 = vmatmul.mubr.f32.gmra.mrb[0].mxu0 %v3282
        %v3383 = vpop.f32.mrb[0].mxu0
        %v3384 = vadd.f32 0.0, %v3383
        %v3385 = vpop.f32.mrb[0].mxu0
        %3386 = vmatprep.mubr.f32.mxu0 0.0
        %3387 = vmatmul.mubr.f32.gmra.mrb[0].mxu0 %v3285
        %v3388 = vpop.f32.mrb[0].mxu0
        %v3389 = vadd.f32 0.0, %v3388
        %v3390 = vpop.f32.mrb[0].mxu0
        %3391 = vdwg.mxu0
        %v3393 = vsel %vm3262, %v3110, 0
        %v3396 = vsel %vm3262, %v3115, 0
        %v3399 = vsel %vm3262, %v3120, 0
        %v3402 = vsel %vm3262, %v3125, 0
        %v3405 = vsel %vm3262, %v3130, 0
        %v3408 = vsel %vm3262, %v3135, 0
        %v3411 = vsel %vm3262, %v3140, 0
        %v3414 = vsel %vm3262, %v3145, 0
        %3416 = vmatprep.subr.mxu0 0.0
        %3417 = vmatpush1.msra.mxu0 %v3148
        %3418 = vmatprep.subr.mxu0 0.0
        %3419 = vmatpush1.msra.mxu0 %v3149
        %3420 = vmatprep.subr.mxu0 0.0
        %3421 = vmatpush1.msra.mxu0 %v3150
        %3422 = vmatprep.subr.mxu0 0.0
        %3423 = vmatpush1.msra.mxu0 %v3151
        %3424 = vmatprep.subr.mxu0 0.0
        %3425 = vmatpush1.msra.mxu0 0.0
        %3426 = vmatprep.subr.mxu0 0.0
        %3427 = vmatpush1.msra.mxu0 0.0
        %3428 = vmatprep.subr.mxu0 0.0
        %3429 = vmatpush1.msra.mxu0 0.0
        %3430 = vmatprep.subr.mxu0 0.0
        %3431 = vmatpush1.msra.mxu0 0.0
        %3432 = vmatprep.subr.mxu0 0.0
        %3433 = vmatpush1.msra.mxu0 0.0
        %3434 = vmatprep.subr.mxu0 0.0
        %3435 = vmatpush1.msra.mxu0 0.0
        %3436 = vmatprep.subr.mxu0 0.0
        %3437 = vmatpush1.msra.mxu0 0.0
        %3438 = vmatprep.subr.mxu0 0.0
        %3439 = vmatpush1.msra.mxu0 0.0
        %3440 = vmatprep.subr.mxu0 0.0
        %3441 = vmatpush1.msra.mxu0 0.0
        %3442 = vmatprep.subr.mxu0 0.0
        %3443 = vmatpush1.msra.mxu0 0.0
        %3444 = vmatprep.subr.mxu0 0.0
        %3445 = vmatpush1.msra.mxu0 0.0
        %3446 = vmatprep.subr.mxu0 0.0
        %3447 = vmatpush1.msra.mxu0 0.0
        %3448 = vmatprep.subr.mxu0 0.0
        %3449 = vmatpush1.msra.mxu0 0.0
        %3450 = vmatprep.subr.mxu0 0.0
        %3451 = vmatpush1.msra.mxu0 0.0
        %3452 = vmatprep.subr.mxu0 0.0
        %3453 = vmatpush1.msra.mxu0 0.0
        %3454 = vmatprep.subr.mxu0 0.0
        %3455 = vmatpush1.msra.mxu0 0.0
        %3456 = vmatprep.subr.mxu0 0.0
        %3457 = vmatpush1.msra.mxu0 0.0
        %3458 = vmatprep.subr.mxu0 0.0
        %3459 = vmatpush1.msra.mxu0 0.0
        %3460 = vmatprep.subr.mxu0 0.0
        %3461 = vmatpush1.msra.mxu0 0.0
        %3462 = vmatprep.subr.mxu0 0.0
        %3463 = vmatpush1.msra.mxu0 0.0
        %3464 = vmatprep.subr.mxu0 0.0
        %3465 = vmatpush1.msra.mxu0 0.0
        %3466 = vmatprep.subr.mxu0 0.0
        %3467 = vmatpush1.msra.mxu0 0.0
        %3468 = vmatprep.subr.mxu0 0.0
        %3469 = vmatpush1.msra.mxu0 0.0
        %3470 = vmatprep.subr.mxu0 0.0
        %3471 = vmatpush1.msra.mxu0 0.0
        %3472 = vmatprep.subr.mxu0 0.0
        %3473 = vmatpush1.msra.mxu0 0.0
        %3474 = vmatprep.subr.mxu0 0.0
        %3475 = vmatpush1.msra.mxu0 0.0
        %3476 = vmatprep.subr.mxu0 0.0
        %3477 = vmatpush1.msra.mxu0 0.0
        %3478 = vmatprep.subr.mxu0 0.0
        %3479 = vmatpush1.msra.mxu0 0.0
        %3480 = vmatprep.mubr.f32.mxu0 0.0
        %3481 = vmatmul.mubr.f32.gmra.mrb[0].mxu0 %v3393
        %v3482 = vpop.f32.mrb[0].mxu0
        %v3483 = vadd.f32 %v3354, %v3482
        %v3484 = vpop.f32.mrb[0].mxu0
        %3485 = vmatprep.mubr.f32.mxu0 0.0
        %3486 = vmatmul.mubr.f32.gmra.mrb[0].mxu0 %v3396
        %v3487 = vpop.f32.mrb[0].mxu0
        %v3488 = vadd.f32 %v3359, %v3487
        %v3489 = vpop.f32.mrb[0].mxu0
        %3490 = vmatprep.mubr.f32.mxu0 0.0
        %3491 = vmatmul.mubr.f32.gmra.mrb[0].mxu0 %v3399
        %v3492 = vpop.f32.mrb[0].mxu0
        %v3493 = vadd.f32 %v3364, %v3492
        %v3494 = vpop.f32.mrb[0].mxu0
        %3495 = vmatprep.mubr.f32.mxu0 0.0
        %3496 = vmatmul.mubr.f32.gmra.mrb[0].mxu0 %v3402
        %v3497 = vpop.f32.mrb[0].mxu0
        %v3498 = vadd.f32 %v3369, %v3497
        %v3499 = vpop.f32.mrb[0].mxu0
        %3500 = vmatprep.mubr.f32.mxu0 0.0
        %3501 = vmatmul.mubr.f32.gmra.mrb[0].mxu0 %v3405
        %v3502 = vpop.f32.mrb[0].mxu0
        %v3503 = vadd.f32 %v3374, %v3502
        %v3504 = vpop.f32.mrb[0].mxu0
        %3505 = vmatprep.mubr.f32.mxu0 0.0
        %3506 = vmatmul.mubr.f32.gmra.mrb[0].mxu0 %v3408
        %v3507 = vpop.f32.mrb[0].mxu0
        %v3508 = vadd.f32 %v3379, %v3507
        %v3509 = vpop.f32.mrb[0].mxu0
        %3510 = vmatprep.mubr.f32.mxu0 0.0
        %3511 = vmatmul.mubr.f32.gmra.mrb[0].mxu0 %v3411
        %v3512 = vpop.f32.mrb[0].mxu0
        %v3513 = vadd.f32 %v3384, %v3512
        %v3514 = vpop.f32.mrb[0].mxu0
        %3515 = vmatprep.mubr.f32.mxu0 0.0
        %3516 = vmatmul.mubr.f32.gmra.mrb[0].mxu0 %v3414
        %v3517 = vpop.f32.mrb[0].mxu0
        %v3518 = vadd.f32 %v3389, %v3517
        %v3519 = vpop.f32.mrb[0].mxu0
        %3520 = vdwg.mxu0
        %3521 = vmatprep.subr.mxu0 0.0
        %3522 = vmatpush1.msra.mxu0 %v3035
        %3523 = vmatprep.subr.mxu0 0.0
        %3524 = vmatpush1.msra.mxu0 %v3036
        %3525 = vmatprep.subr.mxu0 0.0
        %3526 = vmatpush1.msra.mxu0 %v3037
        %3527 = vmatprep.subr.mxu0 0.0
        %3528 = vmatpush1.msra.mxu0 %v3038
        %3529 = vmatprep.subr.mxu0 0.0
        %3530 = vmatpush1.msra.mxu0 %v3039
        %3531 = vmatprep.subr.mxu0 0.0
        %3532 = vmatpush1.msra.mxu0 %v3040
        %3533 = vmatprep.subr.mxu0 0.0
        %3534 = vmatpush1.msra.mxu0 %v3041
        %3535 = vmatprep.subr.mxu0 0.0
        %3536 = vmatpush1.msra.mxu0 %v3042
        %3537 = vmatprep.subr.mxu0 0.0
        %3538 = vmatpush1.msra.mxu0 0.0
        %3539 = vmatprep.subr.mxu0 0.0
        %3540 = vmatpush1.msra.mxu0 0.0
        %3541 = vmatprep.subr.mxu0 0.0
        %3542 = vmatpush1.msra.mxu0 0.0
        %3543 = vmatprep.subr.mxu0 0.0
        %3544 = vmatpush1.msra.mxu0 0.0
        %3545 = vmatprep.subr.mxu0 0.0
        %3546 = vmatpush1.msra.mxu0 0.0
        %3547 = vmatprep.subr.mxu0 0.0
        %3548 = vmatpush1.msra.mxu0 0.0
        %3549 = vmatprep.subr.mxu0 0.0
        %3550 = vmatpush1.msra.mxu0 0.0
        %3551 = vmatprep.subr.mxu0 0.0
        %3552 = vmatpush1.msra.mxu0 0.0
        %3553 = vmatprep.subr.mxu0 0.0
        %3554 = vmatpush1.msra.mxu0 0.0
        %3555 = vmatprep.subr.mxu0 0.0
        %3556 = vmatpush1.msra.mxu0 0.0
        %3557 = vmatprep.subr.mxu0 0.0
        %3558 = vmatpush1.msra.mxu0 0.0
        %3559 = vmatprep.subr.mxu0 0.0
        %3560 = vmatpush1.msra.mxu0 0.0
        %3561 = vmatprep.subr.mxu0 0.0
        %3562 = vmatpush1.msra.mxu0 0.0
        %3563 = vmatprep.subr.mxu0 0.0
        %3564 = vmatpush1.msra.mxu0 0.0
        %3565 = vmatprep.subr.mxu0 0.0
        %3566 = vmatpush1.msra.mxu0 0.0
        %3567 = vmatprep.subr.mxu0 0.0
        %3568 = vmatpush1.msra.mxu0 0.0
        %3569 = vmatprep.subr.mxu0 0.0
        %3570 = vmatpush1.msra.mxu0 0.0
        %3571 = vmatprep.subr.mxu0 0.0
        %3572 = vmatpush1.msra.mxu0 0.0
        %3573 = vmatprep.subr.mxu0 0.0
        %3574 = vmatpush1.msra.mxu0 0.0
        %3575 = vmatprep.subr.mxu0 0.0
        %3576 = vmatpush1.msra.mxu0 0.0
        %3577 = vmatprep.subr.mxu0 0.0
        %3578 = vmatpush1.msra.mxu0 0.0
        %3579 = vmatprep.subr.mxu0 0.0
        %3580 = vmatpush1.msra.mxu0 0.0
        %3581 = vmatprep.subr.mxu0 0.0
        %3582 = vmatpush1.msra.mxu0 0.0
        %3583 = vmatprep.subr.mxu0 0.0
        %3584 = vmatpush1.msra.mxu0 0.0
        %3585 = vmatprep.mubr.f32.mxu0 0.0
        %3586 = vmatmul.mubr.f32.gmra.mrb[0].mxu0 %v1055
        %v3587 = vpop.f32.mrb[0].mxu0
        %v3588 = vadd.f32 0.0, %v3587
        %v3589 = vpop.f32.mrb[0].mxu0
        %3590 = vmatprep.mubr.f32.mxu0 0.0
        %3591 = vmatmul.mubr.f32.gmra.mrb[0].mxu0 %v1058
        %v3592 = vpop.f32.mrb[0].mxu0
        %v3593 = vadd.f32 0.0, %v3592
        %v3594 = vpop.f32.mrb[0].mxu0
        %3595 = vmatprep.mubr.f32.mxu0 0.0
        %3596 = vmatmul.mubr.f32.gmra.mrb[0].mxu0 %v1061
        %v3597 = vpop.f32.mrb[0].mxu0
        %v3598 = vadd.f32 0.0, %v3597
        %v3599 = vpop.f32.mrb[0].mxu0
        %3600 = vmatprep.mubr.f32.mxu0 0.0
        %3601 = vmatmul.mubr.f32.gmra.mrb[0].mxu0 %v1064
        %v3602 = vpop.f32.mrb[0].mxu0
        %v3603 = vadd.f32 0.0, %v3602
        %v3604 = vpop.f32.mrb[0].mxu0
        %3605 = vmatprep.mubr.f32.mxu0 0.0
        %3606 = vmatmul.mubr.f32.gmra.mrb[0].mxu0 %v1067
        %v3607 = vpop.f32.mrb[0].mxu0
        %v3608 = vadd.f32 0.0, %v3607
        %v3609 = vpop.f32.mrb[0].mxu0
        %3610 = vmatprep.mubr.f32.mxu0 0.0
        %3611 = vmatmul.mubr.f32.gmra.mrb[0].mxu0 %v1070
        %v3612 = vpop.f32.mrb[0].mxu0
        %v3613 = vadd.f32 0.0, %v3612
        %v3614 = vpop.f32.mrb[0].mxu0
        %3615 = vmatprep.mubr.f32.mxu0 0.0
        %3616 = vmatmul.mubr.f32.gmra.mrb[0].mxu0 %v1073
        %v3617 = vpop.f32.mrb[0].mxu0
        %v3618 = vadd.f32 0.0, %v3617
        %v3619 = vpop.f32.mrb[0].mxu0
        %3620 = vmatprep.mubr.f32.mxu0 0.0
        %3621 = vmatmul.mubr.f32.gmra.mrb[0].mxu0 %v1076
        %v3622 = vpop.f32.mrb[0].mxu0
        %v3623 = vadd.f32 0.0, %v3622
        %v3624 = vpop.f32.mrb[0].mxu0
        %3625 = vdwg.mxu0
        %s3626 = scalar_lea.vmem %s5, 64
        %v3627 = vld [vmem:[%s3626] sm:$0xff]
        %v3628 = vld [vmem:[%s3626 + $0x8] sm:$0xff]
        %v3629 = vld [vmem:[%s3626 + $0x10] sm:$0xff]
        %v3630 = vld [vmem:[%s3626 + $0x18] sm:$0xff]
        %v3632 = vsel %vm3262, %v3588, 0
        %v3635 = vsel %vm3262, %v3593, 0
        %v3638 = vsel %vm3262, %v3598, 0
        %v3641 = vsel %vm3262, %v3603, 0
        %v3644 = vsel %vm3262, %v3608, 0
        %v3647 = vsel %vm3262, %v3613, 0
        %v3650 = vsel %vm3262, %v3618, 0
        %v3653 = vsel %vm3262, %v3623, 0
        %3655 = vmatprep.subr.mxu0 0.0
        %3656 = vmatpush1.msra.mxu0 %v3627
        %3657 = vmatprep.subr.mxu0 0.0
        %3658 = vmatpush1.msra.mxu0 %v3628
        %3659 = vmatprep.subr.mxu0 0.0
        %3660 = vmatpush1.msra.mxu0 %v3629
        %3661 = vmatprep.subr.mxu0 0.0
        %3662 = vmatpush1.msra.mxu0 %v3630
        %3663 = vmatprep.subr.mxu0 0.0
        %3664 = vmatpush1.msra.mxu0 0.0
        %3665 = vmatprep.subr.mxu0 0.0
        %3666 = vmatpush1.msra.mxu0 0.0
        %3667 = vmatprep.subr.mxu0 0.0
        %3668 = vmatpush1.msra.mxu0 0.0
        %3669 = vmatprep.subr.mxu0 0.0
        %3670 = vmatpush1.msra.mxu0 0.0
        %3671 = vmatprep.subr.mxu0 0.0
        %3672 = vmatpush1.msra.mxu0 0.0
        %3673 = vmatprep.subr.mxu0 0.0
        %3674 = vmatpush1.msra.mxu0 0.0
        %3675 = vmatprep.subr.mxu0 0.0
        %3676 = vmatpush1.msra.mxu0 0.0
        %3677 = vmatprep.subr.mxu0 0.0
        %3678 = vmatpush1.msra.mxu0 0.0
        %3679 = vmatprep.subr.mxu0 0.0
        %3680 = vmatpush1.msra.mxu0 0.0
        %3681 = vmatprep.subr.mxu0 0.0
        %3682 = vmatpush1.msra.mxu0 0.0
        %3683 = vmatprep.subr.mxu0 0.0
        %3684 = vmatpush1.msra.mxu0 0.0
        %3685 = vmatprep.subr.mxu0 0.0
        %3686 = vmatpush1.msra.mxu0 0.0
        %3687 = vmatprep.subr.mxu0 0.0
        %3688 = vmatpush1.msra.mxu0 0.0
        %3689 = vmatprep.subr.mxu0 0.0
        %3690 = vmatpush1.msra.mxu0 0.0
        %3691 = vmatprep.subr.mxu0 0.0
        %3692 = vmatpush1.msra.mxu0 0.0
        %3693 = vmatprep.subr.mxu0 0.0
        %3694 = vmatpush1.msra.mxu0 0.0
        %3695 = vmatprep.subr.mxu0 0.0
        %3696 = vmatpush1.msra.mxu0 0.0
        %3697 = vmatprep.subr.mxu0 0.0
        %3698 = vmatpush1.msra.mxu0 0.0
        %3699 = vmatprep.subr.mxu0 0.0
        %3700 = vmatpush1.msra.mxu0 0.0
        %3701 = vmatprep.subr.mxu0 0.0
        %3702 = vmatpush1.msra.mxu0 0.0
        %3703 = vmatprep.subr.mxu0 0.0
        %3704 = vmatpush1.msra.mxu0 0.0
        %3705 = vmatprep.subr.mxu0 0.0
        %3706 = vmatpush1.msra.mxu0 0.0
        %3707 = vmatprep.subr.mxu0 0.0
        %3708 = vmatpush1.msra.mxu0 0.0
        %3709 = vmatprep.subr.mxu0 0.0
        %3710 = vmatpush1.msra.mxu0 0.0
        %3711 = vmatprep.subr.mxu0 0.0
        %3712 = vmatpush1.msra.mxu0 0.0
        %3713 = vmatprep.subr.mxu0 0.0
        %3714 = vmatpush1.msra.mxu0 0.0
        %3715 = vmatprep.subr.mxu0 0.0
        %3716 = vmatpush1.msra.mxu0 0.0
        %3717 = vmatprep.subr.mxu0 0.0
        %3718 = vmatpush1.msra.mxu0 0.0
        %3719 = vmatprep.mubr.f32.mxu0 0.0
        %3720 = vmatmul.mubr.f32.gmra.mrb[0].mxu0 %v3632
        %v3721 = vpop.f32.mrb[0].mxu0
        %v3722 = vadd.f32 0.0, %v3721
        %v3723 = vpop.f32.mrb[0].mxu0
        %3724 = vmatprep.mubr.f32.mxu0 0.0
        %3725 = vmatmul.mubr.f32.gmra.mrb[0].mxu0 %v3635
        %v3726 = vpop.f32.mrb[0].mxu0
        %v3727 = vadd.f32 0.0, %v3726
        %v3728 = vpop.f32.mrb[0].mxu0
        %3729 = vmatprep.mubr.f32.mxu0 0.0
        %3730 = vmatmul.mubr.f32.gmra.mrb[0].mxu0 %v3638
        %v3731 = vpop.f32.mrb[0].mxu0
        %v3732 = vadd.f32 0.0, %v3731
        %v3733 = vpop.f32.mrb[0].mxu0
        %3734 = vmatprep.mubr.f32.mxu0 0.0
        %3735 = vmatmul.mubr.f32.gmra.mrb[0].mxu0 %v3641
        %v3736 = vpop.f32.mrb[0].mxu0
        %v3737 = vadd.f32 0.0, %v3736
        %v3738 = vpop.f32.mrb[0].mxu0
        %3739 = vmatprep.mubr.f32.mxu0 0.0
        %3740 = vmatmul.mubr.f32.gmra.mrb[0].mxu0 %v3644
        %v3741 = vpop.f32.mrb[0].mxu0
        %v3742 = vadd.f32 0.0, %v3741
        %v3743 = vpop.f32.mrb[0].mxu0
        %3744 = vmatprep.mubr.f32.mxu0 0.0
        %3745 = vmatmul.mubr.f32.gmra.mrb[0].mxu0 %v3647
        %v3746 = vpop.f32.mrb[0].mxu0
        %v3747 = vadd.f32 0.0, %v3746
        %v3748 = vpop.f32.mrb[0].mxu0
        %3749 = vmatprep.mubr.f32.mxu0 0.0
        %3750 = vmatmul.mubr.f32.gmra.mrb[0].mxu0 %v3650
        %v3751 = vpop.f32.mrb[0].mxu0
        %v3752 = vadd.f32 0.0, %v3751
        %v3753 = vpop.f32.mrb[0].mxu0
        %3754 = vmatprep.mubr.f32.mxu0 0.0
        %3755 = vmatmul.mubr.f32.gmra.mrb[0].mxu0 %v3653
        %v3756 = vpop.f32.mrb[0].mxu0
        %v3757 = vadd.f32 0.0, %v3756
        %v3758 = vpop.f32.mrb[0].mxu0
        %3759 = vdwg.mxu0
        %v3760 = vadd.f32 %v3483, %v3722
        %v3761 = vadd.f32 %v3488, %v3727
        %v3762 = vadd.f32 %v3493, %v3732
        %v3763 = vadd.f32 %v3498, %v3737
        %v3764 = vadd.f32 %v3503, %v3742
        %v3765 = vadd.f32 %v3508, %v3747
        %v3766 = vadd.f32 %v3513, %v3752
        %v3767 = vadd.f32 %v3518, %v3757
        %3768 = vmatprep.subr.mxu0 0.0
        %3769 = vmatpush1.msra.mxu0 %v3035
        %3770 = vmatprep.subr.mxu0 0.0
        %3771 = vmatpush1.msra.mxu0 %v3036
        %3772 = vmatprep.subr.mxu0 0.0
        %3773 = vmatpush1.msra.mxu0 %v3037
        %3774 = vmatprep.subr.mxu0 0.0
        %3775 = vmatpush1.msra.mxu0 %v3038
        %3776 = vmatprep.subr.mxu0 0.0
        %3777 = vmatpush1.msra.mxu0 %v3039
        %3778 = vmatprep.subr.mxu0 0.0
        %3779 = vmatpush1.msra.mxu0 %v3040
        %3780 = vmatprep.subr.mxu0 0.0
        %3781 = vmatpush1.msra.mxu0 %v3041
        %3782 = vmatprep.subr.mxu0 0.0
        %3783 = vmatpush1.msra.mxu0 %v3042
        %3784 = vmatprep.subr.mxu0 0.0
        %3785 = vmatpush1.msra.mxu0 0.0
        %3786 = vmatprep.subr.mxu0 0.0
        %3787 = vmatpush1.msra.mxu0 0.0
        %3788 = vmatprep.subr.mxu0 0.0
        %3789 = vmatpush1.msra.mxu0 0.0
        %3790 = vmatprep.subr.mxu0 0.0
        %3791 = vmatpush1.msra.mxu0 0.0
        %3792 = vmatprep.subr.mxu0 0.0
        %3793 = vmatpush1.msra.mxu0 0.0
        %3794 = vmatprep.subr.mxu0 0.0
        %3795 = vmatpush1.msra.mxu0 0.0
        %3796 = vmatprep.subr.mxu0 0.0
        %3797 = vmatpush1.msra.mxu0 0.0
        %3798 = vmatprep.subr.mxu0 0.0
        %3799 = vmatpush1.msra.mxu0 0.0
        %3800 = vmatprep.subr.mxu0 0.0
        %3801 = vmatpush1.msra.mxu0 0.0
        %3802 = vmatprep.subr.mxu0 0.0
        %3803 = vmatpush1.msra.mxu0 0.0
        %3804 = vmatprep.subr.mxu0 0.0
        %3805 = vmatpush1.msra.mxu0 0.0
        %3806 = vmatprep.subr.mxu0 0.0
        %3807 = vmatpush1.msra.mxu0 0.0
        %3808 = vmatprep.subr.mxu0 0.0
        %3809 = vmatpush1.msra.mxu0 0.0
        %3810 = vmatprep.subr.mxu0 0.0
        %3811 = vmatpush1.msra.mxu0 0.0
        %3812 = vmatprep.subr.mxu0 0.0
        %3813 = vmatpush1.msra.mxu0 0.0
        %3814 = vmatprep.subr.mxu0 0.0
        %3815 = vmatpush1.msra.mxu0 0.0
        %3816 = vmatprep.subr.mxu0 0.0
        %3817 = vmatpush1.msra.mxu0 0.0
        %3818 = vmatprep.subr.mxu0 0.0
        %3819 = vmatpush1.msra.mxu0 0.0
        %3820 = vmatprep.subr.mxu0 0.0
        %3821 = vmatpush1.msra.mxu0 0.0
        %3822 = vmatprep.subr.mxu0 0.0
        %3823 = vmatpush1.msra.mxu0 0.0
        %3824 = vmatprep.subr.mxu0 0.0
        %3825 = vmatpush1.msra.mxu0 0.0
        %3826 = vmatprep.subr.mxu0 0.0
        %3827 = vmatpush1.msra.mxu0 0.0
        %3828 = vmatprep.subr.mxu0 0.0
        %3829 = vmatpush1.msra.mxu0 0.0
        %3830 = vmatprep.subr.mxu0 0.0
        %3831 = vmatpush1.msra.mxu0 0.0
        %3832 = vmatprep.mubr.f32.mxu0 0.0
        %3833 = vmatmul.mubr.f32.gmra.mrb[0].mxu0 %v1335
        %v3834 = vpop.f32.mrb[0].mxu0
        %v3835 = vadd.f32 0.0, %v3834
        %v3836 = vpop.f32.mrb[0].mxu0
        %3837 = vmatprep.mubr.f32.mxu0 0.0
        %3838 = vmatmul.mubr.f32.gmra.mrb[0].mxu0 %v1338
        %v3839 = vpop.f32.mrb[0].mxu0
        %v3840 = vadd.f32 0.0, %v3839
        %v3841 = vpop.f32.mrb[0].mxu0
        %3842 = vmatprep.mubr.f32.mxu0 0.0
        %3843 = vmatmul.mubr.f32.gmra.mrb[0].mxu0 %v1341
        %v3844 = vpop.f32.mrb[0].mxu0
        %v3845 = vadd.f32 0.0, %v3844
        %v3846 = vpop.f32.mrb[0].mxu0
        %3847 = vmatprep.mubr.f32.mxu0 0.0
        %3848 = vmatmul.mubr.f32.gmra.mrb[0].mxu0 %v1344
        %v3849 = vpop.f32.mrb[0].mxu0
        %v3850 = vadd.f32 0.0, %v3849
        %v3851 = vpop.f32.mrb[0].mxu0
        %3852 = vmatprep.mubr.f32.mxu0 0.0
        %3853 = vmatmul.mubr.f32.gmra.mrb[0].mxu0 %v1347
        %v3854 = vpop.f32.mrb[0].mxu0
        %v3855 = vadd.f32 0.0, %v3854
        %v3856 = vpop.f32.mrb[0].mxu0
        %3857 = vmatprep.mubr.f32.mxu0 0.0
        %3858 = vmatmul.mubr.f32.gmra.mrb[0].mxu0 %v1350
        %v3859 = vpop.f32.mrb[0].mxu0
        %v3860 = vadd.f32 0.0, %v3859
        %v3861 = vpop.f32.mrb[0].mxu0
        %3862 = vmatprep.mubr.f32.mxu0 0.0
        %3863 = vmatmul.mubr.f32.gmra.mrb[0].mxu0 %v1353
        %v3864 = vpop.f32.mrb[0].mxu0
        %v3865 = vadd.f32 0.0, %v3864
        %v3866 = vpop.f32.mrb[0].mxu0
        %3867 = vmatprep.mubr.f32.mxu0 0.0
        %3868 = vmatmul.mubr.f32.gmra.mrb[0].mxu0 %v1356
        %v3869 = vpop.f32.mrb[0].mxu0
        %v3870 = vadd.f32 0.0, %v3869
        %v3871 = vpop.f32.mrb[0].mxu0
        %3872 = vdwg.mxu0
        %s3873 = scalar_lea.vmem %s5, 96
        %v3874 = vld [vmem:[%s3873] sm:$0xff]
        %v3875 = vld [vmem:[%s3873 + $0x8] sm:$0xff]
        %v3876 = vld [vmem:[%s3873 + $0x10] sm:$0xff]
        %v3877 = vld [vmem:[%s3873 + $0x18] sm:$0xff]
        %v3879 = vsel %vm3262, %v3835, 0
        %v3882 = vsel %vm3262, %v3840, 0
        %v3885 = vsel %vm3262, %v3845, 0
        %v3888 = vsel %vm3262, %v3850, 0
        %v3891 = vsel %vm3262, %v3855, 0
        %v3894 = vsel %vm3262, %v3860, 0
        %v3897 = vsel %vm3262, %v3865, 0
        %v3900 = vsel %vm3262, %v3870, 0
        %3902 = vmatprep.subr.mxu0 0.0
        %3903 = vmatpush1.msra.mxu0 %v3874
        %3904 = vmatprep.subr.mxu0 0.0
        %3905 = vmatpush1.msra.mxu0 %v3875
        %3906 = vmatprep.subr.mxu0 0.0
        %3907 = vmatpush1.msra.mxu0 %v3876
        %3908 = vmatprep.subr.mxu0 0.0
        %3909 = vmatpush1.msra.mxu0 %v3877
        %3910 = vmatprep.subr.mxu0 0.0
        %3911 = vmatpush1.msra.mxu0 0.0
        %3912 = vmatprep.subr.mxu0 0.0
        %3913 = vmatpush1.msra.mxu0 0.0
        %3914 = vmatprep.subr.mxu0 0.0
        %3915 = vmatpush1.msra.mxu0 0.0
        %3916 = vmatprep.subr.mxu0 0.0
        %3917 = vmatpush1.msra.mxu0 0.0
        %3918 = vmatprep.subr.mxu0 0.0
        %3919 = vmatpush1.msra.mxu0 0.0
        %3920 = vmatprep.subr.mxu0 0.0
        %3921 = vmatpush1.msra.mxu0 0.0
        %3922 = vmatprep.subr.mxu0 0.0
        %3923 = vmatpush1.msra.mxu0 0.0
        %3924 = vmatprep.subr.mxu0 0.0
        %3925 = vmatpush1.msra.mxu0 0.0
        %3926 = vmatprep.subr.mxu0 0.0
        %3927 = vmatpush1.msra.mxu0 0.0
        %3928 = vmatprep.subr.mxu0 0.0
        %3929 = vmatpush1.msra.mxu0 0.0
        %3930 = vmatprep.subr.mxu0 0.0
        %3931 = vmatpush1.msra.mxu0 0.0
        %3932 = vmatprep.subr.mxu0 0.0
        %3933 = vmatpush1.msra.mxu0 0.0
        %3934 = vmatprep.subr.mxu0 0.0
        %3935 = vmatpush1.msra.mxu0 0.0
        %3936 = vmatprep.subr.mxu0 0.0
        %3937 = vmatpush1.msra.mxu0 0.0
        %3938 = vmatprep.subr.mxu0 0.0
        %3939 = vmatpush1.msra.mxu0 0.0
        %3940 = vmatprep.subr.mxu0 0.0
        %3941 = vmatpush1.msra.mxu0 0.0
        %3942 = vmatprep.subr.mxu0 0.0
        %3943 = vmatpush1.msra.mxu0 0.0
        %3944 = vmatprep.subr.mxu0 0.0
        %3945 = vmatpush1.msra.mxu0 0.0
        %3946 = vmatprep.subr.mxu0 0.0
        %3947 = vmatpush1.msra.mxu0 0.0
        %3948 = vmatprep.subr.mxu0 0.0
        %3949 = vmatpush1.msra.mxu0 0.0
        %3950 = vmatprep.subr.mxu0 0.0
        %3951 = vmatpush1.msra.mxu0 0.0
        %3952 = vmatprep.subr.mxu0 0.0
        %3953 = vmatpush1.msra.mxu0 0.0
        %3954 = vmatprep.subr.mxu0 0.0
        %3955 = vmatpush1.msra.mxu0 0.0
        %3956 = vmatprep.subr.mxu0 0.0
        %3957 = vmatpush1.msra.mxu0 0.0
        %3958 = vmatprep.subr.mxu0 0.0
        %3959 = vmatpush1.msra.mxu0 0.0
        %3960 = vmatprep.subr.mxu0 0.0
        %3961 = vmatpush1.msra.mxu0 0.0
        %3962 = vmatprep.subr.mxu0 0.0
        %3963 = vmatpush1.msra.mxu0 0.0
        %3964 = vmatprep.subr.mxu0 0.0
        %3965 = vmatpush1.msra.mxu0 0.0
        %3966 = vmatprep.mubr.f32.mxu0 0.0
        %3967 = vmatmul.mubr.f32.gmra.mrb[0].mxu0 %v3879
        %v3968 = vpop.f32.mrb[0].mxu0
        %v3969 = vadd.f32 0.0, %v3968
        %v3970 = vpop.f32.mrb[0].mxu0
        %3971 = vmatprep.mubr.f32.mxu0 0.0
        %3972 = vmatmul.mubr.f32.gmra.mrb[0].mxu0 %v3882
        %v3973 = vpop.f32.mrb[0].mxu0
        %v3974 = vadd.f32 0.0, %v3973
        %v3975 = vpop.f32.mrb[0].mxu0
        %3976 = vmatprep.mubr.f32.mxu0 0.0
        %3977 = vmatmul.mubr.f32.gmra.mrb[0].mxu0 %v3885
        %v3978 = vpop.f32.mrb[0].mxu0
        %v3979 = vadd.f32 0.0, %v3978
        %v3980 = vpop.f32.mrb[0].mxu0
        %3981 = vmatprep.mubr.f32.mxu0 0.0
        %3982 = vmatmul.mubr.f32.gmra.mrb[0].mxu0 %v3888
        %v3983 = vpop.f32.mrb[0].mxu0
        %v3984 = vadd.f32 0.0, %v3983
        %v3985 = vpop.f32.mrb[0].mxu0
        %3986 = vmatprep.mubr.f32.mxu0 0.0
        %3987 = vmatmul.mubr.f32.gmra.mrb[0].mxu0 %v3891
        %v3988 = vpop.f32.mrb[0].mxu0
        %v3989 = vadd.f32 0.0, %v3988
        %v3990 = vpop.f32.mrb[0].mxu0
        %3991 = vmatprep.mubr.f32.mxu0 0.0
        %3992 = vmatmul.mubr.f32.gmra.mrb[0].mxu0 %v3894
        %v3993 = vpop.f32.mrb[0].mxu0
        %v3994 = vadd.f32 0.0, %v3993
        %v3995 = vpop.f32.mrb[0].mxu0
        %3996 = vmatprep.mubr.f32.mxu0 0.0
        %3997 = vmatmul.mubr.f32.gmra.mrb[0].mxu0 %v3897
        %v3998 = vpop.f32.mrb[0].mxu0
        %v3999 = vadd.f32 0.0, %v3998
        %v4000 = vpop.f32.mrb[0].mxu0
        %4001 = vmatprep.mubr.f32.mxu0 0.0
        %4002 = vmatmul.mubr.f32.gmra.mrb[0].mxu0 %v3900
        %v4003 = vpop.f32.mrb[0].mxu0
        %v4004 = vadd.f32 0.0, %v4003
        %v4005 = vpop.f32.mrb[0].mxu0
        %4006 = vdwg.mxu0
        %v4007 = vadd.f32 %v3760, %v3969
        %v4008 = vadd.f32 %v3761, %v3974
        %v4009 = vadd.f32 %v3762, %v3979
        %v4010 = vadd.f32 %v3763, %v3984
        %v4011 = vadd.f32 %v3764, %v3989
        %v4012 = vadd.f32 %v3765, %v3994
        %v4013 = vadd.f32 %v3766, %v3999
        %v4014 = vadd.f32 %v3767, %v4004
        %4015 = vmatprep.subr.mxu0 0.0
        %4016 = vmatpush1.msra.mxu0 %v3035
        %4017 = vmatprep.subr.mxu0 0.0
        %4018 = vmatpush1.msra.mxu0 %v3036
        %4019 = vmatprep.subr.mxu0 0.0
        %4020 = vmatpush1.msra.mxu0 %v3037
        %4021 = vmatprep.subr.mxu0 0.0
        %4022 = vmatpush1.msra.mxu0 %v3038
        %4023 = vmatprep.subr.mxu0 0.0
        %4024 = vmatpush1.msra.mxu0 %v3039
        %4025 = vmatprep.subr.mxu0 0.0
        %4026 = vmatpush1.msra.mxu0 %v3040
        %4027 = vmatprep.subr.mxu0 0.0
        %4028 = vmatpush1.msra.mxu0 %v3041
        %4029 = vmatprep.subr.mxu0 0.0
        %4030 = vmatpush1.msra.mxu0 %v3042
        %4031 = vmatprep.subr.mxu0 0.0
        %4032 = vmatpush1.msra.mxu0 0.0
        %4033 = vmatprep.subr.mxu0 0.0
        %4034 = vmatpush1.msra.mxu0 0.0
        %4035 = vmatprep.subr.mxu0 0.0
        %4036 = vmatpush1.msra.mxu0 0.0
        %4037 = vmatprep.subr.mxu0 0.0
        %4038 = vmatpush1.msra.mxu0 0.0
        %4039 = vmatprep.subr.mxu0 0.0
        %4040 = vmatpush1.msra.mxu0 0.0
        %4041 = vmatprep.subr.mxu0 0.0
        %4042 = vmatpush1.msra.mxu0 0.0
        %4043 = vmatprep.subr.mxu0 0.0
        %4044 = vmatpush1.msra.mxu0 0.0
        %4045 = vmatprep.subr.mxu0 0.0
        %4046 = vmatpush1.msra.mxu0 0.0
        %4047 = vmatprep.subr.mxu0 0.0
        %4048 = vmatpush1.msra.mxu0 0.0
        %4049 = vmatprep.subr.mxu0 0.0
        %4050 = vmatpush1.msra.mxu0 0.0
        %4051 = vmatprep.subr.mxu0 0.0
        %4052 = vmatpush1.msra.mxu0 0.0
        %4053 = vmatprep.subr.mxu0 0.0
        %4054 = vmatpush1.msra.mxu0 0.0
        %4055 = vmatprep.subr.mxu0 0.0
        %4056 = vmatpush1.msra.mxu0 0.0
        %4057 = vmatprep.subr.mxu0 0.0
        %4058 = vmatpush1.msra.mxu0 0.0
        %4059 = vmatprep.subr.mxu0 0.0
        %4060 = vmatpush1.msra.mxu0 0.0
        %4061 = vmatprep.subr.mxu0 0.0
        %4062 = vmatpush1.msra.mxu0 0.0
        %4063 = vmatprep.subr.mxu0 0.0
        %4064 = vmatpush1.msra.mxu0 0.0
        %4065 = vmatprep.subr.mxu0 0.0
        %4066 = vmatpush1.msra.mxu0 0.0
        %4067 = vmatprep.subr.mxu0 0.0
        %4068 = vmatpush1.msra.mxu0 0.0
        %4069 = vmatprep.subr.mxu0 0.0
        %4070 = vmatpush1.msra.mxu0 0.0
        %4071 = vmatprep.subr.mxu0 0.0
        %4072 = vmatpush1.msra.mxu0 0.0
        %4073 = vmatprep.subr.mxu0 0.0
        %4074 = vmatpush1.msra.mxu0 0.0
        %4075 = vmatprep.subr.mxu0 0.0
        %4076 = vmatpush1.msra.mxu0 0.0
        %4077 = vmatprep.subr.mxu0 0.0
        %4078 = vmatpush1.msra.mxu0 0.0
        %4079 = vmatprep.mubr.f32.mxu0 0.0
        %4080 = vmatmul.mubr.f32.gmra.mrb[0].mxu0 %v1615
        %v4081 = vpop.f32.mrb[0].mxu0
        %v4082 = vadd.f32 0.0, %v4081
        %v4083 = vpop.f32.mrb[0].mxu0
        %4084 = vmatprep.mubr.f32.mxu0 0.0
        %4085 = vmatmul.mubr.f32.gmra.mrb[0].mxu0 %v1618
        %v4086 = vpop.f32.mrb[0].mxu0
        %v4087 = vadd.f32 0.0, %v4086
        %v4088 = vpop.f32.mrb[0].mxu0
        %4089 = vmatprep.mubr.f32.mxu0 0.0
        %4090 = vmatmul.mubr.f32.gmra.mrb[0].mxu0 %v1621
        %v4091 = vpop.f32.mrb[0].mxu0
        %v4092 = vadd.f32 0.0, %v4091
        %v4093 = vpop.f32.mrb[0].mxu0
        %4094 = vmatprep.mubr.f32.mxu0 0.0
        %4095 = vmatmul.mubr.f32.gmra.mrb[0].mxu0 %v1624
        %v4096 = vpop.f32.mrb[0].mxu0
        %v4097 = vadd.f32 0.0, %v4096
        %v4098 = vpop.f32.mrb[0].mxu0
        %4099 = vmatprep.mubr.f32.mxu0 0.0
        %4100 = vmatmul.mubr.f32.gmra.mrb[0].mxu0 %v1627
        %v4101 = vpop.f32.mrb[0].mxu0
        %v4102 = vadd.f32 0.0, %v4101
        %v4103 = vpop.f32.mrb[0].mxu0
        %4104 = vmatprep.mubr.f32.mxu0 0.0
        %4105 = vmatmul.mubr.f32.gmra.mrb[0].mxu0 %v1630
        %v4106 = vpop.f32.mrb[0].mxu0
        %v4107 = vadd.f32 0.0, %v4106
        %v4108 = vpop.f32.mrb[0].mxu0
        %4109 = vmatprep.mubr.f32.mxu0 0.0
        %4110 = vmatmul.mubr.f32.gmra.mrb[0].mxu0 %v1633
        %v4111 = vpop.f32.mrb[0].mxu0
        %v4112 = vadd.f32 0.0, %v4111
        %v4113 = vpop.f32.mrb[0].mxu0
        %4114 = vmatprep.mubr.f32.mxu0 0.0
        %4115 = vmatmul.mubr.f32.gmra.mrb[0].mxu0 %v1636
        %v4116 = vpop.f32.mrb[0].mxu0
        %v4117 = vadd.f32 0.0, %v4116
        %v4118 = vpop.f32.mrb[0].mxu0
        %4119 = vdwg.mxu0
        %s4120 = scalar_lea.vmem %s5, 128
        %v4121 = vld [vmem:[%s4120] sm:$0xff]
        %v4122 = vld [vmem:[%s4120 + $0x8] sm:$0xff]
        %v4123 = vld [vmem:[%s4120 + $0x10] sm:$0xff]
        %v4124 = vld [vmem:[%s4120 + $0x18] sm:$0xff]
        %v4126 = vsel %vm3262, %v4082, 0
        %v4129 = vsel %vm3262, %v4087, 0
        %v4132 = vsel %vm3262, %v4092, 0
        %v4135 = vsel %vm3262, %v4097, 0
        %v4138 = vsel %vm3262, %v4102, 0
        %v4141 = vsel %vm3262, %v4107, 0
        %v4144 = vsel %vm3262, %v4112, 0
        %v4147 = vsel %vm3262, %v4117, 0
        %4149 = vmatprep.subr.mxu0 0.0
        %4150 = vmatpush1.msra.mxu0 %v4121
        %4151 = vmatprep.subr.mxu0 0.0
        %4152 = vmatpush1.msra.mxu0 %v4122
        %4153 = vmatprep.subr.mxu0 0.0
        %4154 = vmatpush1.msra.mxu0 %v4123
        %4155 = vmatprep.subr.mxu0 0.0
        %4156 = vmatpush1.msra.mxu0 %v4124
        %4157 = vmatprep.subr.mxu0 0.0
        %4158 = vmatpush1.msra.mxu0 0.0
        %4159 = vmatprep.subr.mxu0 0.0
        %4160 = vmatpush1.msra.mxu0 0.0
        %4161 = vmatprep.subr.mxu0 0.0
        %4162 = vmatpush1.msra.mxu0 0.0
        %4163 = vmatprep.subr.mxu0 0.0
        %4164 = vmatpush1.msra.mxu0 0.0
        %4165 = vmatprep.subr.mxu0 0.0
        %4166 = vmatpush1.msra.mxu0 0.0
        %4167 = vmatprep.subr.mxu0 0.0
        %4168 = vmatpush1.msra.mxu0 0.0
        %4169 = vmatprep.subr.mxu0 0.0
        %4170 = vmatpush1.msra.mxu0 0.0
        %4171 = vmatprep.subr.mxu0 0.0
        %4172 = vmatpush1.msra.mxu0 0.0
        %4173 = vmatprep.subr.mxu0 0.0
        %4174 = vmatpush1.msra.mxu0 0.0
        %4175 = vmatprep.subr.mxu0 0.0
        %4176 = vmatpush1.msra.mxu0 0.0
        %4177 = vmatprep.subr.mxu0 0.0
        %4178 = vmatpush1.msra.mxu0 0.0
        %4179 = vmatprep.subr.mxu0 0.0
        %4180 = vmatpush1.msra.mxu0 0.0
        %4181 = vmatprep.subr.mxu0 0.0
        %4182 = vmatpush1.msra.mxu0 0.0
        %4183 = vmatprep.subr.mxu0 0.0
        %4184 = vmatpush1.msra.mxu0 0.0
        %4185 = vmatprep.subr.mxu0 0.0
        %4186 = vmatpush1.msra.mxu0 0.0
        %4187 = vmatprep.subr.mxu0 0.0
        %4188 = vmatpush1.msra.mxu0 0.0
        %4189 = vmatprep.subr.mxu0 0.0
        %4190 = vmatpush1.msra.mxu0 0.0
        %4191 = vmatprep.subr.mxu0 0.0
        %4192 = vmatpush1.msra.mxu0 0.0
        %4193 = vmatprep.subr.mxu0 0.0
        %4194 = vmatpush1.msra.mxu0 0.0
        %4195 = vmatprep.subr.mxu0 0.0
        %4196 = vmatpush1.msra.mxu0 0.0
        %4197 = vmatprep.subr.mxu0 0.0
        %4198 = vmatpush1.msra.mxu0 0.0
        %4199 = vmatprep.subr.mxu0 0.0
        %4200 = vmatpush1.msra.mxu0 0.0
        %4201 = vmatprep.subr.mxu0 0.0
        %4202 = vmatpush1.msra.mxu0 0.0
        %4203 = vmatprep.subr.mxu0 0.0
        %4204 = vmatpush1.msra.mxu0 0.0
        %4205 = vmatprep.subr.mxu0 0.0
        %4206 = vmatpush1.msra.mxu0 0.0
        %4207 = vmatprep.subr.mxu0 0.0
        %4208 = vmatpush1.msra.mxu0 0.0
        %4209 = vmatprep.subr.mxu0 0.0
        %4210 = vmatpush1.msra.mxu0 0.0
        %4211 = vmatprep.subr.mxu0 0.0
        %4212 = vmatpush1.msra.mxu0 0.0
        %4213 = vmatprep.mubr.f32.mxu0 0.0
        %4214 = vmatmul.mubr.f32.gmra.mrb[0].mxu0 %v4126
        %v4215 = vpop.f32.mrb[0].mxu0
        %v4216 = vadd.f32 0.0, %v4215
        %v4217 = vpop.f32.mrb[0].mxu0
        %4218 = vmatprep.mubr.f32.mxu0 0.0
        %4219 = vmatmul.mubr.f32.gmra.mrb[0].mxu0 %v4129
        %v4220 = vpop.f32.mrb[0].mxu0
        %v4221 = vadd.f32 0.0, %v4220
        %v4222 = vpop.f32.mrb[0].mxu0
        %4223 = vmatprep.mubr.f32.mxu0 0.0
        %4224 = vmatmul.mubr.f32.gmra.mrb[0].mxu0 %v4132
        %v4225 = vpop.f32.mrb[0].mxu0
        %v4226 = vadd.f32 0.0, %v4225
        %v4227 = vpop.f32.mrb[0].mxu0
        %4228 = vmatprep.mubr.f32.mxu0 0.0
        %4229 = vmatmul.mubr.f32.gmra.mrb[0].mxu0 %v4135
        %v4230 = vpop.f32.mrb[0].mxu0
        %v4231 = vadd.f32 0.0, %v4230
        %v4232 = vpop.f32.mrb[0].mxu0
        %4233 = vmatprep.mubr.f32.mxu0 0.0
        %4234 = vmatmul.mubr.f32.gmra.mrb[0].mxu0 %v4138
        %v4235 = vpop.f32.mrb[0].mxu0
        %v4236 = vadd.f32 0.0, %v4235
        %v4237 = vpop.f32.mrb[0].mxu0
        %4238 = vmatprep.mubr.f32.mxu0 0.0
        %4239 = vmatmul.mubr.f32.gmra.mrb[0].mxu0 %v4141
        %v4240 = vpop.f32.mrb[0].mxu0
        %v4241 = vadd.f32 0.0, %v4240
        %v4242 = vpop.f32.mrb[0].mxu0
        %4243 = vmatprep.mubr.f32.mxu0 0.0
        %4244 = vmatmul.mubr.f32.gmra.mrb[0].mxu0 %v4144
        %v4245 = vpop.f32.mrb[0].mxu0
        %v4246 = vadd.f32 0.0, %v4245
        %v4247 = vpop.f32.mrb[0].mxu0
        %4248 = vmatprep.mubr.f32.mxu0 0.0
        %4249 = vmatmul.mubr.f32.gmra.mrb[0].mxu0 %v4147
        %v4250 = vpop.f32.mrb[0].mxu0
        %v4251 = vadd.f32 0.0, %v4250
        %v4252 = vpop.f32.mrb[0].mxu0
        %4253 = vdwg.mxu0
        %v4254 = vadd.f32 %v4007, %v4216
        %v4255 = vadd.f32 %v4008, %v4221
        %v4256 = vadd.f32 %v4009, %v4226
        %v4257 = vadd.f32 %v4010, %v4231
        %v4258 = vadd.f32 %v4011, %v4236
        %v4259 = vadd.f32 %v4012, %v4241
        %v4260 = vadd.f32 %v4013, %v4246
        %v4261 = vadd.f32 %v4014, %v4251
        %4262 = vmatprep.subr.mxu0 0.0
        %4263 = vmatpush1.msra.mxu0 %v3035
        %4264 = vmatprep.subr.mxu0 0.0
        %4265 = vmatpush1.msra.mxu0 %v3036
        %4266 = vmatprep.subr.mxu0 0.0
        %4267 = vmatpush1.msra.mxu0 %v3037
        %4268 = vmatprep.subr.mxu0 0.0
        %4269 = vmatpush1.msra.mxu0 %v3038
        %4270 = vmatprep.subr.mxu0 0.0
        %4271 = vmatpush1.msra.mxu0 %v3039
        %4272 = vmatprep.subr.mxu0 0.0
        %4273 = vmatpush1.msra.mxu0 %v3040
        %4274 = vmatprep.subr.mxu0 0.0
        %4275 = vmatpush1.msra.mxu0 %v3041
        %4276 = vmatprep.subr.mxu0 0.0
        %4277 = vmatpush1.msra.mxu0 %v3042
        %4278 = vmatprep.subr.mxu0 0.0
        %4279 = vmatpush1.msra.mxu0 0.0
        %4280 = vmatprep.subr.mxu0 0.0
        %4281 = vmatpush1.msra.mxu0 0.0
        %4282 = vmatprep.subr.mxu0 0.0
        %4283 = vmatpush1.msra.mxu0 0.0
        %4284 = vmatprep.subr.mxu0 0.0
        %4285 = vmatpush1.msra.mxu0 0.0
        %4286 = vmatprep.subr.mxu0 0.0
        %4287 = vmatpush1.msra.mxu0 0.0
        %4288 = vmatprep.subr.mxu0 0.0
        %4289 = vmatpush1.msra.mxu0 0.0
        %4290 = vmatprep.subr.mxu0 0.0
        %4291 = vmatpush1.msra.mxu0 0.0
        %4292 = vmatprep.subr.mxu0 0.0
        %4293 = vmatpush1.msra.mxu0 0.0
        %4294 = vmatprep.subr.mxu0 0.0
        %4295 = vmatpush1.msra.mxu0 0.0
        %4296 = vmatprep.subr.mxu0 0.0
        %4297 = vmatpush1.msra.mxu0 0.0
        %4298 = vmatprep.subr.mxu0 0.0
        %4299 = vmatpush1.msra.mxu0 0.0
        %4300 = vmatprep.subr.mxu0 0.0
        %4301 = vmatpush1.msra.mxu0 0.0
        %4302 = vmatprep.subr.mxu0 0.0
        %4303 = vmatpush1.msra.mxu0 0.0
        %4304 = vmatprep.subr.mxu0 0.0
        %4305 = vmatpush1.msra.mxu0 0.0
        %4306 = vmatprep.subr.mxu0 0.0
        %4307 = vmatpush1.msra.mxu0 0.0
        %4308 = vmatprep.subr.mxu0 0.0
        %4309 = vmatpush1.msra.mxu0 0.0
        %4310 = vmatprep.subr.mxu0 0.0
        %4311 = vmatpush1.msra.mxu0 0.0
        %4312 = vmatprep.subr.mxu0 0.0
        %4313 = vmatpush1.msra.mxu0 0.0
        %4314 = vmatprep.subr.mxu0 0.0
        %4315 = vmatpush1.msra.mxu0 0.0
        %4316 = vmatprep.subr.mxu0 0.0
        %4317 = vmatpush1.msra.mxu0 0.0
        %4318 = vmatprep.subr.mxu0 0.0
        %4319 = vmatpush1.msra.mxu0 0.0
        %4320 = vmatprep.subr.mxu0 0.0
        %4321 = vmatpush1.msra.mxu0 0.0
        %4322 = vmatprep.subr.mxu0 0.0
        %4323 = vmatpush1.msra.mxu0 0.0
        %4324 = vmatprep.subr.mxu0 0.0
        %4325 = vmatpush1.msra.mxu0 0.0
        %4326 = vmatprep.mubr.f32.mxu0 0.0
        %4327 = vmatmul.mubr.f32.gmra.mrb[0].mxu0 %v1895
        %v4328 = vpop.f32.mrb[0].mxu0
        %v4329 = vadd.f32 0.0, %v4328
        %v4330 = vpop.f32.mrb[0].mxu0
        %4331 = vmatprep.mubr.f32.mxu0 0.0
        %4332 = vmatmul.mubr.f32.gmra.mrb[0].mxu0 %v1898
        %v4333 = vpop.f32.mrb[0].mxu0
        %v4334 = vadd.f32 0.0, %v4333
        %v4335 = vpop.f32.mrb[0].mxu0
        %4336 = vmatprep.mubr.f32.mxu0 0.0
        %4337 = vmatmul.mubr.f32.gmra.mrb[0].mxu0 %v1901
        %v4338 = vpop.f32.mrb[0].mxu0
        %v4339 = vadd.f32 0.0, %v4338
        %v4340 = vpop.f32.mrb[0].mxu0
        %4341 = vmatprep.mubr.f32.mxu0 0.0
        %4342 = vmatmul.mubr.f32.gmra.mrb[0].mxu0 %v1904
        %v4343 = vpop.f32.mrb[0].mxu0
        %v4344 = vadd.f32 0.0, %v4343
        %v4345 = vpop.f32.mrb[0].mxu0
        %4346 = vmatprep.mubr.f32.mxu0 0.0
        %4347 = vmatmul.mubr.f32.gmra.mrb[0].mxu0 %v1907
        %v4348 = vpop.f32.mrb[0].mxu0
        %v4349 = vadd.f32 0.0, %v4348
        %v4350 = vpop.f32.mrb[0].mxu0
        %4351 = vmatprep.mubr.f32.mxu0 0.0
        %4352 = vmatmul.mubr.f32.gmra.mrb[0].mxu0 %v1910
        %v4353 = vpop.f32.mrb[0].mxu0
        %v4354 = vadd.f32 0.0, %v4353
        %v4355 = vpop.f32.mrb[0].mxu0
        %4356 = vmatprep.mubr.f32.mxu0 0.0
        %4357 = vmatmul.mubr.f32.gmra.mrb[0].mxu0 %v1913
        %v4358 = vpop.f32.mrb[0].mxu0
        %v4359 = vadd.f32 0.0, %v4358
        %v4360 = vpop.f32.mrb[0].mxu0
        %4361 = vmatprep.mubr.f32.mxu0 0.0
        %4362 = vmatmul.mubr.f32.gmra.mrb[0].mxu0 %v1916
        %v4363 = vpop.f32.mrb[0].mxu0
        %v4364 = vadd.f32 0.0, %v4363
        %v4365 = vpop.f32.mrb[0].mxu0
        %4366 = vdwg.mxu0
        %s4367 = scalar_lea.vmem %s5, 160
        %v4368 = vld [vmem:[%s4367] sm:$0xff]
        %v4369 = vld [vmem:[%s4367 + $0x8] sm:$0xff]
        %v4370 = vld [vmem:[%s4367 + $0x10] sm:$0xff]
        %v4371 = vld [vmem:[%s4367 + $0x18] sm:$0xff]
        %v4373 = vsel %vm3262, %v4329, 0
        %v4376 = vsel %vm3262, %v4334, 0
        %v4379 = vsel %vm3262, %v4339, 0
        %v4382 = vsel %vm3262, %v4344, 0
        %v4385 = vsel %vm3262, %v4349, 0
        %v4388 = vsel %vm3262, %v4354, 0
        %v4391 = vsel %vm3262, %v4359, 0
        %v4394 = vsel %vm3262, %v4364, 0
        %4396 = vmatprep.subr.mxu0 0.0
        %4397 = vmatpush1.msra.mxu0 %v4368
        %4398 = vmatprep.subr.mxu0 0.0
        %4399 = vmatpush1.msra.mxu0 %v4369
        %4400 = vmatprep.subr.mxu0 0.0
        %4401 = vmatpush1.msra.mxu0 %v4370
        %4402 = vmatprep.subr.mxu0 0.0
        %4403 = vmatpush1.msra.mxu0 %v4371
        %4404 = vmatprep.subr.mxu0 0.0
        %4405 = vmatpush1.msra.mxu0 0.0
        %4406 = vmatprep.subr.mxu0 0.0
        %4407 = vmatpush1.msra.mxu0 0.0
        %4408 = vmatprep.subr.mxu0 0.0
        %4409 = vmatpush1.msra.mxu0 0.0
        %4410 = vmatprep.subr.mxu0 0.0
        %4411 = vmatpush1.msra.mxu0 0.0
        %4412 = vmatprep.subr.mxu0 0.0
        %4413 = vmatpush1.msra.mxu0 0.0
        %4414 = vmatprep.subr.mxu0 0.0
        %4415 = vmatpush1.msra.mxu0 0.0
        %4416 = vmatprep.subr.mxu0 0.0
        %4417 = vmatpush1.msra.mxu0 0.0
        %4418 = vmatprep.subr.mxu0 0.0
        %4419 = vmatpush1.msra.mxu0 0.0
        %4420 = vmatprep.subr.mxu0 0.0
        %4421 = vmatpush1.msra.mxu0 0.0
        %4422 = vmatprep.subr.mxu0 0.0
        %4423 = vmatpush1.msra.mxu0 0.0
        %4424 = vmatprep.subr.mxu0 0.0
        %4425 = vmatpush1.msra.mxu0 0.0
        %4426 = vmatprep.subr.mxu0 0.0
        %4427 = vmatpush1.msra.mxu0 0.0
        %4428 = vmatprep.subr.mxu0 0.0
        %4429 = vmatpush1.msra.mxu0 0.0
        %4430 = vmatprep.subr.mxu0 0.0
        %4431 = vmatpush1.msra.mxu0 0.0
        %4432 = vmatprep.subr.mxu0 0.0
        %4433 = vmatpush1.msra.mxu0 0.0
        %4434 = vmatprep.subr.mxu0 0.0
        %4435 = vmatpush1.msra.mxu0 0.0
        %4436 = vmatprep.subr.mxu0 0.0
        %4437 = vmatpush1.msra.mxu0 0.0
        %4438 = vmatprep.subr.mxu0 0.0
        %4439 = vmatpush1.msra.mxu0 0.0
        %4440 = vmatprep.subr.mxu0 0.0
        %4441 = vmatpush1.msra.mxu0 0.0
        %4442 = vmatprep.subr.mxu0 0.0
        %4443 = vmatpush1.msra.mxu0 0.0
        %4444 = vmatprep.subr.mxu0 0.0
        %4445 = vmatpush1.msra.mxu0 0.0
        %4446 = vmatprep.subr.mxu0 0.0
        %4447 = vmatpush1.msra.mxu0 0.0
        %4448 = vmatprep.subr.mxu0 0.0
        %4449 = vmatpush1.msra.mxu0 0.0
        %4450 = vmatprep.subr.mxu0 0.0
        %4451 = vmatpush1.msra.mxu0 0.0
        %4452 = vmatprep.subr.mxu0 0.0
        %4453 = vmatpush1.msra.mxu0 0.0
        %4454 = vmatprep.subr.mxu0 0.0
        %4455 = vmatpush1.msra.mxu0 0.0
        %4456 = vmatprep.subr.mxu0 0.0
        %4457 = vmatpush1.msra.mxu0 0.0
        %4458 = vmatprep.subr.mxu0 0.0
        %4459 = vmatpush1.msra.mxu0 0.0
        %4460 = vmatprep.mubr.f32.mxu0 0.0
        %4461 = vmatmul.mubr.f32.gmra.mrb[0].mxu0 %v4373
        %v4462 = vpop.f32.mrb[0].mxu0
        %v4463 = vadd.f32 0.0, %v4462
        %v4464 = vpop.f32.mrb[0].mxu0
        %4465 = vmatprep.mubr.f32.mxu0 0.0
        %4466 = vmatmul.mubr.f32.gmra.mrb[0].mxu0 %v4376
        %v4467 = vpop.f32.mrb[0].mxu0
        %v4468 = vadd.f32 0.0, %v4467
        %v4469 = vpop.f32.mrb[0].mxu0
        %4470 = vmatprep.mubr.f32.mxu0 0.0
        %4471 = vmatmul.mubr.f32.gmra.mrb[0].mxu0 %v4379
        %v4472 = vpop.f32.mrb[0].mxu0
        %v4473 = vadd.f32 0.0, %v4472
        %v4474 = vpop.f32.mrb[0].mxu0
        %4475 = vmatprep.mubr.f32.mxu0 0.0
        %4476 = vmatmul.mubr.f32.gmra.mrb[0].mxu0 %v4382
        %v4477 = vpop.f32.mrb[0].mxu0
        %v4478 = vadd.f32 0.0, %v4477
        %v4479 = vpop.f32.mrb[0].mxu0
        %4480 = vmatprep.mubr.f32.mxu0 0.0
        %4481 = vmatmul.mubr.f32.gmra.mrb[0].mxu0 %v4385
        %v4482 = vpop.f32.mrb[0].mxu0
        %v4483 = vadd.f32 0.0, %v4482
        %v4484 = vpop.f32.mrb[0].mxu0
        %4485 = vmatprep.mubr.f32.mxu0 0.0
        %4486 = vmatmul.mubr.f32.gmra.mrb[0].mxu0 %v4388
        %v4487 = vpop.f32.mrb[0].mxu0
        %v4488 = vadd.f32 0.0, %v4487
        %v4489 = vpop.f32.mrb[0].mxu0
        %4490 = vmatprep.mubr.f32.mxu0 0.0
        %4491 = vmatmul.mubr.f32.gmra.mrb[0].mxu0 %v4391
        %v4492 = vpop.f32.mrb[0].mxu0
        %v4493 = vadd.f32 0.0, %v4492
        %v4494 = vpop.f32.mrb[0].mxu0
        %4495 = vmatprep.mubr.f32.mxu0 0.0
        %4496 = vmatmul.mubr.f32.gmra.mrb[0].mxu0 %v4394
        %v4497 = vpop.f32.mrb[0].mxu0
        %v4498 = vadd.f32 0.0, %v4497
        %v4499 = vpop.f32.mrb[0].mxu0
        %4500 = vdwg.mxu0
        %v4501 = vadd.f32 %v4254, %v4463
        %v4502 = vadd.f32 %v4255, %v4468
        %v4503 = vadd.f32 %v4256, %v4473
        %v4504 = vadd.f32 %v4257, %v4478
        %v4505 = vadd.f32 %v4258, %v4483
        %v4506 = vadd.f32 %v4259, %v4488
        %v4507 = vadd.f32 %v4260, %v4493
        %v4508 = vadd.f32 %v4261, %v4498
        %4509 = vmatprep.subr.mxu0 0.0
        %4510 = vmatpush1.msra.mxu0 %v3035
        %4511 = vmatprep.subr.mxu0 0.0
        %4512 = vmatpush1.msra.mxu0 %v3036
        %4513 = vmatprep.subr.mxu0 0.0
        %4514 = vmatpush1.msra.mxu0 %v3037
        %4515 = vmatprep.subr.mxu0 0.0
        %4516 = vmatpush1.msra.mxu0 %v3038
        %4517 = vmatprep.subr.mxu0 0.0
        %4518 = vmatpush1.msra.mxu0 %v3039
        %4519 = vmatprep.subr.mxu0 0.0
        %4520 = vmatpush1.msra.mxu0 %v3040
        %4521 = vmatprep.subr.mxu0 0.0
        %4522 = vmatpush1.msra.mxu0 %v3041
        %4523 = vmatprep.subr.mxu0 0.0
        %4524 = vmatpush1.msra.mxu0 %v3042
        %4525 = vmatprep.subr.mxu0 0.0
        %4526 = vmatpush1.msra.mxu0 0.0
        %4527 = vmatprep.subr.mxu0 0.0
        %4528 = vmatpush1.msra.mxu0 0.0
        %4529 = vmatprep.subr.mxu0 0.0
        %4530 = vmatpush1.msra.mxu0 0.0
        %4531 = vmatprep.subr.mxu0 0.0
        %4532 = vmatpush1.msra.mxu0 0.0
        %4533 = vmatprep.subr.mxu0 0.0
        %4534 = vmatpush1.msra.mxu0 0.0
        %4535 = vmatprep.subr.mxu0 0.0
        %4536 = vmatpush1.msra.mxu0 0.0
        %4537 = vmatprep.subr.mxu0 0.0
        %4538 = vmatpush1.msra.mxu0 0.0
        %4539 = vmatprep.subr.mxu0 0.0
        %4540 = vmatpush1.msra.mxu0 0.0
        %4541 = vmatprep.subr.mxu0 0.0
        %4542 = vmatpush1.msra.mxu0 0.0
        %4543 = vmatprep.subr.mxu0 0.0
        %4544 = vmatpush1.msra.mxu0 0.0
        %4545 = vmatprep.subr.mxu0 0.0
        %4546 = vmatpush1.msra.mxu0 0.0
        %4547 = vmatprep.subr.mxu0 0.0
        %4548 = vmatpush1.msra.mxu0 0.0
        %4549 = vmatprep.subr.mxu0 0.0
        %4550 = vmatpush1.msra.mxu0 0.0
        %4551 = vmatprep.subr.mxu0 0.0
        %4552 = vmatpush1.msra.mxu0 0.0
        %4553 = vmatprep.subr.mxu0 0.0
        %4554 = vmatpush1.msra.mxu0 0.0
        %4555 = vmatprep.subr.mxu0 0.0
        %4556 = vmatpush1.msra.mxu0 0.0
        %4557 = vmatprep.subr.mxu0 0.0
        %4558 = vmatpush1.msra.mxu0 0.0
        %4559 = vmatprep.subr.mxu0 0.0
        %4560 = vmatpush1.msra.mxu0 0.0
        %4561 = vmatprep.subr.mxu0 0.0
        %4562 = vmatpush1.msra.mxu0 0.0
        %4563 = vmatprep.subr.mxu0 0.0
        %4564 = vmatpush1.msra.mxu0 0.0
        %4565 = vmatprep.subr.mxu0 0.0
        %4566 = vmatpush1.msra.mxu0 0.0
        %4567 = vmatprep.subr.mxu0 0.0
        %4568 = vmatpush1.msra.mxu0 0.0
        %4569 = vmatprep.subr.mxu0 0.0
        %4570 = vmatpush1.msra.mxu0 0.0
        %4571 = vmatprep.subr.mxu0 0.0
        %4572 = vmatpush1.msra.mxu0 0.0
        %4573 = vmatprep.mubr.f32.mxu0 0.0
        %4574 = vmatmul.mubr.f32.gmra.mrb[0].mxu0 %v2175
        %v4575 = vpop.f32.mrb[0].mxu0
        %v4576 = vadd.f32 0.0, %v4575
        %v4577 = vpop.f32.mrb[0].mxu0
        %4578 = vmatprep.mubr.f32.mxu0 0.0
        %4579 = vmatmul.mubr.f32.gmra.mrb[0].mxu0 %v2178
        %v4580 = vpop.f32.mrb[0].mxu0
        %v4581 = vadd.f32 0.0, %v4580
        %v4582 = vpop.f32.mrb[0].mxu0
        %4583 = vmatprep.mubr.f32.mxu0 0.0
        %4584 = vmatmul.mubr.f32.gmra.mrb[0].mxu0 %v2181
        %v4585 = vpop.f32.mrb[0].mxu0
        %v4586 = vadd.f32 0.0, %v4585
        %v4587 = vpop.f32.mrb[0].mxu0
        %4588 = vmatprep.mubr.f32.mxu0 0.0
        %4589 = vmatmul.mubr.f32.gmra.mrb[0].mxu0 %v2184
        %v4590 = vpop.f32.mrb[0].mxu0
        %v4591 = vadd.f32 0.0, %v4590
        %v4592 = vpop.f32.mrb[0].mxu0
        %4593 = vmatprep.mubr.f32.mxu0 0.0
        %4594 = vmatmul.mubr.f32.gmra.mrb[0].mxu0 %v2187
        %v4595 = vpop.f32.mrb[0].mxu0
        %v4596 = vadd.f32 0.0, %v4595
        %v4597 = vpop.f32.mrb[0].mxu0
        %4598 = vmatprep.mubr.f32.mxu0 0.0
        %4599 = vmatmul.mubr.f32.gmra.mrb[0].mxu0 %v2190
        %v4600 = vpop.f32.mrb[0].mxu0
        %v4601 = vadd.f32 0.0, %v4600
        %v4602 = vpop.f32.mrb[0].mxu0
        %4603 = vmatprep.mubr.f32.mxu0 0.0
        %4604 = vmatmul.mubr.f32.gmra.mrb[0].mxu0 %v2193
        %v4605 = vpop.f32.mrb[0].mxu0
        %v4606 = vadd.f32 0.0, %v4605
        %v4607 = vpop.f32.mrb[0].mxu0
        %4608 = vmatprep.mubr.f32.mxu0 0.0
        %4609 = vmatmul.mubr.f32.gmra.mrb[0].mxu0 %v2196
        %v4610 = vpop.f32.mrb[0].mxu0
        %v4611 = vadd.f32 0.0, %v4610
        %v4612 = vpop.f32.mrb[0].mxu0
        %4613 = vdwg.mxu0
        %s4614 = scalar_lea.vmem %s5, 192
        %v4615 = vld [vmem:[%s4614] sm:$0xff]
        %v4616 = vld [vmem:[%s4614 + $0x8] sm:$0xff]
        %v4617 = vld [vmem:[%s4614 + $0x10] sm:$0xff]
        %v4618 = vld [vmem:[%s4614 + $0x18] sm:$0xff]
        %v4620 = vsel %vm3262, %v4576, 0
        %v4623 = vsel %vm3262, %v4581, 0
        %v4626 = vsel %vm3262, %v4586, 0
        %v4629 = vsel %vm3262, %v4591, 0
        %v4632 = vsel %vm3262, %v4596, 0
        %v4635 = vsel %vm3262, %v4601, 0
        %v4638 = vsel %vm3262, %v4606, 0
        %v4641 = vsel %vm3262, %v4611, 0
        %4643 = vmatprep.subr.mxu0 0.0
        %4644 = vmatpush1.msra.mxu0 %v4615
        %4645 = vmatprep.subr.mxu0 0.0
        %4646 = vmatpush1.msra.mxu0 %v4616
        %4647 = vmatprep.subr.mxu0 0.0
        %4648 = vmatpush1.msra.mxu0 %v4617
        %4649 = vmatprep.subr.mxu0 0.0
        %4650 = vmatpush1.msra.mxu0 %v4618
        %4651 = vmatprep.subr.mxu0 0.0
        %4652 = vmatpush1.msra.mxu0 0.0
        %4653 = vmatprep.subr.mxu0 0.0
        %4654 = vmatpush1.msra.mxu0 0.0
        %4655 = vmatprep.subr.mxu0 0.0
        %4656 = vmatpush1.msra.mxu0 0.0
        %4657 = vmatprep.subr.mxu0 0.0
        %4658 = vmatpush1.msra.mxu0 0.0
        %4659 = vmatprep.subr.mxu0 0.0
        %4660 = vmatpush1.msra.mxu0 0.0
        %4661 = vmatprep.subr.mxu0 0.0
        %4662 = vmatpush1.msra.mxu0 0.0
        %4663 = vmatprep.subr.mxu0 0.0
        %4664 = vmatpush1.msra.mxu0 0.0
        %4665 = vmatprep.subr.mxu0 0.0
        %4666 = vmatpush1.msra.mxu0 0.0
        %4667 = vmatprep.subr.mxu0 0.0
        %4668 = vmatpush1.msra.mxu0 0.0
        %4669 = vmatprep.subr.mxu0 0.0
        %4670 = vmatpush1.msra.mxu0 0.0
        %4671 = vmatprep.subr.mxu0 0.0
        %4672 = vmatpush1.msra.mxu0 0.0
        %4673 = vmatprep.subr.mxu0 0.0
        %4674 = vmatpush1.msra.mxu0 0.0
        %4675 = vmatprep.subr.mxu0 0.0
        %4676 = vmatpush1.msra.mxu0 0.0
        %4677 = vmatprep.subr.mxu0 0.0
        %4678 = vmatpush1.msra.mxu0 0.0
        %4679 = vmatprep.subr.mxu0 0.0
        %4680 = vmatpush1.msra.mxu0 0.0
        %4681 = vmatprep.subr.mxu0 0.0
        %4682 = vmatpush1.msra.mxu0 0.0
        %4683 = vmatprep.subr.mxu0 0.0
        %4684 = vmatpush1.msra.mxu0 0.0
        %4685 = vmatprep.subr.mxu0 0.0
        %4686 = vmatpush1.msra.mxu0 0.0
        %4687 = vmatprep.subr.mxu0 0.0
        %4688 = vmatpush1.msra.mxu0 0.0
        %4689 = vmatprep.subr.mxu0 0.0
        %4690 = vmatpush1.msra.mxu0 0.0
        %4691 = vmatprep.subr.mxu0 0.0
        %4692 = vmatpush1.msra.mxu0 0.0
        %4693 = vmatprep.subr.mxu0 0.0
        %4694 = vmatpush1.msra.mxu0 0.0
        %4695 = vmatprep.subr.mxu0 0.0
        %4696 = vmatpush1.msra.mxu0 0.0
        %4697 = vmatprep.subr.mxu0 0.0
        %4698 = vmatpush1.msra.mxu0 0.0
        %4699 = vmatprep.subr.mxu0 0.0
        %4700 = vmatpush1.msra.mxu0 0.0
        %4701 = vmatprep.subr.mxu0 0.0
        %4702 = vmatpush1.msra.mxu0 0.0
        %4703 = vmatprep.subr.mxu0 0.0
        %4704 = vmatpush1.msra.mxu0 0.0
        %4705 = vmatprep.subr.mxu0 0.0
        %4706 = vmatpush1.msra.mxu0 0.0
        %4707 = vmatprep.mubr.f32.mxu0 0.0
        %4708 = vmatmul.mubr.f32.gmra.mrb[0].mxu0 %v4620
        %v4709 = vpop.f32.mrb[0].mxu0
        %v4710 = vadd.f32 0.0, %v4709
        %v4711 = vpop.f32.mrb[0].mxu0
        %4712 = vmatprep.mubr.f32.mxu0 0.0
        %4713 = vmatmul.mubr.f32.gmra.mrb[0].mxu0 %v4623
        %v4714 = vpop.f32.mrb[0].mxu0
        %v4715 = vadd.f32 0.0, %v4714
        %v4716 = vpop.f32.mrb[0].mxu0
        %4717 = vmatprep.mubr.f32.mxu0 0.0
        %4718 = vmatmul.mubr.f32.gmra.mrb[0].mxu0 %v4626
        %v4719 = vpop.f32.mrb[0].mxu0
        %v4720 = vadd.f32 0.0, %v4719
        %v4721 = vpop.f32.mrb[0].mxu0
        %4722 = vmatprep.mubr.f32.mxu0 0.0
        %4723 = vmatmul.mubr.f32.gmra.mrb[0].mxu0 %v4629
        %v4724 = vpop.f32.mrb[0].mxu0
        %v4725 = vadd.f32 0.0, %v4724
        %v4726 = vpop.f32.mrb[0].mxu0
        %4727 = vmatprep.mubr.f32.mxu0 0.0
        %4728 = vmatmul.mubr.f32.gmra.mrb[0].mxu0 %v4632
        %v4729 = vpop.f32.mrb[0].mxu0
        %v4730 = vadd.f32 0.0, %v4729
        %v4731 = vpop.f32.mrb[0].mxu0
        %4732 = vmatprep.mubr.f32.mxu0 0.0
        %4733 = vmatmul.mubr.f32.gmra.mrb[0].mxu0 %v4635
        %v4734 = vpop.f32.mrb[0].mxu0
        %v4735 = vadd.f32 0.0, %v4734
        %v4736 = vpop.f32.mrb[0].mxu0
        %4737 = vmatprep.mubr.f32.mxu0 0.0
        %4738 = vmatmul.mubr.f32.gmra.mrb[0].mxu0 %v4638
        %v4739 = vpop.f32.mrb[0].mxu0
        %v4740 = vadd.f32 0.0, %v4739
        %v4741 = vpop.f32.mrb[0].mxu0
        %4742 = vmatprep.mubr.f32.mxu0 0.0
        %4743 = vmatmul.mubr.f32.gmra.mrb[0].mxu0 %v4641
        %v4744 = vpop.f32.mrb[0].mxu0
        %v4745 = vadd.f32 0.0, %v4744
        %v4746 = vpop.f32.mrb[0].mxu0
        %4747 = vdwg.mxu0
        %v4748 = vadd.f32 %v4501, %v4710
        %v4749 = vadd.f32 %v4502, %v4715
        %v4750 = vadd.f32 %v4503, %v4720
        %v4751 = vadd.f32 %v4504, %v4725
        %v4752 = vadd.f32 %v4505, %v4730
        %v4753 = vadd.f32 %v4506, %v4735
        %v4754 = vadd.f32 %v4507, %v4740
        %v4755 = vadd.f32 %v4508, %v4745
        %4756 = vmatprep.subr.mxu0 0.0
        %4757 = vmatpush1.msra.mxu0 %v3035
        %4758 = vmatprep.subr.mxu0 0.0
        %4759 = vmatpush1.msra.mxu0 %v3036
        %4760 = vmatprep.subr.mxu0 0.0
        %4761 = vmatpush1.msra.mxu0 %v3037
        %4762 = vmatprep.subr.mxu0 0.0
        %4763 = vmatpush1.msra.mxu0 %v3038
        %4764 = vmatprep.subr.mxu0 0.0
        %4765 = vmatpush1.msra.mxu0 %v3039
        %4766 = vmatprep.subr.mxu0 0.0
        %4767 = vmatpush1.msra.mxu0 %v3040
        %4768 = vmatprep.subr.mxu0 0.0
        %4769 = vmatpush1.msra.mxu0 %v3041
        %4770 = vmatprep.subr.mxu0 0.0
        %4771 = vmatpush1.msra.mxu0 %v3042
        %4772 = vmatprep.subr.mxu0 0.0
        %4773 = vmatpush1.msra.mxu0 0.0
        %4774 = vmatprep.subr.mxu0 0.0
        %4775 = vmatpush1.msra.mxu0 0.0
        %4776 = vmatprep.subr.mxu0 0.0
        %4777 = vmatpush1.msra.mxu0 0.0
        %4778 = vmatprep.subr.mxu0 0.0
        %4779 = vmatpush1.msra.mxu0 0.0
        %4780 = vmatprep.subr.mxu0 0.0
        %4781 = vmatpush1.msra.mxu0 0.0
        %4782 = vmatprep.subr.mxu0 0.0
        %4783 = vmatpush1.msra.mxu0 0.0
        %4784 = vmatprep.subr.mxu0 0.0
        %4785 = vmatpush1.msra.mxu0 0.0
        %4786 = vmatprep.subr.mxu0 0.0
        %4787 = vmatpush1.msra.mxu0 0.0
        %4788 = vmatprep.subr.mxu0 0.0
        %4789 = vmatpush1.msra.mxu0 0.0
        %4790 = vmatprep.subr.mxu0 0.0
        %4791 = vmatpush1.msra.mxu0 0.0
        %4792 = vmatprep.subr.mxu0 0.0
        %4793 = vmatpush1.msra.mxu0 0.0
        %4794 = vmatprep.subr.mxu0 0.0
        %4795 = vmatpush1.msra.mxu0 0.0
        %4796 = vmatprep.subr.mxu0 0.0
        %4797 = vmatpush1.msra.mxu0 0.0
        %4798 = vmatprep.subr.mxu0 0.0
        %4799 = vmatpush1.msra.mxu0 0.0
        %4800 = vmatprep.subr.mxu0 0.0
        %4801 = vmatpush1.msra.mxu0 0.0
        %4802 = vmatprep.subr.mxu0 0.0
        %4803 = vmatpush1.msra.mxu0 0.0
        %4804 = vmatprep.subr.mxu0 0.0
        %4805 = vmatpush1.msra.mxu0 0.0
        %4806 = vmatprep.subr.mxu0 0.0
        %4807 = vmatpush1.msra.mxu0 0.0
        %4808 = vmatprep.subr.mxu0 0.0
        %4809 = vmatpush1.msra.mxu0 0.0
        %4810 = vmatprep.subr.mxu0 0.0
        %4811 = vmatpush1.msra.mxu0 0.0
        %4812 = vmatprep.subr.mxu0 0.0
        %4813 = vmatpush1.msra.mxu0 0.0
        %4814 = vmatprep.subr.mxu0 0.0
        %4815 = vmatpush1.msra.mxu0 0.0
        %4816 = vmatprep.subr.mxu0 0.0
        %4817 = vmatpush1.msra.mxu0 0.0
        %4818 = vmatprep.subr.mxu0 0.0
        %4819 = vmatpush1.msra.mxu0 0.0
        %4820 = vmatprep.mubr.f32.mxu0 0.0
        %4821 = vmatmul.mubr.f32.gmra.mrb[0].mxu0 %v2455
        %v4822 = vpop.f32.mrb[0].mxu0
        %v4823 = vadd.f32 0.0, %v4822
        %v4824 = vpop.f32.mrb[0].mxu0
        %4825 = vmatprep.mubr.f32.mxu0 0.0
        %4826 = vmatmul.mubr.f32.gmra.mrb[0].mxu0 %v2458
        %v4827 = vpop.f32.mrb[0].mxu0
        %v4828 = vadd.f32 0.0, %v4827
        %v4829 = vpop.f32.mrb[0].mxu0
        %4830 = vmatprep.mubr.f32.mxu0 0.0
        %4831 = vmatmul.mubr.f32.gmra.mrb[0].mxu0 %v2461
        %v4832 = vpop.f32.mrb[0].mxu0
        %v4833 = vadd.f32 0.0, %v4832
        %v4834 = vpop.f32.mrb[0].mxu0
        %4835 = vmatprep.mubr.f32.mxu0 0.0
        %4836 = vmatmul.mubr.f32.gmra.mrb[0].mxu0 %v2464
        %v4837 = vpop.f32.mrb[0].mxu0
        %v4838 = vadd.f32 0.0, %v4837
        %v4839 = vpop.f32.mrb[0].mxu0
        %4840 = vmatprep.mubr.f32.mxu0 0.0
        %4841 = vmatmul.mubr.f32.gmra.mrb[0].mxu0 %v2467
        %v4842 = vpop.f32.mrb[0].mxu0
        %v4843 = vadd.f32 0.0, %v4842
        %v4844 = vpop.f32.mrb[0].mxu0
        %4845 = vmatprep.mubr.f32.mxu0 0.0
        %4846 = vmatmul.mubr.f32.gmra.mrb[0].mxu0 %v2470
        %v4847 = vpop.f32.mrb[0].mxu0
        %v4848 = vadd.f32 0.0, %v4847
        %v4849 = vpop.f32.mrb[0].mxu0
        %4850 = vmatprep.mubr.f32.mxu0 0.0
        %4851 = vmatmul.mubr.f32.gmra.mrb[0].mxu0 %v2473
        %v4852 = vpop.f32.mrb[0].mxu0
        %v4853 = vadd.f32 0.0, %v4852
        %v4854 = vpop.f32.mrb[0].mxu0
        %4855 = vmatprep.mubr.f32.mxu0 0.0
        %4856 = vmatmul.mubr.f32.gmra.mrb[0].mxu0 %v2476
        %v4857 = vpop.f32.mrb[0].mxu0
        %v4858 = vadd.f32 0.0, %v4857
        %v4859 = vpop.f32.mrb[0].mxu0
        %4860 = vdwg.mxu0
        %s4861 = scalar_lea.vmem %s5, 224
        %v4862 = vld [vmem:[%s4861] sm:$0xff]
        %v4863 = vld [vmem:[%s4861 + $0x8] sm:$0xff]
        %v4864 = vld [vmem:[%s4861 + $0x10] sm:$0xff]
        %v4865 = vld [vmem:[%s4861 + $0x18] sm:$0xff]
        %v4867 = vsel %vm3262, %v4823, 0
        %v4870 = vsel %vm3262, %v4828, 0
        %v4873 = vsel %vm3262, %v4833, 0
        %v4876 = vsel %vm3262, %v4838, 0
        %v4879 = vsel %vm3262, %v4843, 0
        %v4882 = vsel %vm3262, %v4848, 0
        %v4885 = vsel %vm3262, %v4853, 0
        %v4888 = vsel %vm3262, %v4858, 0
        %4890 = vmatprep.subr.mxu0 0.0
        %4891 = vmatpush1.msra.mxu0 %v4862
        %4892 = vmatprep.subr.mxu0 0.0
        %4893 = vmatpush1.msra.mxu0 %v4863
        %4894 = vmatprep.subr.mxu0 0.0
        %4895 = vmatpush1.msra.mxu0 %v4864
        %4896 = vmatprep.subr.mxu0 0.0
        %4897 = vmatpush1.msra.mxu0 %v4865
        %4898 = vmatprep.subr.mxu0 0.0
        %4899 = vmatpush1.msra.mxu0 0.0
        %4900 = vmatprep.subr.mxu0 0.0
        %4901 = vmatpush1.msra.mxu0 0.0
        %4902 = vmatprep.subr.mxu0 0.0
        %4903 = vmatpush1.msra.mxu0 0.0
        %4904 = vmatprep.subr.mxu0 0.0
        %4905 = vmatpush1.msra.mxu0 0.0
        %4906 = vmatprep.subr.mxu0 0.0
        %4907 = vmatpush1.msra.mxu0 0.0
        %4908 = vmatprep.subr.mxu0 0.0
        %4909 = vmatpush1.msra.mxu0 0.0
        %4910 = vmatprep.subr.mxu0 0.0
        %4911 = vmatpush1.msra.mxu0 0.0
        %4912 = vmatprep.subr.mxu0 0.0
        %4913 = vmatpush1.msra.mxu0 0.0
        %4914 = vmatprep.subr.mxu0 0.0
        %4915 = vmatpush1.msra.mxu0 0.0
        %4916 = vmatprep.subr.mxu0 0.0
        %4917 = vmatpush1.msra.mxu0 0.0
        %4918 = vmatprep.subr.mxu0 0.0
        %4919 = vmatpush1.msra.mxu0 0.0
        %4920 = vmatprep.subr.mxu0 0.0
        %4921 = vmatpush1.msra.mxu0 0.0
        %4922 = vmatprep.subr.mxu0 0.0
        %4923 = vmatpush1.msra.mxu0 0.0
        %4924 = vmatprep.subr.mxu0 0.0
        %4925 = vmatpush1.msra.mxu0 0.0
        %4926 = vmatprep.subr.mxu0 0.0
        %4927 = vmatpush1.msra.mxu0 0.0
        %4928 = vmatprep.subr.mxu0 0.0
        %4929 = vmatpush1.msra.mxu0 0.0
        %4930 = vmatprep.subr.mxu0 0.0
        %4931 = vmatpush1.msra.mxu0 0.0
        %4932 = vmatprep.subr.mxu0 0.0
        %4933 = vmatpush1.msra.mxu0 0.0
        %4934 = vmatprep.subr.mxu0 0.0
        %4935 = vmatpush1.msra.mxu0 0.0
        %4936 = vmatprep.subr.mxu0 0.0
        %4937 = vmatpush1.msra.mxu0 0.0
        %4938 = vmatprep.subr.mxu0 0.0
        %4939 = vmatpush1.msra.mxu0 0.0
        %4940 = vmatprep.subr.mxu0 0.0
        %4941 = vmatpush1.msra.mxu0 0.0
        %4942 = vmatprep.subr.mxu0 0.0
        %4943 = vmatpush1.msra.mxu0 0.0
        %4944 = vmatprep.subr.mxu0 0.0
        %4945 = vmatpush1.msra.mxu0 0.0
        %4946 = vmatprep.subr.mxu0 0.0
        %4947 = vmatpush1.msra.mxu0 0.0
        %4948 = vmatprep.subr.mxu0 0.0
        %4949 = vmatpush1.msra.mxu0 0.0
        %4950 = vmatprep.subr.mxu0 0.0
        %4951 = vmatpush1.msra.mxu0 0.0
        %4952 = vmatprep.subr.mxu0 0.0
        %4953 = vmatpush1.msra.mxu0 0.0
        %4954 = vmatprep.mubr.f32.mxu0 0.0
        %4955 = vmatmul.mubr.f32.gmra.mrb[0].mxu0 %v4867
        %v4956 = vpop.f32.mrb[0].mxu0
        %v4957 = vadd.f32 0.0, %v4956
        %v4958 = vpop.f32.mrb[0].mxu0
        %4959 = vmatprep.mubr.f32.mxu0 0.0
        %4960 = vmatmul.mubr.f32.gmra.mrb[0].mxu0 %v4870
        %v4961 = vpop.f32.mrb[0].mxu0
        %v4962 = vadd.f32 0.0, %v4961
        %v4963 = vpop.f32.mrb[0].mxu0
        %4964 = vmatprep.mubr.f32.mxu0 0.0
        %4965 = vmatmul.mubr.f32.gmra.mrb[0].mxu0 %v4873
        %v4966 = vpop.f32.mrb[0].mxu0
        %v4967 = vadd.f32 0.0, %v4966
        %v4968 = vpop.f32.mrb[0].mxu0
        %4969 = vmatprep.mubr.f32.mxu0 0.0
        %4970 = vmatmul.mubr.f32.gmra.mrb[0].mxu0 %v4876
        %v4971 = vpop.f32.mrb[0].mxu0
        %v4972 = vadd.f32 0.0, %v4971
        %v4973 = vpop.f32.mrb[0].mxu0
        %4974 = vmatprep.mubr.f32.mxu0 0.0
        %4975 = vmatmul.mubr.f32.gmra.mrb[0].mxu0 %v4879
        %v4976 = vpop.f32.mrb[0].mxu0
        %v4977 = vadd.f32 0.0, %v4976
        %v4978 = vpop.f32.mrb[0].mxu0
        %4979 = vmatprep.mubr.f32.mxu0 0.0
        %4980 = vmatmul.mubr.f32.gmra.mrb[0].mxu0 %v4882
        %v4981 = vpop.f32.mrb[0].mxu0
        %v4982 = vadd.f32 0.0, %v4981
        %v4983 = vpop.f32.mrb[0].mxu0
        %4984 = vmatprep.mubr.f32.mxu0 0.0
        %4985 = vmatmul.mubr.f32.gmra.mrb[0].mxu0 %v4885
        %v4986 = vpop.f32.mrb[0].mxu0
        %v4987 = vadd.f32 0.0, %v4986
        %v4988 = vpop.f32.mrb[0].mxu0
        %4989 = vmatprep.mubr.f32.mxu0 0.0
        %4990 = vmatmul.mubr.f32.gmra.mrb[0].mxu0 %v4888
        %v4991 = vpop.f32.mrb[0].mxu0
        %v4992 = vadd.f32 0.0, %v4991
        %v4993 = vpop.f32.mrb[0].mxu0
        %4994 = vdwg.mxu0
        %v4995 = vadd.f32 %v4748, %v4957
        %v4996 = vadd.f32 %v4749, %v4962
        %v4997 = vadd.f32 %v4750, %v4967
        %v4998 = vadd.f32 %v4751, %v4972
        %v4999 = vadd.f32 %v4752, %v4977
        %v5000 = vadd.f32 %v4753, %v4982
        %v5001 = vadd.f32 %v4754, %v4987
        %v5002 = vadd.f32 %v4755, %v4992
        %5003 = vmatprep.subr.mxu0 0.0
        %5004 = vmatpush1.msra.mxu0 %v3035
        %5005 = vmatprep.subr.mxu0 0.0
        %5006 = vmatpush1.msra.mxu0 %v3036
        %5007 = vmatprep.subr.mxu0 0.0
        %5008 = vmatpush1.msra.mxu0 %v3037
        %5009 = vmatprep.subr.mxu0 0.0
        %5010 = vmatpush1.msra.mxu0 %v3038
        %5011 = vmatprep.subr.mxu0 0.0
        %5012 = vmatpush1.msra.mxu0 %v3039
        %5013 = vmatprep.subr.mxu0 0.0
        %5014 = vmatpush1.msra.mxu0 %v3040
        %5015 = vmatprep.subr.mxu0 0.0
        %5016 = vmatpush1.msra.mxu0 %v3041
        %5017 = vmatprep.subr.mxu0 0.0
        %5018 = vmatpush1.msra.mxu0 %v3042
        %5019 = vmatprep.subr.mxu0 0.0
        %5020 = vmatpush1.msra.mxu0 0.0
        %5021 = vmatprep.subr.mxu0 0.0
        %5022 = vmatpush1.msra.mxu0 0.0
        %5023 = vmatprep.subr.mxu0 0.0
        %5024 = vmatpush1.msra.mxu0 0.0
        %5025 = vmatprep.subr.mxu0 0.0
        %5026 = vmatpush1.msra.mxu0 0.0
        %5027 = vmatprep.subr.mxu0 0.0
        %5028 = vmatpush1.msra.mxu0 0.0
        %5029 = vmatprep.subr.mxu0 0.0
        %5030 = vmatpush1.msra.mxu0 0.0
        %5031 = vmatprep.subr.mxu0 0.0
        %5032 = vmatpush1.msra.mxu0 0.0
        %5033 = vmatprep.subr.mxu0 0.0
        %5034 = vmatpush1.msra.mxu0 0.0
        %5035 = vmatprep.subr.mxu0 0.0
        %5036 = vmatpush1.msra.mxu0 0.0
        %5037 = vmatprep.subr.mxu0 0.0
        %5038 = vmatpush1.msra.mxu0 0.0
        %5039 = vmatprep.subr.mxu0 0.0
        %5040 = vmatpush1.msra.mxu0 0.0
        %5041 = vmatprep.subr.mxu0 0.0
        %5042 = vmatpush1.msra.mxu0 0.0
        %5043 = vmatprep.subr.mxu0 0.0
        %5044 = vmatpush1.msra.mxu0 0.0
        %5045 = vmatprep.subr.mxu0 0.0
        %5046 = vmatpush1.msra.mxu0 0.0
        %5047 = vmatprep.subr.mxu0 0.0
        %5048 = vmatpush1.msra.mxu0 0.0
        %5049 = vmatprep.subr.mxu0 0.0
        %5050 = vmatpush1.msra.mxu0 0.0
        %5051 = vmatprep.subr.mxu0 0.0
        %5052 = vmatpush1.msra.mxu0 0.0
        %5053 = vmatprep.subr.mxu0 0.0
        %5054 = vmatpush1.msra.mxu0 0.0
        %5055 = vmatprep.subr.mxu0 0.0
        %5056 = vmatpush1.msra.mxu0 0.0
        %5057 = vmatprep.subr.mxu0 0.0
        %5058 = vmatpush1.msra.mxu0 0.0
        %5059 = vmatprep.subr.mxu0 0.0
        %5060 = vmatpush1.msra.mxu0 0.0
        %5061 = vmatprep.subr.mxu0 0.0
        %5062 = vmatpush1.msra.mxu0 0.0
        %5063 = vmatprep.subr.mxu0 0.0
        %5064 = vmatpush1.msra.mxu0 0.0
        %5065 = vmatprep.subr.mxu0 0.0
        %5066 = vmatpush1.msra.mxu0 0.0
        %5067 = vmatprep.mubr.f32.mxu0 0.0
        %5068 = vmatmul.mubr.f32.gmra.mrb[0].mxu0 %v2735
        %v5069 = vpop.f32.mrb[0].mxu0
        %v5070 = vadd.f32 0.0, %v5069
        %v5071 = vpop.f32.mrb[0].mxu0
        %5072 = vmatprep.mubr.f32.mxu0 0.0
        %5073 = vmatmul.mubr.f32.gmra.mrb[0].mxu0 %v2738
        %v5074 = vpop.f32.mrb[0].mxu0
        %v5075 = vadd.f32 0.0, %v5074
        %v5076 = vpop.f32.mrb[0].mxu0
        %5077 = vmatprep.mubr.f32.mxu0 0.0
        %5078 = vmatmul.mubr.f32.gmra.mrb[0].mxu0 %v2741
        %v5079 = vpop.f32.mrb[0].mxu0
        %v5080 = vadd.f32 0.0, %v5079
        %v5081 = vpop.f32.mrb[0].mxu0
        %5082 = vmatprep.mubr.f32.mxu0 0.0
        %5083 = vmatmul.mubr.f32.gmra.mrb[0].mxu0 %v2744
        %v5084 = vpop.f32.mrb[0].mxu0
        %v5085 = vadd.f32 0.0, %v5084
        %v5086 = vpop.f32.mrb[0].mxu0
        %5087 = vmatprep.mubr.f32.mxu0 0.0
        %5088 = vmatmul.mubr.f32.gmra.mrb[0].mxu0 %v2747
        %v5089 = vpop.f32.mrb[0].mxu0
        %v5090 = vadd.f32 0.0, %v5089
        %v5091 = vpop.f32.mrb[0].mxu0
        %5092 = vmatprep.mubr.f32.mxu0 0.0
        %5093 = vmatmul.mubr.f32.gmra.mrb[0].mxu0 %v2750
        %v5094 = vpop.f32.mrb[0].mxu0
        %v5095 = vadd.f32 0.0, %v5094
        %v5096 = vpop.f32.mrb[0].mxu0
        %5097 = vmatprep.mubr.f32.mxu0 0.0
        %5098 = vmatmul.mubr.f32.gmra.mrb[0].mxu0 %v2753
        %v5099 = vpop.f32.mrb[0].mxu0
        %v5100 = vadd.f32 0.0, %v5099
        %v5101 = vpop.f32.mrb[0].mxu0
        %5102 = vmatprep.mubr.f32.mxu0 0.0
        %5103 = vmatmul.mubr.f32.gmra.mrb[0].mxu0 %v2756
        %v5104 = vpop.f32.mrb[0].mxu0
        %v5105 = vadd.f32 0.0, %v5104
        %v5106 = vpop.f32.mrb[0].mxu0
        %5107 = vdwg.mxu0
        %s5108 = scalar_lea.vmem %s5, 256
        %v5109 = vld [vmem:[%s5108] sm:$0xff]
        %v5110 = vld [vmem:[%s5108 + $0x8] sm:$0xff]
        %v5111 = vld [vmem:[%s5108 + $0x10] sm:$0xff]
        %v5112 = vld [vmem:[%s5108 + $0x18] sm:$0xff]
        %v5114 = vsel %vm3262, %v5070, 0
        %v5117 = vsel %vm3262, %v5075, 0
        %v5120 = vsel %vm3262, %v5080, 0
        %v5123 = vsel %vm3262, %v5085, 0
        %v5126 = vsel %vm3262, %v5090, 0
        %v5129 = vsel %vm3262, %v5095, 0
        %v5132 = vsel %vm3262, %v5100, 0
        %v5135 = vsel %vm3262, %v5105, 0
        %5137 = vmatprep.subr.mxu0 0.0
        %5138 = vmatpush1.msra.mxu0 %v5109
        %5139 = vmatprep.subr.mxu0 0.0
        %5140 = vmatpush1.msra.mxu0 %v5110
        %5141 = vmatprep.subr.mxu0 0.0
        %5142 = vmatpush1.msra.mxu0 %v5111
        %5143 = vmatprep.subr.mxu0 0.0
        %5144 = vmatpush1.msra.mxu0 %v5112
        %5145 = vmatprep.subr.mxu0 0.0
        %5146 = vmatpush1.msra.mxu0 0.0
        %5147 = vmatprep.subr.mxu0 0.0
        %5148 = vmatpush1.msra.mxu0 0.0
        %5149 = vmatprep.subr.mxu0 0.0
        %5150 = vmatpush1.msra.mxu0 0.0
        %5151 = vmatprep.subr.mxu0 0.0
        %5152 = vmatpush1.msra.mxu0 0.0
        %5153 = vmatprep.subr.mxu0 0.0
        %5154 = vmatpush1.msra.mxu0 0.0
        %5155 = vmatprep.subr.mxu0 0.0
        %5156 = vmatpush1.msra.mxu0 0.0
        %5157 = vmatprep.subr.mxu0 0.0
        %5158 = vmatpush1.msra.mxu0 0.0
        %5159 = vmatprep.subr.mxu0 0.0
        %5160 = vmatpush1.msra.mxu0 0.0
        %5161 = vmatprep.subr.mxu0 0.0
        %5162 = vmatpush1.msra.mxu0 0.0
        %5163 = vmatprep.subr.mxu0 0.0
        %5164 = vmatpush1.msra.mxu0 0.0
        %5165 = vmatprep.subr.mxu0 0.0
        %5166 = vmatpush1.msra.mxu0 0.0
        %5167 = vmatprep.subr.mxu0 0.0
        %5168 = vmatpush1.msra.mxu0 0.0
        %5169 = vmatprep.subr.mxu0 0.0
        %5170 = vmatpush1.msra.mxu0 0.0
        %5171 = vmatprep.subr.mxu0 0.0
        %5172 = vmatpush1.msra.mxu0 0.0
        %5173 = vmatprep.subr.mxu0 0.0
        %5174 = vmatpush1.msra.mxu0 0.0
        %5175 = vmatprep.subr.mxu0 0.0
        %5176 = vmatpush1.msra.mxu0 0.0
        %5177 = vmatprep.subr.mxu0 0.0
        %5178 = vmatpush1.msra.mxu0 0.0
        %5179 = vmatprep.subr.mxu0 0.0
        %5180 = vmatpush1.msra.mxu0 0.0
        %5181 = vmatprep.subr.mxu0 0.0
        %5182 = vmatpush1.msra.mxu0 0.0
        %5183 = vmatprep.subr.mxu0 0.0
        %5184 = vmatpush1.msra.mxu0 0.0
        %5185 = vmatprep.subr.mxu0 0.0
        %5186 = vmatpush1.msra.mxu0 0.0
        %5187 = vmatprep.subr.mxu0 0.0
        %5188 = vmatpush1.msra.mxu0 0.0
        %5189 = vmatprep.subr.mxu0 0.0
        %5190 = vmatpush1.msra.mxu0 0.0
        %5191 = vmatprep.subr.mxu0 0.0
        %5192 = vmatpush1.msra.mxu0 0.0
        %5193 = vmatprep.subr.mxu0 0.0
        %5194 = vmatpush1.msra.mxu0 0.0
        %5195 = vmatprep.subr.mxu0 0.0
        %5196 = vmatpush1.msra.mxu0 0.0
        %5197 = vmatprep.subr.mxu0 0.0
        %5198 = vmatpush1.msra.mxu0 0.0
        %5199 = vmatprep.subr.mxu0 0.0
        %5200 = vmatpush1.msra.mxu0 0.0
        %5201 = vmatprep.mubr.f32.mxu0 0.0
        %5202 = vmatmul.mubr.f32.gmra.mrb[0].mxu0 %v5114
        %v5203 = vpop.f32.mrb[0].mxu0
        %v5204 = vadd.f32 0.0, %v5203
        %v5205 = vpop.f32.mrb[0].mxu0
        %5206 = vmatprep.mubr.f32.mxu0 0.0
        %5207 = vmatmul.mubr.f32.gmra.mrb[0].mxu0 %v5117
        %v5208 = vpop.f32.mrb[0].mxu0
        %v5209 = vadd.f32 0.0, %v5208
        %v5210 = vpop.f32.mrb[0].mxu0
        %5211 = vmatprep.mubr.f32.mxu0 0.0
        %5212 = vmatmul.mubr.f32.gmra.mrb[0].mxu0 %v5120
        %v5213 = vpop.f32.mrb[0].mxu0
        %v5214 = vadd.f32 0.0, %v5213
        %v5215 = vpop.f32.mrb[0].mxu0
        %5216 = vmatprep.mubr.f32.mxu0 0.0
        %5217 = vmatmul.mubr.f32.gmra.mrb[0].mxu0 %v5123
        %v5218 = vpop.f32.mrb[0].mxu0
        %v5219 = vadd.f32 0.0, %v5218
        %v5220 = vpop.f32.mrb[0].mxu0
        %5221 = vmatprep.mubr.f32.mxu0 0.0
        %5222 = vmatmul.mubr.f32.gmra.mrb[0].mxu0 %v5126
        %v5223 = vpop.f32.mrb[0].mxu0
        %v5224 = vadd.f32 0.0, %v5223
        %v5225 = vpop.f32.mrb[0].mxu0
        %5226 = vmatprep.mubr.f32.mxu0 0.0
        %5227 = vmatmul.mubr.f32.gmra.mrb[0].mxu0 %v5129
        %v5228 = vpop.f32.mrb[0].mxu0
        %v5229 = vadd.f32 0.0, %v5228
        %v5230 = vpop.f32.mrb[0].mxu0
        %5231 = vmatprep.mubr.f32.mxu0 0.0
        %5232 = vmatmul.mubr.f32.gmra.mrb[0].mxu0 %v5132
        %v5233 = vpop.f32.mrb[0].mxu0
        %v5234 = vadd.f32 0.0, %v5233
        %v5235 = vpop.f32.mrb[0].mxu0
        %5236 = vmatprep.mubr.f32.mxu0 0.0
        %5237 = vmatmul.mubr.f32.gmra.mrb[0].mxu0 %v5135
        %v5238 = vpop.f32.mrb[0].mxu0
        %v5239 = vadd.f32 0.0, %v5238
        %v5240 = vpop.f32.mrb[0].mxu0
        %5241 = vdwg.mxu0
        %v5242 = vadd.f32 %v4995, %v5204
        %v5243 = vadd.f32 %v4996, %v5209
        %v5244 = vadd.f32 %v4997, %v5214
        %v5245 = vadd.f32 %v4998, %v5219
        %v5246 = vadd.f32 %v4999, %v5224
        %v5247 = vadd.f32 %v5000, %v5229
        %v5248 = vadd.f32 %v5001, %v5234
        %v5249 = vadd.f32 %v5002, %v5239
        %v5250 = vld [vmem:[%s6] sm:$0x1]
        %v5252 = vlaneseq
        %v5253 = vshrl.u32 %v5252, 7
        %v5254 = vsub.s32 0, %v5253
        %v5255 = vrot.slane %v5250, %v5254
        %v5257 = vmul.f32 %v5242, %v5255
        %v5258 = vmul.f32 %v5243, %v5255
        %v5259 = vmul.f32 %v5244, %v5255
        %v5260 = vmul.f32 %v5245, %v5255
        %v5261 = vmul.f32 %v5246, %v5255
        %v5262 = vmul.f32 %v5247, %v5255
        %v5263 = vmul.f32 %v5248, %v5255
        %v5264 = vmul.f32 %v5249, %v5255
        %v5265 = vld [vmem:[%s7] sm:$0x1]
        %v5267 = vlaneseq
        %v5268 = vshrl.u32 %v5267, 7
        %v5269 = vsub.s32 0, %v5268
        %v5270 = vrot.slane %v5265, %v5269
        %v5272 = vadd.f32 %v5257, %v5270
        %v5273 = vadd.f32 %v5258, %v5270
        %v5274 = vadd.f32 %v5259, %v5270
        %v5275 = vadd.f32 %v5260, %v5270
        %v5276 = vadd.f32 %v5261, %v5270
        %v5277 = vadd.f32 %v5262, %v5270
        %v5278 = vadd.f32 %v5263, %v5270
        %v5279 = vadd.f32 %v5264, %v5270
        %v5280 = vmax.f32 %v5272, 0.0
        %v5281 = vmax.f32 %v5273, 0.0
        %v5282 = vmax.f32 %v5274, 0.0
        %v5283 = vmax.f32 %v5275, 0.0
        %v5284 = vmax.f32 %v5276, 0.0
        %v5285 = vmax.f32 %v5277, 0.0
        %v5286 = vmax.f32 %v5278, 0.0
        %v5287 = vmax.f32 %v5279, 0.0
        %v5288 = vsel %vm3262, %v5280, 0.0
        %v5289 = vsel %vm3262, %v5281, 0.0
        %v5290 = vadd.f32 %v5288, %v5289
        %v5291 = vsel %vm3262, %v5282, 0.0
        %v5292 = vadd.f32 %v5290, %v5291
        %v5293 = vsel %vm3262, %v5283, 0.0
        %v5294 = vadd.f32 %v5292, %v5293
        %v5295 = vsel %vm3262, %v5284, 0.0
        %v5296 = vadd.f32 %v5294, %v5295
        %v5297 = vsel %vm3262, %v5285, 0.0
        %v5298 = vadd.f32 %v5296, %v5297
        %v5299 = vsel %vm3262, %v5286, 0.0
        %v5300 = vadd.f32 %v5298, %v5299
        %v5301 = vsel %vm3262, %v5287, 0.0
        %v5302 = vadd.f32 %v5300, %v5301
        %v5303 = vrot.slane %v5302, 4
        %v5304 = vadd.f32 %v5302, %v5303
        %v5305 = vrot.slane %v5304, 2
        %v5306 = vadd.f32 %v5304, %v5305
        %v5307 = vrot.slane %v5306, 1
        %v5308 = vadd.f32 %v5306, %v5307
        %v5309 = vrcp.pop 64.0
        %v5310 = vmul.f32 %v5308, %v5309
        %v5311 = vsel %vm3262, %v5280, -inf
        %v5312 = vsel %vm3262, %v5281, -inf
        %v5313 = vsel %vm3262, %v5282, -inf
        %v5314 = vsel %vm3262, %v5283, -inf
        %v5315 = vsel %vm3262, %v5284, -inf
        %v5316 = vmax.f32 %v5311, %v5315
        %v5317 = vsel %vm3262, %v5285, -inf
        %v5318 = vmax.f32 %v5312, %v5317
        %v5319 = vsel %vm3262, %v5286, -inf
        %v5320 = vmax.f32 %v5313, %v5319
        %v5321 = vsel %vm3262, %v5287, -inf
        %v5322 = vmax.f32 %v5314, %v5321
        %v5323 = vmax.f32 %v5316, %v5318
        %v5324 = vmax.f32 %v5320, %v5322
        %v5325 = vmax.f32 %v5323, %v5324
        %v5326 = vrot.slane %v5325, 4
        %v5327 = vmax.f32 %v5325, %v5326
        %v5328 = vrot.slane %v5327, 2
        %v5329 = vmax.f32 %v5327, %v5328
        %v5330 = vrot.slane %v5329, 1
        %v5331 = vmax.f32 %v5329, %v5330
        %v5332 = vld [vmem:[%s8] sm:$0x3]
        %v5333 = vmul.f32 %v5310, %v5332
        %vm5334 = vcmask 254976
        %v5335 = vsel %vm5334, %v5333, 0.0
        %5336 = vadd.xlane.f32.xlu0 %v5335
        %v5337 = vpop.xlane.xlu0 %5336
        %v5338 = vmax.f32 %v5337, 0.0
        %v5339 = vld [vmem:[%s9] sm:$0x3]
        %v5340 = vmul.f32 %v5338, %v5339
        %v5341 = vsel %vm5334, %v5340, 0.0
        %v5342 = vrot.slane %v5341, 4
        %v5343 = vadd.f32 %v5341, %v5342
        %v5344 = vrot.slane %v5343, 2
        %v5345 = vadd.f32 %v5343, %v5344
        %v5346 = vrot.slane %v5345, 1
        %v5347 = vadd.f32 %v5345, %v5346
        %v5348 = vmul.f32 %v5331, %v5332
        %v5349 = vsel %vm5334, %v5348, 0.0
        %5350 = vadd.xlane.f32.xlu0 %v5349
        %v5351 = vpop.xlane.xlu0 %5350
        %v5352 = vmax.f32 %v5351, 0.0
        %v5353 = vmul.f32 %v5352, %v5339
        %v5354 = vsel %vm5334, %v5353, 0.0
        %v5355 = vrot.slane %v5354, 4
        %v5356 = vadd.f32 %v5354, %v5355
        %v5357 = vrot.slane %v5356, 2
        %v5358 = vadd.f32 %v5356, %v5357
        %v5359 = vrot.slane %v5358, 1
        %v5360 = vadd.f32 %v5358, %v5359
        %v5361 = vadd.f32 %v5347, %v5360
        %v5362 = vsub.f32 0.0, %v5361
        %v5363 = vmul.f32 %v5362, 1.442695
        %v5364 = vpow.pop %v5363
        %v5365 = vadd.f32 %v5364, 1.0
        %v5366 = vrcp.pop %v5365
        %v5367 = vmul.f32 1.0, %v5366
        %v5368 = vmul.f32 %v5280, %v5367
        %v5369 = vmul.f32 %v5281, %v5367
        %v5370 = vmul.f32 %v5282, %v5367
        %v5371 = vmul.f32 %v5283, %v5367
        %v5372 = vmul.f32 %v5284, %v5367
        %v5373 = vmul.f32 %v5285, %v5367
        %v5374 = vmul.f32 %v5286, %v5367
        %v5375 = vmul.f32 %v5287, %v5367
        %v5376 = vsel %vm3262, %v5368, -inf
        %5377 = vmax.xlane.f32.xlu0 %v5376
        %v5378 = vpop.xlane.xlu0 %5377
        %v5379 = vsel %vm3262, %v5369, -inf
        %5380 = vmax.xlane.f32.xlu0 %v5379
        %v5381 = vpop.xlane.xlu0 %5380
        %v5382 = vsel %vm3262, %v5370, -inf
        %5383 = vmax.xlane.f32.xlu0 %v5382
        %v5384 = vpop.xlane.xlu0 %5383
        %v5385 = vsel %vm3262, %v5371, -inf
        %5386 = vmax.xlane.f32.xlu0 %v5385
        %v5387 = vpop.xlane.xlu0 %5386
        %v5388 = vsel %vm3262, %v5372, -inf
        %5389 = vmax.xlane.f32.xlu0 %v5388
        %v5390 = vpop.xlane.xlu0 %5389
        %v5391 = vsel %vm3262, %v5373, -inf
        %5392 = vmax.xlane.f32.xlu0 %v5391
        %v5393 = vpop.xlane.xlu0 %5392
        %v5394 = vsel %vm3262, %v5374, -inf
        %5395 = vmax.xlane.f32.xlu0 %v5394
        %v5396 = vpop.xlane.xlu0 %5395
        %v5397 = vsel %vm3262, %v5375, -inf
        %5398 = vmax.xlane.f32.xlu0 %v5397
        %v5399 = vpop.xlane.xlu0 %5398
        %v5400 = vadd.f32 %v5378, 0.0
        %v5401 = vadd.f32 %v5381, 0.0
        %v5402 = vadd.f32 %v5384, 0.0
        %v5403 = vadd.f32 %v5387, 0.0
        %v5404 = vadd.f32 %v5390, 0.0
        %v5405 = vadd.f32 %v5393, 0.0
        %v5406 = vadd.f32 %v5396, 0.0
        %v5407 = vadd.f32 %v5399, 0.0
        %v5408 = vld [vmem:[%s10] sm:$0xff]
        %v5409 = vld [vmem:[%s10 + $0x8] sm:$0xff]
        %v5410 = vld [vmem:[%s10 + $0x10] sm:$0xff]
        %v5411 = vld [vmem:[%s10 + $0x18] sm:$0xff]
        %v5412 = vld [vmem:[%s10 + $0x20] sm:$0xff]
        %v5413 = vld [vmem:[%s10 + $0x28] sm:$0xff]
        %v5414 = vld [vmem:[%s10 + $0x30] sm:$0xff]
        %v5415 = vld [vmem:[%s10 + $0x38] sm:$0xff]
        %v5417 = vsel %vm509, %v5408, 0
        %v5420 = vsel %vm509, %v5409, 0
        %v5423 = vsel %vm509, %v5410, 0
        %v5426 = vsel %vm509, %v5411, 0
        %v5429 = vsel %vm509, %v5412, 0
        %v5432 = vsel %vm509, %v5413, 0
        %v5435 = vsel %vm509, %v5414, 0
        %v5438 = vsel %vm509, %v5415, 0
        %5440 = vmatprep.subr.mxu0 0.0
        %5441 = vmatpush1.msra.mxu0 %v5368
        %5442 = vmatprep.subr.mxu0 0.0
        %5443 = vmatpush1.msra.mxu0 %v5369
        %5444 = vmatprep.subr.mxu0 0.0
        %5445 = vmatpush1.msra.mxu0 %v5370
        %5446 = vmatprep.subr.mxu0 0.0
        %5447 = vmatpush1.msra.mxu0 %v5371
        %5448 = vmatprep.subr.mxu0 0.0
        %5449 = vmatpush1.msra.mxu0 %v5372
        %5450 = vmatprep.subr.mxu0 0.0
        %5451 = vmatpush1.msra.mxu0 %v5373
        %5452 = vmatprep.subr.mxu0 0.0
        %5453 = vmatpush1.msra.mxu0 %v5374
        %5454 = vmatprep.subr.mxu0 0.0
        %5455 = vmatpush1.msra.mxu0 %v5375
        %5456 = vmatprep.subr.mxu0 0.0
        %5457 = vmatpush1.msra.mxu0 0.0
        %5458 = vmatprep.subr.mxu0 0.0
        %5459 = vmatpush1.msra.mxu0 0.0
        %5460 = vmatprep.subr.mxu0 0.0
        %5461 = vmatpush1.msra.mxu0 0.0
        %5462 = vmatprep.subr.mxu0 0.0
        %5463 = vmatpush1.msra.mxu0 0.0
        %5464 = vmatprep.subr.mxu0 0.0
        %5465 = vmatpush1.msra.mxu0 0.0
        %5466 = vmatprep.subr.mxu0 0.0
        %5467 = vmatpush1.msra.mxu0 0.0
        %5468 = vmatprep.subr.mxu0 0.0
        %5469 = vmatpush1.msra.mxu0 0.0
        %5470 = vmatprep.subr.mxu0 0.0
        %5471 = vmatpush1.msra.mxu0 0.0
        %5472 = vmatprep.subr.mxu0 0.0
        %5473 = vmatpush1.msra.mxu0 0.0
        %5474 = vmatprep.subr.mxu0 0.0
        %5475 = vmatpush1.msra.mxu0 0.0
        %5476 = vmatprep.subr.mxu0 0.0
        %5477 = vmatpush1.msra.mxu0 0.0
        %5478 = vmatprep.subr.mxu0 0.0
        %5479 = vmatpush1.msra.mxu0 0.0
        %5480 = vmatprep.subr.mxu0 0.0
        %5481 = vmatpush1.msra.mxu0 0.0
        %5482 = vmatprep.subr.mxu0 0.0
        %5483 = vmatpush1.msra.mxu0 0.0
        %5484 = vmatprep.subr.mxu0 0.0
        %5485 = vmatpush1.msra.mxu0 0.0
        %5486 = vmatprep.subr.mxu0 0.0
        %5487 = vmatpush1.msra.mxu0 0.0
        %5488 = vmatprep.subr.mxu0 0.0
        %5489 = vmatpush1.msra.mxu0 0.0
        %5490 = vmatprep.subr.mxu0 0.0
        %5491 = vmatpush1.msra.mxu0 0.0
        %5492 = vmatprep.subr.mxu0 0.0
        %5493 = vmatpush1.msra.mxu0 0.0
        %5494 = vmatprep.subr.mxu0 0.0
        %5495 = vmatpush1.msra.mxu0 0.0
        %5496 = vmatprep.subr.mxu0 0.0
        %5497 = vmatpush1.msra.mxu0 0.0
        %5498 = vmatprep.subr.mxu0 0.0
        %5499 = vmatpush1.msra.mxu0 0.0
        %5500 = vmatprep.subr.mxu0 0.0
        %5501 = vmatpush1.msra.mxu0 0.0
        %5502 = vmatprep.subr.mxu0 0.0
        %5503 = vmatpush1.msra.mxu0 0.0
        %5504 = vmatprep.mubr.f32.mxu0 0.0
        %5505 = vmatmul.mubr.f32.gmra.mrb[0].mxu0 %v5417
        %v5506 = vpop.f32.mrb[0].mxu0
        %v5507 = vadd.f32 0.0, %v5506
        %v5508 = vpop.f32.mrb[0].mxu0
        %5509 = vmatprep.mubr.f32.mxu0 0.0
        %5510 = vmatmul.mubr.f32.gmra.mrb[0].mxu0 %v5420
        %v5511 = vpop.f32.mrb[0].mxu0
        %v5512 = vadd.f32 0.0, %v5511
        %v5513 = vpop.f32.mrb[0].mxu0
        %5514 = vmatprep.mubr.f32.mxu0 0.0
        %5515 = vmatmul.mubr.f32.gmra.mrb[0].mxu0 %v5423
        %v5516 = vpop.f32.mrb[0].mxu0
        %v5517 = vadd.f32 0.0, %v5516
        %v5518 = vpop.f32.mrb[0].mxu0
        %5519 = vmatprep.mubr.f32.mxu0 0.0
        %5520 = vmatmul.mubr.f32.gmra.mrb[0].mxu0 %v5426
        %v5521 = vpop.f32.mrb[0].mxu0
        %v5522 = vadd.f32 0.0, %v5521
        %v5523 = vpop.f32.mrb[0].mxu0
        %5524 = vmatprep.mubr.f32.mxu0 0.0
        %5525 = vmatmul.mubr.f32.gmra.mrb[0].mxu0 %v5429
        %v5526 = vpop.f32.mrb[0].mxu0
        %v5527 = vadd.f32 0.0, %v5526
        %v5528 = vpop.f32.mrb[0].mxu0
        %5529 = vmatprep.mubr.f32.mxu0 0.0
        %5530 = vmatmul.mubr.f32.gmra.mrb[0].mxu0 %v5432
        %v5531 = vpop.f32.mrb[0].mxu0
        %v5532 = vadd.f32 0.0, %v5531
        %v5533 = vpop.f32.mrb[0].mxu0
        %5534 = vmatprep.mubr.f32.mxu0 0.0
        %5535 = vmatmul.mubr.f32.gmra.mrb[0].mxu0 %v5435
        %v5536 = vpop.f32.mrb[0].mxu0
        %v5537 = vadd.f32 0.0, %v5536
        %v5538 = vpop.f32.mrb[0].mxu0
        %5539 = vmatprep.mubr.f32.mxu0 0.0
        %5540 = vmatmul.mubr.f32.gmra.mrb[0].mxu0 %v5438
        %v5541 = vpop.f32.mrb[0].mxu0
        %v5542 = vadd.f32 0.0, %v5541
        %v5543 = vpop.f32.mrb[0].mxu0
        %5544 = vdwg.mxu0
        %v5545 = vld [vmem:[%s11] sm:$0xff]
        %v5546 = vld [vmem:[%s11 + $0x8] sm:$0xff]
        %v5547 = vld [vmem:[%s11 + $0x10] sm:$0xff]
        %v5548 = vld [vmem:[%s11 + $0x18] sm:$0xff]
        %v5549 = vld [vmem:[%s11 + $0x20] sm:$0xff]
        %v5550 = vld [vmem:[%s11 + $0x28] sm:$0xff]
        %v5551 = vld [vmem:[%s11 + $0x30] sm:$0xff]
        %v5552 = vld [vmem:[%s11 + $0x38] sm:$0xff]
        %v5554 = vsel %vm509, %v5545, 0
        %v5557 = vsel %vm509, %v5546, 0
        %v5560 = vsel %vm509, %v5547, 0
        %v5563 = vsel %vm509, %v5548, 0
        %v5566 = vsel %vm509, %v5549, 0
        %v5569 = vsel %vm509, %v5550, 0
        %v5572 = vsel %vm509, %v5551, 0
        %v5575 = vsel %vm509, %v5552, 0
        %5577 = vmatprep.subr.mxu0 0.0
        %5578 = vmatpush1.msra.mxu0 %v5400
        %5579 = vmatprep.subr.mxu0 0.0
        %5580 = vmatpush1.msra.mxu0 %v5401
        %5581 = vmatprep.subr.mxu0 0.0
        %5582 = vmatpush1.msra.mxu0 %v5402
        %5583 = vmatprep.subr.mxu0 0.0
        %5584 = vmatpush1.msra.mxu0 %v5403
        %5585 = vmatprep.subr.mxu0 0.0
        %5586 = vmatpush1.msra.mxu0 %v5404
        %5587 = vmatprep.subr.mxu0 0.0
        %5588 = vmatpush1.msra.mxu0 %v5405
        %5589 = vmatprep.subr.mxu0 0.0
        %5590 = vmatpush1.msra.mxu0 %v5406
        %5591 = vmatprep.subr.mxu0 0.0
        %5592 = vmatpush1.msra.mxu0 %v5407
        %5593 = vmatprep.subr.mxu0 0.0
        %5594 = vmatpush1.msra.mxu0 0.0
        %5595 = vmatprep.subr.mxu0 0.0
        %5596 = vmatpush1.msra.mxu0 0.0
        %5597 = vmatprep.subr.mxu0 0.0
        %5598 = vmatpush1.msra.mxu0 0.0
        %5599 = vmatprep.subr.mxu0 0.0
        %5600 = vmatpush1.msra.mxu0 0.0
        %5601 = vmatprep.subr.mxu0 0.0
        %5602 = vmatpush1.msra.mxu0 0.0
        %5603 = vmatprep.subr.mxu0 0.0
        %5604 = vmatpush1.msra.mxu0 0.0
        %5605 = vmatprep.subr.mxu0 0.0
        %5606 = vmatpush1.msra.mxu0 0.0
        %5607 = vmatprep.subr.mxu0 0.0
        %5608 = vmatpush1.msra.mxu0 0.0
        %5609 = vmatprep.subr.mxu0 0.0
        %5610 = vmatpush1.msra.mxu0 0.0
        %5611 = vmatprep.subr.mxu0 0.0
        %5612 = vmatpush1.msra.mxu0 0.0
        %5613 = vmatprep.subr.mxu0 0.0
        %5614 = vmatpush1.msra.mxu0 0.0
        %5615 = vmatprep.subr.mxu0 0.0
        %5616 = vmatpush1.msra.mxu0 0.0
        %5617 = vmatprep.subr.mxu0 0.0
        %5618 = vmatpush1.msra.mxu0 0.0
        %5619 = vmatprep.subr.mxu0 0.0
        %5620 = vmatpush1.msra.mxu0 0.0
        %5621 = vmatprep.subr.mxu0 0.0
        %5622 = vmatpush1.msra.mxu0 0.0
        %5623 = vmatprep.subr.mxu0 0.0
        %5624 = vmatpush1.msra.mxu0 0.0
        %5625 = vmatprep.subr.mxu0 0.0
        %5626 = vmatpush1.msra.mxu0 0.0
        %5627 = vmatprep.subr.mxu0 0.0
        %5628 = vmatpush1.msra.mxu0 0.0
        %5629 = vmatprep.subr.mxu0 0.0
        %5630 = vmatpush1.msra.mxu0 0.0
        %5631 = vmatprep.subr.mxu0 0.0
        %5632 = vmatpush1.msra.mxu0 0.0
        %5633 = vmatprep.subr.mxu0 0.0
        %5634 = vmatpush1.msra.mxu0 0.0
        %5635 = vmatprep.subr.mxu0 0.0
        %5636 = vmatpush1.msra.mxu0 0.0
        %5637 = vmatprep.subr.mxu0 0.0
        %5638 = vmatpush1.msra.mxu0 0.0
        %5639 = vmatprep.subr.mxu0 0.0
        %5640 = vmatpush1.msra.mxu0 0.0
        %5641 = vmatprep.mubr.f32.mxu0 0.0
        %5642 = vmatmul.mubr.f32.gmra.mrb[0].mxu0 %v5554
        %v5643 = vpop.f32.mrb[0].mxu0
        %v5644 = vadd.f32 0.0, %v5643
        %v5645 = vpop.f32.mrb[0].mxu0
        %5646 = vmatprep.mubr.f32.mxu0 0.0
        %5647 = vmatmul.mubr.f32.gmra.mrb[0].mxu0 %v5557
        %v5648 = vpop.f32.mrb[0].mxu0
        %v5649 = vadd.f32 0.0, %v5648
        %v5650 = vpop.f32.mrb[0].mxu0
        %5651 = vmatprep.mubr.f32.mxu0 0.0
        %5652 = vmatmul.mubr.f32.gmra.mrb[0].mxu0 %v5560
        %v5653 = vpop.f32.mrb[0].mxu0
        %v5654 = vadd.f32 0.0, %v5653
        %v5655 = vpop.f32.mrb[0].mxu0
        %5656 = vmatprep.mubr.f32.mxu0 0.0
        %5657 = vmatmul.mubr.f32.gmra.mrb[0].mxu0 %v5563
        %v5658 = vpop.f32.mrb[0].mxu0
        %v5659 = vadd.f32 0.0, %v5658
        %v5660 = vpop.f32.mrb[0].mxu0
        %5661 = vmatprep.mubr.f32.mxu0 0.0
        %5662 = vmatmul.mubr.f32.gmra.mrb[0].mxu0 %v5566
        %v5663 = vpop.f32.mrb[0].mxu0
        %v5664 = vadd.f32 0.0, %v5663
        %v5665 = vpop.f32.mrb[0].mxu0
        %5666 = vmatprep.mubr.f32.mxu0 0.0
        %5667 = vmatmul.mubr.f32.gmra.mrb[0].mxu0 %v5569
        %v5668 = vpop.f32.mrb[0].mxu0
        %v5669 = vadd.f32 0.0, %v5668
        %v5670 = vpop.f32.mrb[0].mxu0
        %5671 = vmatprep.mubr.f32.mxu0 0.0
        %5672 = vmatmul.mubr.f32.gmra.mrb[0].mxu0 %v5572
        %v5673 = vpop.f32.mrb[0].mxu0
        %v5674 = vadd.f32 0.0, %v5673
        %v5675 = vpop.f32.mrb[0].mxu0
        %5676 = vmatprep.mubr.f32.mxu0 0.0
        %5677 = vmatmul.mubr.f32.gmra.mrb[0].mxu0 %v5575
        %v5678 = vpop.f32.mrb[0].mxu0
        %v5679 = vadd.f32 0.0, %v5678
        %v5680 = vpop.f32.mrb[0].mxu0
        %5681 = vdwg.mxu0
        %v5682 = vsel %vm3262, %v5507, 0.0
        %5683 = vadd.xlane.f32.xlu0 %v5682
        %v5684 = vpop.xlane.xlu0 %5683
        %v5685 = vsel %vm3262, %v5512, 0.0
        %5686 = vadd.xlane.f32.xlu0 %v5685
        %v5687 = vpop.xlane.xlu0 %5686
        %v5688 = vsel %vm3262, %v5517, 0.0
        %5689 = vadd.xlane.f32.xlu0 %v5688
        %v5690 = vpop.xlane.xlu0 %5689
        %v5691 = vsel %vm3262, %v5522, 0.0
        %5692 = vadd.xlane.f32.xlu0 %v5691
        %v5693 = vpop.xlane.xlu0 %5692
        %v5694 = vsel %vm3262, %v5527, 0.0
        %5695 = vadd.xlane.f32.xlu0 %v5694
        %v5696 = vpop.xlane.xlu0 %5695
        %v5697 = vsel %vm3262, %v5532, 0.0
        %5698 = vadd.xlane.f32.xlu0 %v5697
        %v5699 = vpop.xlane.xlu0 %5698
        %v5700 = vsel %vm3262, %v5537, 0.0
        %5701 = vadd.xlane.f32.xlu0 %v5700
        %v5702 = vpop.xlane.xlu0 %5701
        %v5703 = vsel %vm3262, %v5542, 0.0
        %5704 = vadd.xlane.f32.xlu0 %v5703
        %v5705 = vpop.xlane.xlu0 %5704
        %v5706 = vrcp.pop 32.0
        %v5707 = vmul.f32 %v5684, %v5706
        %v5708 = vmul.f32 %v5687, %v5706
        %v5709 = vmul.f32 %v5690, %v5706
        %v5710 = vmul.f32 %v5693, %v5706
        %v5711 = vmul.f32 %v5696, %v5706
        %v5712 = vmul.f32 %v5699, %v5706
        %v5713 = vmul.f32 %v5702, %v5706
        %v5714 = vmul.f32 %v5705, %v5706
        %v5715 = vsel %vm3262, %v5644, 0.0
        %5716 = vadd.xlane.f32.xlu0 %v5715
        %v5717 = vpop.xlane.xlu0 %5716
        %v5718 = vsel %vm3262, %v5649, 0.0
        %5719 = vadd.xlane.f32.xlu0 %v5718
        %v5720 = vpop.xlane.xlu0 %5719
        %v5721 = vsel %vm3262, %v5654, 0.0
        %5722 = vadd.xlane.f32.xlu0 %v5721
        %v5723 = vpop.xlane.xlu0 %5722
        %v5724 = vsel %vm3262, %v5659, 0.0
        %5725 = vadd.xlane.f32.xlu0 %v5724
        %v5726 = vpop.xlane.xlu0 %5725
        %v5727 = vsel %vm3262, %v5664, 0.0
        %5728 = vadd.xlane.f32.xlu0 %v5727
        %v5729 = vpop.xlane.xlu0 %5728
        %v5730 = vsel %vm3262, %v5669, 0.0
        %5731 = vadd.xlane.f32.xlu0 %v5730
        %v5732 = vpop.xlane.xlu0 %5731
        %v5733 = vsel %vm3262, %v5674, 0.0
        %5734 = vadd.xlane.f32.xlu0 %v5733
        %v5735 = vpop.xlane.xlu0 %5734
        %v5736 = vsel %vm3262, %v5679, 0.0
        %5737 = vadd.xlane.f32.xlu0 %v5736
        %v5738 = vpop.xlane.xlu0 %5737
        %v5739 = vmul.f32 %v5717, %v5706
        %v5740 = vmul.f32 %v5720, %v5706
        %v5741 = vmul.f32 %v5723, %v5706
        %v5742 = vmul.f32 %v5726, %v5706
        %v5743 = vmul.f32 %v5729, %v5706
        %v5744 = vmul.f32 %v5732, %v5706
        %v5745 = vmul.f32 %v5735, %v5706
        %v5746 = vmul.f32 %v5738, %v5706
        %v5747 = vadd.f32 %v5707, %v5739
        %v5748 = vadd.f32 %v5708, %v5740
        %v5749 = vadd.f32 %v5709, %v5741
        %v5750 = vadd.f32 %v5710, %v5742
        %v5751 = vadd.f32 %v5711, %v5743
        %v5752 = vadd.f32 %v5712, %v5744
        %v5753 = vadd.f32 %v5713, %v5745
        %v5754 = vadd.f32 %v5714, %v5746
        %v5755 = vsub.f32 0.0, %v5747
        %v5756 = vsub.f32 0.0, %v5748
        %v5757 = vsub.f32 0.0, %v5749
        %v5758 = vsub.f32 0.0, %v5750
        %v5759 = vsub.f32 0.0, %v5751
        %v5760 = vsub.f32 0.0, %v5752
        %v5761 = vsub.f32 0.0, %v5753
        %v5762 = vsub.f32 0.0, %v5754
        %v5763 = vmul.f32 %v5755, 1.442695
        %v5764 = vpow.pop %v5763
        %v5765 = vmul.f32 %v5756, 1.442695
        %v5766 = vpow.pop %v5765
        %v5767 = vmul.f32 %v5757, 1.442695
        %v5768 = vpow.pop %v5767
        %v5769 = vmul.f32 %v5758, 1.442695
        %v5770 = vpow.pop %v5769
        %v5771 = vmul.f32 %v5759, 1.442695
        %v5772 = vpow.pop %v5771
        %v5773 = vmul.f32 %v5760, 1.442695
        %v5774 = vpow.pop %v5773
        %v5775 = vmul.f32 %v5761, 1.442695
        %v5776 = vpow.pop %v5775
        %v5777 = vmul.f32 %v5762, 1.442695
        %v5778 = vpow.pop %v5777
        %v5779 = vadd.f32 %v5764, 1.0
        %v5780 = vadd.f32 %v5766, 1.0
        %v5781 = vadd.f32 %v5768, 1.0
        %v5782 = vadd.f32 %v5770, 1.0
        %v5783 = vadd.f32 %v5772, 1.0
        %v5784 = vadd.f32 %v5774, 1.0
        %v5785 = vadd.f32 %v5776, 1.0
        %v5786 = vadd.f32 %v5778, 1.0
        %v5787 = vrcp.pop %v5779
        %v5788 = vmul.f32 1.0, %v5787
        %v5789 = vrcp.pop %v5780
        %v5790 = vmul.f32 1.0, %v5789
        %v5791 = vrcp.pop %v5781
        %v5792 = vmul.f32 1.0, %v5791
        %v5793 = vrcp.pop %v5782
        %v5794 = vmul.f32 1.0, %v5793
        %v5795 = vrcp.pop %v5783
        %v5796 = vmul.f32 1.0, %v5795
        %v5797 = vrcp.pop %v5784
        %v5798 = vmul.f32 1.0, %v5797
        %v5799 = vrcp.pop %v5785
        %v5800 = vmul.f32 1.0, %v5799
        %v5801 = vrcp.pop %v5786
        %v5802 = vmul.f32 1.0, %v5801
        %v5803 = vmul.f32 %v5368, %v5788
        %v5804 = vmul.f32 %v5369, %v5790
        %v5805 = vmul.f32 %v5370, %v5792
        %v5806 = vmul.f32 %v5371, %v5794
        %v5807 = vmul.f32 %v5372, %v5796
        %v5808 = vmul.f32 %v5373, %v5798
        %v5809 = vmul.f32 %v5374, %v5800
        %v5810 = vmul.f32 %v5375, %v5802
        %5811 = vst.msk [vmem:[%s406] sm:$0xff] %vm3262, %v5803
        %5812 = vst.msk [vmem:[%s406 + $0x8] sm:$0xff] %vm3262, %v5804
        %5813 = vst.msk [vmem:[%s406 + $0x10] sm:$0xff] %vm3262, %v5805
        %5814 = vst.msk [vmem:[%s406 + $0x18] sm:$0xff] %vm3262, %v5806
        %5815 = vst.msk [vmem:[%s406 + $0x20] sm:$0xff] %vm3262, %v5807
        %5816 = vst.msk [vmem:[%s406 + $0x28] sm:$0xff] %vm3262, %v5808
        %5817 = vst.msk [vmem:[%s406 + $0x30] sm:$0xff] %vm3262, %v5809
        %5818 = vst.msk [vmem:[%s406 + $0x38] sm:$0xff] %vm3262, %v5810
        %s5819 = sand.u32 %s291, 1
        %s5820 = scalar_lea.sflag [#allocation3], %s5819
        %s5821 = sand.u32 %s291, 1
        %s5822 = smul.addr %s5821, 64
        %s5823 = scalar_lea.vmem [#allocation2], %s5822
        // Predicated region
        $region69: #{down_forward.1} parent=67 // pred_check
          %p5824 = pneg %p301
        $region70: #{down_forward.1} parent=67 // pred_check_branch
          %5826 = sbr.rel (%p5824) target = $region72
        $region71: #{down_forward.1} parent=67 // pred_region
          %s5828 = ssub.s32 1024, 1024
          %5829 = vsyncadd %s5820, %s5828
          %s5830 = smul.addr %s26, 8
          %s5831 = smul.addr %s5830, 128
          %s5832 = scalar_lea.hbm %s12, %s5831
          %s5833 = sshll.u32 %s5823, 4
          %s5834 = int_to_ptr.vmem [resolvable:$true] %s5833
          %5839 = dma.vmem_to_hbm [thread:$0]  %s5834, 1024, %s5832, %s5820, 128, 128, 8
        $region72: #{down_forward.1} parent=67 // pred_fallthru
          _
      $region68: #{down_forward.1} parent=5 // pred_fallthru
        _
      %p5840 = scmp.le.s32.totalorder 2, %s21
      // Predicated region
      $region73: #{down_forward.1} parent=5 // pred_check
        %p5841 = pneg %p5840
      $region74: #{down_forward.1} parent=5 // pred_check_branch
        %5843 = sbr.rel (%p5841) target = $region76
      $region75: #{down_forward.1} parent=5 // pred_region
        %s5844 = ssub.s32 %s21, 2
        // Predicated region
        $region77: #{down_forward.1} parent=75 // pred_check
          %p5845 = pneg %p307
        $region78: #{down_forward.1} parent=75 // pred_check_branch
          %5847 = sbr.rel (%p5845) target = $region80
        $region79: #{down_forward.1} parent=75 // pred_region
          %s5848 = sand.u32 %s292, 1
          %s5849 = scalar_lea.sflag [#allocation3], %s5848
          %s5850 = sand.u32 %s292, 1
          %s5851 = smul.addr %s5850, 64
          %s5852 = scalar_lea.vmem [#allocation2], %s5851
          %5853 = dma.done %s5849, 1024
        $region80: #{down_forward.1} parent=75 // pred_fallthru
          _
      $region76: #{down_forward.1} parent=5 // pred_fallthru
        _
    $region6: #{down_forward.1} parent=1 // loop_footer
      %s25 = sadd.s32 1, %s21
    $region7: #{down_forward.1} parent=1 // loop_footer_branch
      %20 = sbr.rel target = $region3
    $region8: #{down_forward.1} parent=1 // loop_exit
      _
    %5854 = vsyncpa [#allocation3], 1
    %s5855 = scalar_lea.sflag [#allocation3], 1
    %5856 = vsyncpa %s5855, 1

</llo_original>
